<compile_context>
chip_gen: v7x
topology: tpu7x:2x2x1
jax: 0.10.0
libtpu: 0.0.40
codegen_flags: <defaults>
</compile_context>

<pallas_src>
import jax
import jax.numpy as jnp
import numpy as np
from jax.experimental import pallas as pl
from jax.experimental.pallas import tpu as pltpu


# ----------------------------- fused Pallas kernel --------------------------

def _make_fused_kernel(T, BP, B, H, L):
    H2, G = 2 * H, 8 * H

    def kernel(*refs):
        x_ref = refs[0]
        layer_refs = refs[1:1 + 3 * L]
        w_omega_ref, u_omega_ref, w_dec_ref, b_dec_ref = \
            refs[1 + 3 * L:5 + 3 * L]
        logits_ref = refs[5 + 3 * L]
        xg_scr, out_a, out_b = refs[6 + 3 * L:]

        # Constant lane masks (computed once per kernel, hoisted).
        # Gate columns interleaved per gate: [i_f,i_b,f_f,f_b,g_f,g_b,o_f,o_b].
        glane = jax.lax.broadcasted_iota(jnp.int32, (BP, G), 1)
        gmask = (glane % H2) < H              # fwd-direction gate columns
        hlane = jax.lax.broadcasted_iota(jnp.int32, (BP, H2), 1)
        hmask = hlane < H                     # fwd half of the [h_f|h_b] state

        def blk(t):                            # rows of time step t in a slab
            return slice(t * BP, (t + 1) * BP)

        def run_layer(src_ref, wih_ref, whh_ref, b_ref, out_scr):
            # -- (1) batched input projection: ONE matmul for all T steps.
            src = src_ref[...].astype(jnp.bfloat16)            # (T*BP, Din)
            xg = jnp.dot(src, wih_ref[...],
                         preferred_element_type=jnp.float32) + b_ref[...]

            # -- (2) store gate pre-activations with the bwd-direction columns
            #    already time-reversed -> no select inside the recurrence.
            for t in range(T):
                xg_scr[blk(t), :] = jnp.where(gmask, xg[blk(t)],
                                              xg[blk(T - 1 - t)])

            # -- (3) serial recurrence: per step just one aligned load, one
            #    (BP,2H)@(2H,8H) MXU op, gate math and ONE aligned store.
            whh = whh_ref[...]                                  # hoisted, bf16
            h = jnp.zeros((BP, H2), jnp.float32)                # [h_f | h_b]
            c = jnp.zeros((BP, H2), jnp.float32)                # [c_f | c_b]
            for s in range(T):
                gates = xg_scr[blk(s), :] + jnp.dot(
                    h.astype(jnp.bfloat16), whh,
                    preferred_element_type=jnp.float32)         # (BP, 8H)
                i = jax.nn.sigmoid(gates[:, 0 * H2:1 * H2])
                f = jax.nn.sigmoid(gates[:, 1 * H2:2 * H2])
                g = jnp.tanh(gates[:, 2 * H2:3 * H2])
                o = jax.nn.sigmoid(gates[:, 3 * H2:4 * H2])
                c = f * c + i * g
                h = o * jnp.tanh(c)
                out_scr[blk(s), :] = h                          # single store

            # -- (4) bulk, in-place un-reversal of the bwd half (off the
            #    recurrent critical path).
            for t in range(T // 2):
                a = out_scr[blk(t), :]
                b_ = out_scr[blk(T - 1 - t), :]
                out_scr[blk(t), :] = jnp.where(hmask, a, b_)
                out_scr[blk(T - 1 - t), :] = jnp.where(hmask, b_, a)

        # ---- stacked bidirectional LSTM layers (ping-pong output scratch) --
        src = x_ref
        outs = (out_a, out_b)
        for li in range(L):
            wih_ref, whh_ref, b_ref = layer_refs[3 * li:3 * li + 3]
            run_layer(src, wih_ref, whh_ref, b_ref, outs[li % 2])
            src = outs[li % 2]

        # ---- attention pooling over time + decoder -------------------------
        o_all = src[...]                                        # (T*BP, 2H) f32
        u = jnp.tanh(jnp.dot(o_all.astype(jnp.bfloat16), w_omega_ref[...],
                             preferred_element_type=jnp.float32))
        av = jnp.sum(u * u_omega_ref[...], axis=-1, keepdims=True)  # (T*BP,1)

        m = av[blk(0)]
        for t in range(1, T):
            m = jnp.maximum(m, av[blk(t)])
        l = jnp.zeros((BP, 1), jnp.float32)
        acc = jnp.zeros((BP, H2), jnp.float32)
        for t in range(T):
            p = jnp.exp(av[blk(t)] - m)
            l = l + p
            acc = acc + p * o_all[blk(t)]
        feat = acc * pl.reciprocal(l, approx=True)              # (BP, 2H)
        logits = jnp.dot(feat.astype(jnp.bfloat16), w_dec_ref[...],
                         preferred_element_type=jnp.float32) + b_dec_ref[...]
        logits_ref[...] = logits[0:B, :]                        # drop pad rows

    return kernel


# ----------------------------- wrappers --------------------------------------

def _vmem_spec():
    return pl.BlockSpec(memory_space=pltpu.MemorySpace.VMEM)


def _interleave_dirs(wf, wb):
    """Columns [i,f,g,o] (each H) of two directions -> [i_f,i_b,f_f,f_b,...]."""
    lead, four_h = wf.shape
    H = four_h // 4
    return jnp.stack([wf.reshape(lead, 4, H), wb.reshape(lead, 4, H)],
                     axis=2).reshape(lead, 8 * H)


def pack_params(params):
    """One-time repack of per-direction LSTM weights into the fused layout.

    Matmul weights are stored as bf16 (MXU-native on v6e/v7x, halves weight
    loads everywhere); biases & the attention query vector stay f32.
    Note: the block-structured Whh is 50% zeros by construction.
    """
    packed = {"embedding": params["embedding"],
              "w_omega": params["w_omega"].astype(jnp.bfloat16),
              "u_omega_t": params["u_omega_t"],
              "w_dec": params["w_dec"].astype(jnp.bfloat16),
              "b_dec": params["b_dec"],
              "layers": []}
    for layer in params["lstm"]:
        wih_f, whh_f, b_f = layer["fwd"]
        wih_b, whh_b, b_b = layer["bwd"]
        zeros = jnp.zeros_like(whh_f)
        wih = _interleave_dirs(wih_f, wih_b).astype(jnp.bfloat16)   # (Din, 8H)
        whh = jnp.concatenate([_interleave_dirs(whh_f, zeros),      # h_fwd rows
                               _interleave_dirs(zeros, whh_b)],     # h_bwd rows
                              axis=0).astype(jnp.bfloat16)          # (2H, 8H)
        b = _interleave_dirs(b_f, b_b)                               # (1, 8H) f32
        packed["layers"].append((wih, whh, b))
    return packed


@jax.jit
def bilstm_attention_forward(ids, packed):
    B, T = ids.shape
    emb = packed["embedding"]
    E = emb.shape[1]
    layers = packed["layers"]
    L = len(layers)
    H = layers[0][1].shape[0] // 2                      # whh is (2H, 8H)
    H2, G = 2 * H, 8 * H
    C = packed["w_dec"].shape[1]
    BP = 8                                              # batch padded to 1 tile

    # Embedding gather -> time-major, batch padded to a full sublane tile.
    x = jnp.take(emb, ids.T, axis=0)                    # (T, B, E)
    x_slab = jnp.zeros((T, BP, E), jnp.float32).at[:, :B, :].set(x)
    x_slab = x_slab.reshape(T * BP, E).astype(jnp.bfloat16)

    flat_w = [w for layer in layers for w in layer]
    n_in = 1 + len(flat_w) + 4

    # Rough cost hint for XLA's scheduler around the custom call.
    M = T * BP
    flops = 0
    d_in = E
    for _ in range(L):
        flops += 2 * M * d_in * G + 2 * M * H2 * G
        d_in = H2
    flops += 2 * M * H2 * H2 + 2 * BP * H2 * C
    transcendentals = L * M * 6 * H2 + M * H2 + M
    bytes_accessed = int(
        x_slab.size * 2
        + sum(int(w.size) * w.dtype.itemsize for w in flat_w)
        + int(packed["w_omega"].size) * 2 + int(packed["u_omega_t"].size) * 4
        + int(packed["w_dec"].size) * 2 + int(packed["b_dec"].size) * 4
        + B * C * 4)

    return pl.pallas_call(
        _make_fused_kernel(T, BP, B, H, L),
        out_shape=jax.ShapeDtypeStruct((B, C), jnp.float32),
        in_specs=[_vmem_spec()] * n_in,
        out_specs=_vmem_spec(),
        scratch_shapes=[pltpu.VMEM((T * BP, G), jnp.float32),   # gate pre-acts
                        pltpu.VMEM((T * BP, H2), jnp.float32),  # layer out A
                        pltpu.VMEM((T * BP, H2), jnp.float32)], # layer out B
        compiler_params=pltpu.CompilerParams(
            vmem_limit_bytes=32 * 1024 * 1024),
        cost_estimate=pl.CostEstimate(flops=flops,
                                      transcendentals=transcendentals,
                                      bytes_accessed=bytes_accessed),
    )(x_slab, *flat_w, packed["w_omega"], packed["u_omega_t"],
      packed["w_dec"], packed["b_dec"])


# ----------------------- pure-JAX reference (for check) ----------------------

def _lstm_ref(x_tbd, wih, whh, b):
    H = whh.shape[0]
    B = x_tbd.shape[1]

    def step(carry, x_t):
        h, c = carry
        gates = x_t @ wih + h @ whh + b[0]
        i = jax.nn.sigmoid(gates[:, :H])
        f = jax.nn.sigmoid(gates[:, H:2 * H])
        g = jnp.tanh(gates[:, 2 * H:3 * H])
        o = jax.nn.sigmoid(gates[:, 3 * H:])
        c = f * c + i * g
        h = o * jnp.tanh(c)
        return (h, c), h

    init = (jnp.zeros((B, H), jnp.float32), jnp.zeros((B, H), jnp.float32))
    _, hs = jax.lax.scan(step, init, x_tbd)
    return hs


def forward_ref(ids, params):
    x = jnp.take(params["embedding"], ids, axis=0)
    for layer in params["lstm"]:
        x_tbd = jnp.transpose(x, (1, 0, 2))
        out_f = _lstm_ref(x_tbd, *layer["fwd"])
        out_b = _lstm_ref(x_tbd[::-1], *layer["bwd"])[::-1]
        x = jnp.transpose(jnp.concatenate([out_f, out_b], axis=-1), (1, 0, 2))
    u = jnp.tanh(x @ params["w_omega"])
    att = jnp.sum(u * params["u_omega_t"][None], axis=-1, keepdims=True)
    score = jax.nn.softmax(att, axis=1)
    feat = jnp.sum(x * score, axis=1)
    return feat @ params["w_dec"] + params["b_dec"]


# ----------------------------- params ----------------------------------------

def init_params(key, vocab, E, H, L, C):
    keys = iter(jax.random.split(key, 64))

    def uni(k, shape, scale):
        return jax.random.uniform(k, shape, jnp.float32, -scale, scale)

    def xavier(k, shape):
        a = float(np.sqrt(6.0 / (shape[0] + shape[1])))
        return jax.random.uniform(k, shape, jnp.float32, -a, a)

    params = {"embedding": jax.random.normal(next(keys), (vocab, E),
                                             jnp.float32)}
    s = 1.0 / float(np.sqrt(H))
    lstm = []
    d_in = E
    for _ in range(L):
        layer = {}
        for dname in ("fwd", "bwd"):
            wih = uni(next(keys), (d_in, 4 * H), s)   # transposed vs torch
            whh = uni(next(keys), (H, 4 * H), s)
            b = uni(next(keys), (1, 4 * H), s)        # b_ih + b_hh combined
            layer[dname] = (wih, whh, b)
        lstm.append(layer)
        d_in = 2 * H
    params["lstm"] = lstm
    params["w_omega"] = xavier(next(keys), (2 * H, 2 * H))
    params["u_omega_t"] = xavier(next(keys), (2 * H, 1)).T     # (1, 2H)
    params["w_dec"] = xavier(next(keys), (C, 2 * H)).T         # (2H, C)
    params["b_dec"] = uni(next(keys), (1, C), 1.0 / float(np.sqrt(2 * H)))
    return params


# ----------------------------- main -------------------------------------------

if __name__ == "__main__":
    B, T = 2, 8
    # H=64 -> 2H=128: all gate / state slices are full 128-lane vregs.
    E, H, L, C = 32, 64, 2, 4          # embedding_dim, num_hiddens, layers, classes
    VOCAB = 5600

    root = jax.random.PRNGKey(0)
    k_params, k_ids = jax.random.split(root)
    params = init_params(k_params, VOCAB, E, H, L, C)
    packed = pack_params(params)
    ids = jax.random.randint(k_ids, (B, T), 0, VOCAB, dtype=jnp.int32)

    logits = bilstm_attention_forward(ids, packed)
    jax.block_until_ready(logits)
    assert logits.shape == (B, C) and logits.dtype == jnp.float32

    # Reference is full f32; kernel uses bf16 MXU operands -> 5e-2 tolerance.
    ref = forward_ref(ids, params)
    np.testing.assert_allclose(np.asarray(logits), np.asarray(ref),
                               rtol=5e-2, atol=5e-2)
    print("KERNEL_OK")
</pallas_src>

<mosaic_0001>
module attributes {stable_mosaic.version = 11 : i64} {
  func.func @kernel(%arg0: memref<64x32xbf16, #tpu.memory_space<vmem>>, %arg1: memref<32x512xbf16, #tpu.memory_space<vmem>>, %arg2: memref<128x512xbf16, #tpu.memory_space<vmem>>, %arg3: memref<1x512xf32, #tpu.memory_space<vmem>>, %arg4: memref<128x512xbf16, #tpu.memory_space<vmem>>, %arg5: memref<128x512xbf16, #tpu.memory_space<vmem>>, %arg6: memref<1x512xf32, #tpu.memory_space<vmem>>, %arg7: memref<128x128xbf16, #tpu.memory_space<vmem>>, %arg8: memref<1x128xf32, #tpu.memory_space<vmem>>, %arg9: memref<128x4xbf16, #tpu.memory_space<vmem>>, %arg10: memref<1x4xf32, #tpu.memory_space<vmem>>, %arg11: memref<2x4xf32, #tpu.memory_space<vmem>>, %arg12: memref<64x512xf32, #tpu.memory_space<vmem>>, %arg13: memref<64x128xf32, #tpu.memory_space<vmem>>, %arg14: memref<64x128xf32, #tpu.memory_space<vmem>>) attributes {dimension_semantics = [], scalar_prefetch = 0 : i64, scratch_operands = 3 : i64, tpu.core_type = #tpu.core_type<tc>} {
    %0 = tpu.iota {dimensions = array<i32: 1>} : vector<8x512xi32>
    %c128_i32 = arith.constant 128 : i32
    %c0_i32 = arith.constant 0 : i32
    %1 = arith.cmpi eq, %c128_i32, %c0_i32 : i32
    %c1_i32 = arith.constant 1 : i32
    %2 = arith.select %1, %c1_i32, %c128_i32 : i32
    %3 = vector.broadcast %2 : i32 to vector<8x512xi32>
    %4 = arith.remsi %0, %3 : vector<8x512xi32>
    %c0_i32_0 = arith.constant 0 : i32
    %5 = vector.broadcast %c0_i32_0 : i32 to vector<8x512xi32>
    %6 = arith.cmpi ne, %4, %5 : vector<8x512xi32>
    %c0_i32_1 = arith.constant 0 : i32
    %7 = vector.broadcast %c0_i32_1 : i32 to vector<8x512xi32>
    %8 = arith.cmpi slt, %4, %7 : vector<8x512xi32>
    %c0_i32_2 = arith.constant 0 : i32
    %9 = arith.cmpi slt, %2, %c0_i32_2 : i32
    %10 = vector.broadcast %9 : i1 to vector<8x512xi1>
    %11 = vector.broadcast %10 : vector<8x512xi1> to vector<8x512xi1>
    %12 = arith.xori %8, %11 : vector<8x512xi1>
    %13 = arith.andi %12, %6 : vector<8x512xi1>
    %14 = vector.broadcast %2 : i32 to vector<8x512xi32>
    %15 = arith.addi %4, %14 : vector<8x512xi32>
    %16 = arith.select %13, %15, %4 : vector<8x512xi1>, vector<8x512xi32>
    %c64_i32 = arith.constant 64 : i32
    %17 = vector.broadcast %c64_i32 : i32 to vector<8x512xi32>
    %18 = arith.cmpi slt, %16, %17 : vector<8x512xi32>
    %19 = tpu.iota {dimensions = array<i32: 1>} : vector<8x128xi32>
    %c64_i32_3 = arith.constant 64 : i32
    %20 = vector.broadcast %c64_i32_3 : i32 to vector<8x128xi32>
    %21 = arith.cmpi slt, %19, %20 : vector<8x128xi32>
    %c0 = arith.constant 0 : index
    %c0_4 = arith.constant 0 : index
    %22 = vector.load %arg0[%c0, %c0_4] : memref<64x32xbf16, #tpu.memory_space<vmem>>, vector<64x32xbf16>
    %c0_5 = arith.constant 0 : index
    %c0_6 = arith.constant 0 : index
    %23 = vector.load %arg1[%c0_5, %c0_6] : memref<32x512xbf16, #tpu.memory_space<vmem>>, vector<32x512xbf16>
    %cst = arith.constant dense<0.000000e+00> : vector<64x512xf32>
    %24 = tpu.matmul %22, %23, %cst {dimension_numbers = #tpu.dot_dimension_numbers<[1], [0], [0], [1], [0, 0, 1, 1], [], []>} : vector<64x32xbf16>, vector<32x512xbf16>, vector<64x512xf32> -> vector<64x512xf32>
    %c0_7 = arith.constant 0 : index
    %c0_8 = arith.constant 0 : index
    %25 = vector.load %arg3[%c0_7, %c0_8] : memref<1x512xf32, #tpu.memory_space<vmem>>, vector<1x512xf32>
    %26 = vector.broadcast %25 : vector<1x512xf32> to vector<64x512xf32>
    %27 = arith.addf %24, %26 : vector<64x512xf32>
    %28 = vector.extract_strided_slice %27 {offsets = [0, 0], sizes = [8, 512], strides = [1, 1]} : vector<64x512xf32> to vector<8x512xf32>
    %29 = vector.extract_strided_slice %27 {offsets = [56, 0], sizes = [8, 512], strides = [1, 1]} : vector<64x512xf32> to vector<8x512xf32>
    %30 = arith.select %18, %28, %29 : vector<8x512xi1>, vector<8x512xf32>
    %c0_9 = arith.constant 0 : index
    %c0_10 = arith.constant 0 : index
    %31 = vector.load %arg12[%c0_9, %c0_10] : memref<64x512xf32, #tpu.memory_space<vmem>>, vector<8x512xf32>
    tpu.vector_store %arg12[%c0_9, %c0_10], %30 {strides = array<i32>} : memref<64x512xf32, #tpu.memory_space<vmem>>, vector<8x512xf32>,
    %32 = vector.extract_strided_slice %27 {offsets = [8, 0], sizes = [8, 512], strides = [1, 1]} : vector<64x512xf32> to vector<8x512xf32>
    %33 = vector.extract_strided_slice %27 {offsets = [48, 0], sizes = [8, 512], strides = [1, 1]} : vector<64x512xf32> to vector<8x512xf32>
    %34 = arith.select %18, %32, %33 : vector<8x512xi1>, vector<8x512xf32>
    %c8 = arith.constant 8 : index
    %c0_11 = arith.constant 0 : index
    %35 = vector.load %arg12[%c8, %c0_11] : memref<64x512xf32, #tpu.memory_space<vmem>>, vector<8x512xf32>
    tpu.vector_store %arg12[%c8, %c0_11], %34 {strides = array<i32>} : memref<64x512xf32, #tpu.memory_space<vmem>>, vector<8x512xf32>,
    %36 = vector.extract_strided_slice %27 {offsets = [16, 0], sizes = [8, 512], strides = [1, 1]} : vector<64x512xf32> to vector<8x512xf32>
    %37 = vector.extract_strided_slice %27 {offsets = [40, 0], sizes = [8, 512], strides = [1, 1]} : vector<64x512xf32> to vector<8x512xf32>
    %38 = arith.select %18, %36, %37 : vector<8x512xi1>, vector<8x512xf32>
    %c16 = arith.constant 16 : index
    %c0_12 = arith.constant 0 : index
    %39 = vector.load %arg12[%c16, %c0_12] : memref<64x512xf32, #tpu.memory_space<vmem>>, vector<8x512xf32>
    tpu.vector_store %arg12[%c16, %c0_12], %38 {strides = array<i32>} : memref<64x512xf32, #tpu.memory_space<vmem>>, vector<8x512xf32>,
    %40 = vector.extract_strided_slice %27 {offsets = [24, 0], sizes = [8, 512], strides = [1, 1]} : vector<64x512xf32> to vector<8x512xf32>
    %41 = vector.extract_strided_slice %27 {offsets = [32, 0], sizes = [8, 512], strides = [1, 1]} : vector<64x512xf32> to vector<8x512xf32>
    %42 = arith.select %18, %40, %41 : vector<8x512xi1>, vector<8x512xf32>
    %c24 = arith.constant 24 : index
    %c0_13 = arith.constant 0 : index
    %43 = vector.load %arg12[%c24, %c0_13] : memref<64x512xf32, #tpu.memory_space<vmem>>, vector<8x512xf32>
    tpu.vector_store %arg12[%c24, %c0_13], %42 {strides = array<i32>} : memref<64x512xf32, #tpu.memory_space<vmem>>, vector<8x512xf32>,
    %44 = vector.extract_strided_slice %27 {offsets = [32, 0], sizes = [8, 512], strides = [1, 1]} : vector<64x512xf32> to vector<8x512xf32>
    %45 = vector.extract_strided_slice %27 {offsets = [24, 0], sizes = [8, 512], strides = [1, 1]} : vector<64x512xf32> to vector<8x512xf32>
    %46 = arith.select %18, %44, %45 : vector<8x512xi1>, vector<8x512xf32>
    %c32 = arith.constant 32 : index
    %c0_14 = arith.constant 0 : index
    %47 = vector.load %arg12[%c32, %c0_14] : memref<64x512xf32, #tpu.memory_space<vmem>>, vector<8x512xf32>
    tpu.vector_store %arg12[%c32, %c0_14], %46 {strides = array<i32>} : memref<64x512xf32, #tpu.memory_space<vmem>>, vector<8x512xf32>,
    %48 = vector.extract_strided_slice %27 {offsets = [40, 0], sizes = [8, 512], strides = [1, 1]} : vector<64x512xf32> to vector<8x512xf32>
    %49 = vector.extract_strided_slice %27 {offsets = [16, 0], sizes = [8, 512], strides = [1, 1]} : vector<64x512xf32> to vector<8x512xf32>
    %50 = arith.select %18, %48, %49 : vector<8x512xi1>, vector<8x512xf32>
    %c40 = arith.constant 40 : index
    %c0_15 = arith.constant 0 : index
    %51 = vector.load %arg12[%c40, %c0_15] : memref<64x512xf32, #tpu.memory_space<vmem>>, vector<8x512xf32>
    tpu.vector_store %arg12[%c40, %c0_15], %50 {strides = array<i32>} : memref<64x512xf32, #tpu.memory_space<vmem>>, vector<8x512xf32>,
    %52 = vector.extract_strided_slice %27 {offsets = [48, 0], sizes = [8, 512], strides = [1, 1]} : vector<64x512xf32> to vector<8x512xf32>
    %53 = vector.extract_strided_slice %27 {offsets = [8, 0], sizes = [8, 512], strides = [1, 1]} : vector<64x512xf32> to vector<8x512xf32>
    %54 = arith.select %18, %52, %53 : vector<8x512xi1>, vector<8x512xf32>
    %c48 = arith.constant 48 : index
    %c0_16 = arith.constant 0 : index
    %55 = vector.load %arg12[%c48, %c0_16] : memref<64x512xf32, #tpu.memory_space<vmem>>, vector<8x512xf32>
    tpu.vector_store %arg12[%c48, %c0_16], %54 {strides = array<i32>} : memref<64x512xf32, #tpu.memory_space<vmem>>, vector<8x512xf32>,
    %56 = vector.extract_strided_slice %27 {offsets = [56, 0], sizes = [8, 512], strides = [1, 1]} : vector<64x512xf32> to vector<8x512xf32>
    %57 = vector.extract_strided_slice %27 {offsets = [0, 0], sizes = [8, 512], strides = [1, 1]} : vector<64x512xf32> to vector<8x512xf32>
    %58 = arith.select %18, %56, %57 : vector<8x512xi1>, vector<8x512xf32>
    %c56 = arith.constant 56 : index
    %c0_17 = arith.constant 0 : index
    %59 = vector.load %arg12[%c56, %c0_17] : memref<64x512xf32, #tpu.memory_space<vmem>>, vector<8x512xf32>
    tpu.vector_store %arg12[%c56, %c0_17], %58 {strides = array<i32>} : memref<64x512xf32, #tpu.memory_space<vmem>>, vector<8x512xf32>,
    %c0_18 = arith.constant 0 : index
    %c0_19 = arith.constant 0 : index
    %60 = vector.load %arg2[%c0_18, %c0_19] : memref<128x512xbf16, #tpu.memory_space<vmem>>, vector<128x512xbf16>
    %cst_20 = arith.constant 0.000000e+00 : f32
    %61 = vector.broadcast %cst_20 : f32 to vector<8x128xf32>
    %cst_21 = arith.constant 0.000000e+00 : f32
    %62 = vector.broadcast %cst_21 : f32 to vector<8x128xf32>
    %c0_22 = arith.constant 0 : index
    %c0_23 = arith.constant 0 : index
    %63 = vector.load %arg12[%c0_22, %c0_23] : memref<64x512xf32, #tpu.memory_space<vmem>>, vector<8x512xf32>
    %64 = arith.truncf %61 : vector<8x128xf32> to vector<8x128xbf16>
    %cst_24 = arith.constant dense<0.000000e+00> : vector<8x512xf32>
    %65 = tpu.matmul %64, %60, %cst_24 {dimension_numbers = #tpu.dot_dimension_numbers<[1], [0], [0], [1], [0, 0, 1, 1], [], []>} : vector<8x128xbf16>, vector<128x512xbf16>, vector<8x512xf32> -> vector<8x512xf32>
    %66 = arith.addf %63, %65 : vector<8x512xf32>
    %67 = vector.extract_strided_slice %66 {offsets = [0, 0], sizes = [8, 128], strides = [1, 1]} : vector<8x512xf32> to vector<8x128xf32>
    %68 = arith.negf %67 : vector<8x128xf32>
    %69 = math.exp %68 : vector<8x128xf32>
    %cst_25 = arith.constant 1.000000e+00 : f32
    %70 = vector.broadcast %cst_25 : f32 to vector<8x128xf32>
    %71 = arith.addf %70, %69 : vector<8x128xf32>
    %72 = arith.divf %70, %71 : vector<8x128xf32>
    %73 = vector.extract_strided_slice %66 {offsets = [0, 128], sizes = [8, 128], strides = [1, 1]} : vector<8x512xf32> to vector<8x128xf32>
    %74 = arith.negf %73 : vector<8x128xf32>
    %75 = math.exp %74 : vector<8x128xf32>
    %cst_26 = arith.constant 1.000000e+00 : f32
    %76 = vector.broadcast %cst_26 : f32 to vector<8x128xf32>
    %77 = arith.addf %76, %75 : vector<8x128xf32>
    %78 = arith.divf %76, %77 : vector<8x128xf32>
    %79 = vector.extract_strided_slice %66 {offsets = [0, 256], sizes = [8, 128], strides = [1, 1]} : vector<8x512xf32> to vector<8x128xf32>
    %80 = math.tanh %79 : vector<8x128xf32>
    %81 = vector.extract_strided_slice %66 {offsets = [0, 384], sizes = [8, 128], strides = [1, 1]} : vector<8x512xf32> to vector<8x128xf32>
    %82 = arith.negf %81 : vector<8x128xf32>
    %83 = math.exp %82 : vector<8x128xf32>
    %cst_27 = arith.constant 1.000000e+00 : f32
    %84 = vector.broadcast %cst_27 : f32 to vector<8x128xf32>
    %85 = arith.addf %84, %83 : vector<8x128xf32>
    %86 = arith.divf %84, %85 : vector<8x128xf32>
    %87 = arith.mulf %78, %62 : vector<8x128xf32>
    %88 = arith.mulf %72, %80 : vector<8x128xf32>
    %89 = arith.addf %87, %88 : vector<8x128xf32>
    %90 = math.tanh %89 : vector<8x128xf32>
    %91 = arith.mulf %86, %90 : vector<8x128xf32>
    %c0_28 = arith.constant 0 : index
    %c0_29 = arith.constant 0 : index
    %92 = vector.load %arg13[%c0_28, %c0_29] : memref<64x128xf32, #tpu.memory_space<vmem>>, vector<8x128xf32>
    tpu.vector_store %arg13[%c0_28, %c0_29], %91 {strides = array<i32>} : memref<64x128xf32, #tpu.memory_space<vmem>>, vector<8x128xf32>,
    %c8_30 = arith.constant 8 : index
    %c0_31 = arith.constant 0 : index
    %93 = vector.load %arg12[%c8_30, %c0_31] : memref<64x512xf32, #tpu.memory_space<vmem>>, vector<8x512xf32>
    %94 = arith.truncf %91 : vector<8x128xf32> to vector<8x128xbf16>
    %cst_32 = arith.constant dense<0.000000e+00> : vector<8x512xf32>
    %95 = tpu.matmul %94, %60, %cst_32 {dimension_numbers = #tpu.dot_dimension_numbers<[1], [0], [0], [1], [0, 0, 1, 1], [], []>} : vector<8x128xbf16>, vector<128x512xbf16>, vector<8x512xf32> -> vector<8x512xf32>
    %96 = arith.addf %93, %95 : vector<8x512xf32>
    %97 = vector.extract_strided_slice %96 {offsets = [0, 0], sizes = [8, 128], strides = [1, 1]} : vector<8x512xf32> to vector<8x128xf32>
    %98 = arith.negf %97 : vector<8x128xf32>
    %99 = math.exp %98 : vector<8x128xf32>
    %cst_33 = arith.constant 1.000000e+00 : f32
    %100 = vector.broadcast %cst_33 : f32 to vector<8x128xf32>
    %101 = arith.addf %100, %99 : vector<8x128xf32>
    %102 = arith.divf %100, %101 : vector<8x128xf32>
    %103 = vector.extract_strided_slice %96 {offsets = [0, 128], sizes = [8, 128], strides = [1, 1]} : vector<8x512xf32> to vector<8x128xf32>
    %104 = arith.negf %103 : vector<8x128xf32>
    %105 = math.exp %104 : vector<8x128xf32>
    %cst_34 = arith.constant 1.000000e+00 : f32
    %106 = vector.broadcast %cst_34 : f32 to vector<8x128xf32>
    %107 = arith.addf %106, %105 : vector<8x128xf32>
    %108 = arith.divf %106, %107 : vector<8x128xf32>
    %109 = vector.extract_strided_slice %96 {offsets = [0, 256], sizes = [8, 128], strides = [1, 1]} : vector<8x512xf32> to vector<8x128xf32>
    %110 = math.tanh %109 : vector<8x128xf32>
    %111 = vector.extract_strided_slice %96 {offsets = [0, 384], sizes = [8, 128], strides = [1, 1]} : vector<8x512xf32> to vector<8x128xf32>
    %112 = arith.negf %111 : vector<8x128xf32>
    %113 = math.exp %112 : vector<8x128xf32>
    %cst_35 = arith.constant 1.000000e+00 : f32
    %114 = vector.broadcast %cst_35 : f32 to vector<8x128xf32>
    %115 = arith.addf %114, %113 : vector<8x128xf32>
    %116 = arith.divf %114, %115 : vector<8x128xf32>
    %117 = arith.mulf %108, %89 : vector<8x128xf32>
    %118 = arith.mulf %102, %110 : vector<8x128xf32>
    %119 = arith.addf %117, %118 : vector<8x128xf32>
    %120 = math.tanh %119 : vector<8x128xf32>
    %121 = arith.mulf %116, %120 : vector<8x128xf32>
    %c8_36 = arith.constant 8 : index
    %c0_37 = arith.constant 0 : index
    %122 = vector.load %arg13[%c8_36, %c0_37] : memref<64x128xf32, #tpu.memory_space<vmem>>, vector<8x128xf32>
    tpu.vector_store %arg13[%c8_36, %c0_37], %121 {strides = array<i32>} : memref<64x128xf32, #tpu.memory_space<vmem>>, vector<8x128xf32>,
    %c16_38 = arith.constant 16 : index
    %c0_39 = arith.constant 0 : index
    %123 = vector.load %arg12[%c16_38, %c0_39] : memref<64x512xf32, #tpu.memory_space<vmem>>, vector<8x512xf32>
    %124 = arith.truncf %121 : vector<8x128xf32> to vector<8x128xbf16>
    %cst_40 = arith.constant dense<0.000000e+00> : vector<8x512xf32>
    %125 = tpu.matmul %124, %60, %cst_40 {dimension_numbers = #tpu.dot_dimension_numbers<[1], [0], [0], [1], [0, 0, 1, 1], [], []>} : vector<8x128xbf16>, vector<128x512xbf16>, vector<8x512xf32> -> vector<8x512xf32>
    %126 = arith.addf %123, %125 : vector<8x512xf32>
    %127 = vector.extract_strided_slice %126 {offsets = [0, 0], sizes = [8, 128], strides = [1, 1]} : vector<8x512xf32> to vector<8x128xf32>
    %128 = arith.negf %127 : vector<8x128xf32>
    %129 = math.exp %128 : vector<8x128xf32>
    %cst_41 = arith.constant 1.000000e+00 : f32
    %130 = vector.broadcast %cst_41 : f32 to vector<8x128xf32>
    %131 = arith.addf %130, %129 : vector<8x128xf32>
    %132 = arith.divf %130, %131 : vector<8x128xf32>
    %133 = vector.extract_strided_slice %126 {offsets = [0, 128], sizes = [8, 128], strides = [1, 1]} : vector<8x512xf32> to vector<8x128xf32>
    %134 = arith.negf %133 : vector<8x128xf32>
    %135 = math.exp %134 : vector<8x128xf32>
    %cst_42 = arith.constant 1.000000e+00 : f32
    %136 = vector.broadcast %cst_42 : f32 to vector<8x128xf32>
    %137 = arith.addf %136, %135 : vector<8x128xf32>
    %138 = arith.divf %136, %137 : vector<8x128xf32>
    %139 = vector.extract_strided_slice %126 {offsets = [0, 256], sizes = [8, 128], strides = [1, 1]} : vector<8x512xf32> to vector<8x128xf32>
    %140 = math.tanh %139 : vector<8x128xf32>
    %141 = vector.extract_strided_slice %126 {offsets = [0, 384], sizes = [8, 128], strides = [1, 1]} : vector<8x512xf32> to vector<8x128xf32>
    %142 = arith.negf %141 : vector<8x128xf32>
    %143 = math.exp %142 : vector<8x128xf32>
    %cst_43 = arith.constant 1.000000e+00 : f32
    %144 = vector.broadcast %cst_43 : f32 to vector<8x128xf32>
    %145 = arith.addf %144, %143 : vector<8x128xf32>
    %146 = arith.divf %144, %145 : vector<8x128xf32>
    %147 = arith.mulf %138, %119 : vector<8x128xf32>
    %148 = arith.mulf %132, %140 : vector<8x128xf32>
    %149 = arith.addf %147, %148 : vector<8x128xf32>
    %150 = math.tanh %149 : vector<8x128xf32>
    %151 = arith.mulf %146, %150 : vector<8x128xf32>
    %c16_44 = arith.constant 16 : index
    %c0_45 = arith.constant 0 : index
    %152 = vector.load %arg13[%c16_44, %c0_45] : memref<64x128xf32, #tpu.memory_space<vmem>>, vector<8x128xf32>
    tpu.vector_store %arg13[%c16_44, %c0_45], %151 {strides = array<i32>} : memref<64x128xf32, #tpu.memory_space<vmem>>, vector<8x128xf32>,
    %c24_46 = arith.constant 24 : index
    %c0_47 = arith.constant 0 : index
    %153 = vector.load %arg12[%c24_46, %c0_47] : memref<64x512xf32, #tpu.memory_space<vmem>>, vector<8x512xf32>
    %154 = arith.truncf %151 : vector<8x128xf32> to vector<8x128xbf16>
    %cst_48 = arith.constant dense<0.000000e+00> : vector<8x512xf32>
    %155 = tpu.matmul %154, %60, %cst_48 {dimension_numbers = #tpu.dot_dimension_numbers<[1], [0], [0], [1], [0, 0, 1, 1], [], []>} : vector<8x128xbf16>, vector<128x512xbf16>, vector<8x512xf32> -> vector<8x512xf32>
    %156 = arith.addf %153, %155 : vector<8x512xf32>
    %157 = vector.extract_strided_slice %156 {offsets = [0, 0], sizes = [8, 128], strides = [1, 1]} : vector<8x512xf32> to vector<8x128xf32>
    %158 = arith.negf %157 : vector<8x128xf32>
    %159 = math.exp %158 : vector<8x128xf32>
    %cst_49 = arith.constant 1.000000e+00 : f32
    %160 = vector.broadcast %cst_49 : f32 to vector<8x128xf32>
    %161 = arith.addf %160, %159 : vector<8x128xf32>
    %162 = arith.divf %160, %161 : vector<8x128xf32>
    %163 = vector.extract_strided_slice %156 {offsets = [0, 128], sizes = [8, 128], strides = [1, 1]} : vector<8x512xf32> to vector<8x128xf32>
    %164 = arith.negf %163 : vector<8x128xf32>
    %165 = math.exp %164 : vector<8x128xf32>
    %cst_50 = arith.constant 1.000000e+00 : f32
    %166 = vector.broadcast %cst_50 : f32 to vector<8x128xf32>
    %167 = arith.addf %166, %165 : vector<8x128xf32>
    %168 = arith.divf %166, %167 : vector<8x128xf32>
    %169 = vector.extract_strided_slice %156 {offsets = [0, 256], sizes = [8, 128], strides = [1, 1]} : vector<8x512xf32> to vector<8x128xf32>
    %170 = math.tanh %169 : vector<8x128xf32>
    %171 = vector.extract_strided_slice %156 {offsets = [0, 384], sizes = [8, 128], strides = [1, 1]} : vector<8x512xf32> to vector<8x128xf32>
    %172 = arith.negf %171 : vector<8x128xf32>
    %173 = math.exp %172 : vector<8x128xf32>
    %cst_51 = arith.constant 1.000000e+00 : f32
    %174 = vector.broadcast %cst_51 : f32 to vector<8x128xf32>
    %175 = arith.addf %174, %173 : vector<8x128xf32>
    %176 = arith.divf %174, %175 : vector<8x128xf32>
    %177 = arith.mulf %168, %149 : vector<8x128xf32>
    %178 = arith.mulf %162, %170 : vector<8x128xf32>
    %179 = arith.addf %177, %178 : vector<8x128xf32>
    %180 = math.tanh %179 : vector<8x128xf32>
    %181 = arith.mulf %176, %180 : vector<8x128xf32>
    %c24_52 = arith.constant 24 : index
    %c0_53 = arith.constant 0 : index
    %182 = vector.load %arg13[%c24_52, %c0_53] : memref<64x128xf32, #tpu.memory_space<vmem>>, vector<8x128xf32>
    tpu.vector_store %arg13[%c24_52, %c0_53], %181 {strides = array<i32>} : memref<64x128xf32, #tpu.memory_space<vmem>>, vector<8x128xf32>,
    %c32_54 = arith.constant 32 : index
    %c0_55 = arith.constant 0 : index
    %183 = vector.load %arg12[%c32_54, %c0_55] : memref<64x512xf32, #tpu.memory_space<vmem>>, vector<8x512xf32>
    %184 = arith.truncf %181 : vector<8x128xf32> to vector<8x128xbf16>
    %cst_56 = arith.constant dense<0.000000e+00> : vector<8x512xf32>
    %185 = tpu.matmul %184, %60, %cst_56 {dimension_numbers = #tpu.dot_dimension_numbers<[1], [0], [0], [1], [0, 0, 1, 1], [], []>} : vector<8x128xbf16>, vector<128x512xbf16>, vector<8x512xf32> -> vector<8x512xf32>
    %186 = arith.addf %183, %185 : vector<8x512xf32>
    %187 = vector.extract_strided_slice %186 {offsets = [0, 0], sizes = [8, 128], strides = [1, 1]} : vector<8x512xf32> to vector<8x128xf32>
    %188 = arith.negf %187 : vector<8x128xf32>
    %189 = math.exp %188 : vector<8x128xf32>
    %cst_57 = arith.constant 1.000000e+00 : f32
    %190 = vector.broadcast %cst_57 : f32 to vector<8x128xf32>
    %191 = arith.addf %190, %189 : vector<8x128xf32>
    %192 = arith.divf %190, %191 : vector<8x128xf32>
    %193 = vector.extract_strided_slice %186 {offsets = [0, 128], sizes = [8, 128], strides = [1, 1]} : vector<8x512xf32> to vector<8x128xf32>
    %194 = arith.negf %193 : vector<8x128xf32>
    %195 = math.exp %194 : vector<8x128xf32>
    %cst_58 = arith.constant 1.000000e+00 : f32
    %196 = vector.broadcast %cst_58 : f32 to vector<8x128xf32>
    %197 = arith.addf %196, %195 : vector<8x128xf32>
    %198 = arith.divf %196, %197 : vector<8x128xf32>
    %199 = vector.extract_strided_slice %186 {offsets = [0, 256], sizes = [8, 128], strides = [1, 1]} : vector<8x512xf32> to vector<8x128xf32>
    %200 = math.tanh %199 : vector<8x128xf32>
    %201 = vector.extract_strided_slice %186 {offsets = [0, 384], sizes = [8, 128], strides = [1, 1]} : vector<8x512xf32> to vector<8x128xf32>
    %202 = arith.negf %201 : vector<8x128xf32>
    %203 = math.exp %202 : vector<8x128xf32>
    %cst_59 = arith.constant 1.000000e+00 : f32
    %204 = vector.broadcast %cst_59 : f32 to vector<8x128xf32>
    %205 = arith.addf %204, %203 : vector<8x128xf32>
    %206 = arith.divf %204, %205 : vector<8x128xf32>
    %207 = arith.mulf %198, %179 : vector<8x128xf32>
    %208 = arith.mulf %192, %200 : vector<8x128xf32>
    %209 = arith.addf %207, %208 : vector<8x128xf32>
    %210 = math.tanh %209 : vector<8x128xf32>
    %211 = arith.mulf %206, %210 : vector<8x128xf32>
    %c32_60 = arith.constant 32 : index
    %c0_61 = arith.constant 0 : index
    %212 = vector.load %arg13[%c32_60, %c0_61] : memref<64x128xf32, #tpu.memory_space<vmem>>, vector<8x128xf32>
    tpu.vector_store %arg13[%c32_60, %c0_61], %211 {strides = array<i32>} : memref<64x128xf32, #tpu.memory_space<vmem>>, vector<8x128xf32>,
    %c40_62 = arith.constant 40 : index
    %c0_63 = arith.constant 0 : index
    %213 = vector.load %arg12[%c40_62, %c0_63] : memref<64x512xf32, #tpu.memory_space<vmem>>, vector<8x512xf32>
    %214 = arith.truncf %211 : vector<8x128xf32> to vector<8x128xbf16>
    %cst_64 = arith.constant dense<0.000000e+00> : vector<8x512xf32>
    %215 = tpu.matmul %214, %60, %cst_64 {dimension_numbers = #tpu.dot_dimension_numbers<[1], [0], [0], [1], [0, 0, 1, 1], [], []>} : vector<8x128xbf16>, vector<128x512xbf16>, vector<8x512xf32> -> vector<8x512xf32>
    %216 = arith.addf %213, %215 : vector<8x512xf32>
    %217 = vector.extract_strided_slice %216 {offsets = [0, 0], sizes = [8, 128], strides = [1, 1]} : vector<8x512xf32> to vector<8x128xf32>
    %218 = arith.negf %217 : vector<8x128xf32>
    %219 = math.exp %218 : vector<8x128xf32>
    %cst_65 = arith.constant 1.000000e+00 : f32
    %220 = vector.broadcast %cst_65 : f32 to vector<8x128xf32>
    %221 = arith.addf %220, %219 : vector<8x128xf32>
    %222 = arith.divf %220, %221 : vector<8x128xf32>
    %223 = vector.extract_strided_slice %216 {offsets = [0, 128], sizes = [8, 128], strides = [1, 1]} : vector<8x512xf32> to vector<8x128xf32>
    %224 = arith.negf %223 : vector<8x128xf32>
    %225 = math.exp %224 : vector<8x128xf32>
    %cst_66 = arith.constant 1.000000e+00 : f32
    %226 = vector.broadcast %cst_66 : f32 to vector<8x128xf32>
    %227 = arith.addf %226, %225 : vector<8x128xf32>
    %228 = arith.divf %226, %227 : vector<8x128xf32>
    %229 = vector.extract_strided_slice %216 {offsets = [0, 256], sizes = [8, 128], strides = [1, 1]} : vector<8x512xf32> to vector<8x128xf32>
    %230 = math.tanh %229 : vector<8x128xf32>
    %231 = vector.extract_strided_slice %216 {offsets = [0, 384], sizes = [8, 128], strides = [1, 1]} : vector<8x512xf32> to vector<8x128xf32>
    %232 = arith.negf %231 : vector<8x128xf32>
    %233 = math.exp %232 : vector<8x128xf32>
    %cst_67 = arith.constant 1.000000e+00 : f32
    %234 = vector.broadcast %cst_67 : f32 to vector<8x128xf32>
    %235 = arith.addf %234, %233 : vector<8x128xf32>
    %236 = arith.divf %234, %235 : vector<8x128xf32>
    %237 = arith.mulf %228, %209 : vector<8x128xf32>
    %238 = arith.mulf %222, %230 : vector<8x128xf32>
    %239 = arith.addf %237, %238 : vector<8x128xf32>
    %240 = math.tanh %239 : vector<8x128xf32>
    %241 = arith.mulf %236, %240 : vector<8x128xf32>
    %c40_68 = arith.constant 40 : index
    %c0_69 = arith.constant 0 : index
    %242 = vector.load %arg13[%c40_68, %c0_69] : memref<64x128xf32, #tpu.memory_space<vmem>>, vector<8x128xf32>
    tpu.vector_store %arg13[%c40_68, %c0_69], %241 {strides = array<i32>} : memref<64x128xf32, #tpu.memory_space<vmem>>, vector<8x128xf32>,
    %c48_70 = arith.constant 48 : index
    %c0_71 = arith.constant 0 : index
    %243 = vector.load %arg12[%c48_70, %c0_71] : memref<64x512xf32, #tpu.memory_space<vmem>>, vector<8x512xf32>
    %244 = arith.truncf %241 : vector<8x128xf32> to vector<8x128xbf16>
    %cst_72 = arith.constant dense<0.000000e+00> : vector<8x512xf32>
    %245 = tpu.matmul %244, %60, %cst_72 {dimension_numbers = #tpu.dot_dimension_numbers<[1], [0], [0], [1], [0, 0, 1, 1], [], []>} : vector<8x128xbf16>, vector<128x512xbf16>, vector<8x512xf32> -> vector<8x512xf32>
    %246 = arith.addf %243, %245 : vector<8x512xf32>
    %247 = vector.extract_strided_slice %246 {offsets = [0, 0], sizes = [8, 128], strides = [1, 1]} : vector<8x512xf32> to vector<8x128xf32>
    %248 = arith.negf %247 : vector<8x128xf32>
    %249 = math.exp %248 : vector<8x128xf32>
    %cst_73 = arith.constant 1.000000e+00 : f32
    %250 = vector.broadcast %cst_73 : f32 to vector<8x128xf32>
    %251 = arith.addf %250, %249 : vector<8x128xf32>
    %252 = arith.divf %250, %251 : vector<8x128xf32>
    %253 = vector.extract_strided_slice %246 {offsets = [0, 128], sizes = [8, 128], strides = [1, 1]} : vector<8x512xf32> to vector<8x128xf32>
    %254 = arith.negf %253 : vector<8x128xf32>
    %255 = math.exp %254 : vector<8x128xf32>
    %cst_74 = arith.constant 1.000000e+00 : f32
    %256 = vector.broadcast %cst_74 : f32 to vector<8x128xf32>
    %257 = arith.addf %256, %255 : vector<8x128xf32>
    %258 = arith.divf %256, %257 : vector<8x128xf32>
    %259 = vector.extract_strided_slice %246 {offsets = [0, 256], sizes = [8, 128], strides = [1, 1]} : vector<8x512xf32> to vector<8x128xf32>
    %260 = math.tanh %259 : vector<8x128xf32>
    %261 = vector.extract_strided_slice %246 {offsets = [0, 384], sizes = [8, 128], strides = [1, 1]} : vector<8x512xf32> to vector<8x128xf32>
    %262 = arith.negf %261 : vector<8x128xf32>
    %263 = math.exp %262 : vector<8x128xf32>
    %cst_75 = arith.constant 1.000000e+00 : f32
    %264 = vector.broadcast %cst_75 : f32 to vector<8x128xf32>
    %265 = arith.addf %264, %263 : vector<8x128xf32>
    %266 = arith.divf %264, %265 : vector<8x128xf32>
    %267 = arith.mulf %258, %239 : vector<8x128xf32>
    %268 = arith.mulf %252, %260 : vector<8x128xf32>
    %269 = arith.addf %267, %268 : vector<8x128xf32>
    %270 = math.tanh %269 : vector<8x128xf32>
    %271 = arith.mulf %266, %270 : vector<8x128xf32>
    %c48_76 = arith.constant 48 : index
    %c0_77 = arith.constant 0 : index
    %272 = vector.load %arg13[%c48_76, %c0_77] : memref<64x128xf32, #tpu.memory_space<vmem>>, vector<8x128xf32>
    tpu.vector_store %arg13[%c48_76, %c0_77], %271 {strides = array<i32>} : memref<64x128xf32, #tpu.memory_space<vmem>>, vector<8x128xf32>,
    %c56_78 = arith.constant 56 : index
    %c0_79 = arith.constant 0 : index
    %273 = vector.load %arg12[%c56_78, %c0_79] : memref<64x512xf32, #tpu.memory_space<vmem>>, vector<8x512xf32>
    %274 = arith.truncf %271 : vector<8x128xf32> to vector<8x128xbf16>
    %cst_80 = arith.constant dense<0.000000e+00> : vector<8x512xf32>
    %275 = tpu.matmul %274, %60, %cst_80 {dimension_numbers = #tpu.dot_dimension_numbers<[1], [0], [0], [1], [0, 0, 1, 1], [], []>} : vector<8x128xbf16>, vector<128x512xbf16>, vector<8x512xf32> -> vector<8x512xf32>
    %276 = arith.addf %273, %275 : vector<8x512xf32>
    %277 = vector.extract_strided_slice %276 {offsets = [0, 0], sizes = [8, 128], strides = [1, 1]} : vector<8x512xf32> to vector<8x128xf32>
    %278 = arith.negf %277 : vector<8x128xf32>
    %279 = math.exp %278 : vector<8x128xf32>
    %cst_81 = arith.constant 1.000000e+00 : f32
    %280 = vector.broadcast %cst_81 : f32 to vector<8x128xf32>
    %281 = arith.addf %280, %279 : vector<8x128xf32>
    %282 = arith.divf %280, %281 : vector<8x128xf32>
    %283 = vector.extract_strided_slice %276 {offsets = [0, 128], sizes = [8, 128], strides = [1, 1]} : vector<8x512xf32> to vector<8x128xf32>
    %284 = arith.negf %283 : vector<8x128xf32>
    %285 = math.exp %284 : vector<8x128xf32>
    %cst_82 = arith.constant 1.000000e+00 : f32
    %286 = vector.broadcast %cst_82 : f32 to vector<8x128xf32>
    %287 = arith.addf %286, %285 : vector<8x128xf32>
    %288 = arith.divf %286, %287 : vector<8x128xf32>
    %289 = vector.extract_strided_slice %276 {offsets = [0, 256], sizes = [8, 128], strides = [1, 1]} : vector<8x512xf32> to vector<8x128xf32>
    %290 = math.tanh %289 : vector<8x128xf32>
    %291 = vector.extract_strided_slice %276 {offsets = [0, 384], sizes = [8, 128], strides = [1, 1]} : vector<8x512xf32> to vector<8x128xf32>
    %292 = arith.negf %291 : vector<8x128xf32>
    %293 = math.exp %292 : vector<8x128xf32>
    %cst_83 = arith.constant 1.000000e+00 : f32
    %294 = vector.broadcast %cst_83 : f32 to vector<8x128xf32>
    %295 = arith.addf %294, %293 : vector<8x128xf32>
    %296 = arith.divf %294, %295 : vector<8x128xf32>
    %297 = arith.mulf %288, %269 : vector<8x128xf32>
    %298 = arith.mulf %282, %290 : vector<8x128xf32>
    %299 = arith.addf %297, %298 : vector<8x128xf32>
    %300 = math.tanh %299 : vector<8x128xf32>
    %301 = arith.mulf %296, %300 : vector<8x128xf32>
    %c56_84 = arith.constant 56 : index
    %c0_85 = arith.constant 0 : index
    %302 = vector.load %arg13[%c56_84, %c0_85] : memref<64x128xf32, #tpu.memory_space<vmem>>, vector<8x128xf32>
    tpu.vector_store %arg13[%c56_84, %c0_85], %301 {strides = array<i32>} : memref<64x128xf32, #tpu.memory_space<vmem>>, vector<8x128xf32>,
    %c0_86 = arith.constant 0 : index
    %c0_87 = arith.constant 0 : index
    %303 = vector.load %arg13[%c0_86, %c0_87] : memref<64x128xf32, #tpu.memory_space<vmem>>, vector<8x128xf32>
    %c56_88 = arith.constant 56 : index
    %c0_89 = arith.constant 0 : index
    %304 = vector.load %arg13[%c56_88, %c0_89] : memref<64x128xf32, #tpu.memory_space<vmem>>, vector<8x128xf32>
    %305 = arith.select %21, %303, %304 : vector<8x128xi1>, vector<8x128xf32>
    %c0_90 = arith.constant 0 : index
    %c0_91 = arith.constant 0 : index
    %306 = vector.load %arg13[%c0_90, %c0_91] : memref<64x128xf32, #tpu.memory_space<vmem>>, vector<8x128xf32>
    tpu.vector_store %arg13[%c0_90, %c0_91], %305 {strides = array<i32>} : memref<64x128xf32, #tpu.memory_space<vmem>>, vector<8x128xf32>,
    %307 = arith.select %21, %304, %303 : vector<8x128xi1>, vector<8x128xf32>
    %c56_92 = arith.constant 56 : index
    %c0_93 = arith.constant 0 : index
    %308 = vector.load %arg13[%c56_92, %c0_93] : memref<64x128xf32, #tpu.memory_space<vmem>>, vector<8x128xf32>
    tpu.vector_store %arg13[%c56_92, %c0_93], %307 {strides = array<i32>} : memref<64x128xf32, #tpu.memory_space<vmem>>, vector<8x128xf32>,
    %c8_94 = arith.constant 8 : index
    %c0_95 = arith.constant 0 : index
    %309 = vector.load %arg13[%c8_94, %c0_95] : memref<64x128xf32, #tpu.memory_space<vmem>>, vector<8x128xf32>
    %c48_96 = arith.constant 48 : index
    %c0_97 = arith.constant 0 : index
    %310 = vector.load %arg13[%c48_96, %c0_97] : memref<64x128xf32, #tpu.memory_space<vmem>>, vector<8x128xf32>
    %311 = arith.select %21, %309, %310 : vector<8x128xi1>, vector<8x128xf32>
    %c8_98 = arith.constant 8 : index
    %c0_99 = arith.constant 0 : index
    %312 = vector.load %arg13[%c8_98, %c0_99] : memref<64x128xf32, #tpu.memory_space<vmem>>, vector<8x128xf32>
    tpu.vector_store %arg13[%c8_98, %c0_99], %311 {strides = array<i32>} : memref<64x128xf32, #tpu.memory_space<vmem>>, vector<8x128xf32>,
    %313 = arith.select %21, %310, %309 : vector<8x128xi1>, vector<8x128xf32>
    %c48_100 = arith.constant 48 : index
    %c0_101 = arith.constant 0 : index
    %314 = vector.load %arg13[%c48_100, %c0_101] : memref<64x128xf32, #tpu.memory_space<vmem>>, vector<8x128xf32>
    tpu.vector_store %arg13[%c48_100, %c0_101], %313 {strides = array<i32>} : memref<64x128xf32, #tpu.memory_space<vmem>>, vector<8x128xf32>,
    %c16_102 = arith.constant 16 : index
    %c0_103 = arith.constant 0 : index
    %315 = vector.load %arg13[%c16_102, %c0_103] : memref<64x128xf32, #tpu.memory_space<vmem>>, vector<8x128xf32>
    %c40_104 = arith.constant 40 : index
    %c0_105 = arith.constant 0 : index
    %316 = vector.load %arg13[%c40_104, %c0_105] : memref<64x128xf32, #tpu.memory_space<vmem>>, vector<8x128xf32>
    %317 = arith.select %21, %315, %316 : vector<8x128xi1>, vector<8x128xf32>
    %c16_106 = arith.constant 16 : index
    %c0_107 = arith.constant 0 : index
    %318 = vector.load %arg13[%c16_106, %c0_107] : memref<64x128xf32, #tpu.memory_space<vmem>>, vector<8x128xf32>
    tpu.vector_store %arg13[%c16_106, %c0_107], %317 {strides = array<i32>} : memref<64x128xf32, #tpu.memory_space<vmem>>, vector<8x128xf32>,
    %319 = arith.select %21, %316, %315 : vector<8x128xi1>, vector<8x128xf32>
    %c40_108 = arith.constant 40 : index
    %c0_109 = arith.constant 0 : index
    %320 = vector.load %arg13[%c40_108, %c0_109] : memref<64x128xf32, #tpu.memory_space<vmem>>, vector<8x128xf32>
    tpu.vector_store %arg13[%c40_108, %c0_109], %319 {strides = array<i32>} : memref<64x128xf32, #tpu.memory_space<vmem>>, vector<8x128xf32>,
    %c24_110 = arith.constant 24 : index
    %c0_111 = arith.constant 0 : index
    %321 = vector.load %arg13[%c24_110, %c0_111] : memref<64x128xf32, #tpu.memory_space<vmem>>, vector<8x128xf32>
    %c32_112 = arith.constant 32 : index
    %c0_113 = arith.constant 0 : index
    %322 = vector.load %arg13[%c32_112, %c0_113] : memref<64x128xf32, #tpu.memory_space<vmem>>, vector<8x128xf32>
    %323 = arith.select %21, %321, %322 : vector<8x128xi1>, vector<8x128xf32>
    %c24_114 = arith.constant 24 : index
    %c0_115 = arith.constant 0 : index
    %324 = vector.load %arg13[%c24_114, %c0_115] : memref<64x128xf32, #tpu.memory_space<vmem>>, vector<8x128xf32>
    tpu.vector_store %arg13[%c24_114, %c0_115], %323 {strides = array<i32>} : memref<64x128xf32, #tpu.memory_space<vmem>>, vector<8x128xf32>,
    %325 = arith.select %21, %322, %321 : vector<8x128xi1>, vector<8x128xf32>
    %c32_116 = arith.constant 32 : index
    %c0_117 = arith.constant 0 : index
    %326 = vector.load %arg13[%c32_116, %c0_117] : memref<64x128xf32, #tpu.memory_space<vmem>>, vector<8x128xf32>
    tpu.vector_store %arg13[%c32_116, %c0_117], %325 {strides = array<i32>} : memref<64x128xf32, #tpu.memory_space<vmem>>, vector<8x128xf32>,
    %c0_118 = arith.constant 0 : index
    %c0_119 = arith.constant 0 : index
    %327 = vector.load %arg13[%c0_118, %c0_119] : memref<64x128xf32, #tpu.memory_space<vmem>>, vector<64x128xf32>
    %328 = arith.truncf %327 : vector<64x128xf32> to vector<64x128xbf16>
    %c0_120 = arith.constant 0 : index
    %c0_121 = arith.constant 0 : index
    %329 = vector.load %arg4[%c0_120, %c0_121] : memref<128x512xbf16, #tpu.memory_space<vmem>>, vector<128x512xbf16>
    %cst_122 = arith.constant dense<0.000000e+00> : vector<64x512xf32>
    %330 = tpu.matmul %328, %329, %cst_122 {dimension_numbers = #tpu.dot_dimension_numbers<[1], [0], [0], [1], [0, 0, 1, 1], [], []>} : vector<64x128xbf16>, vector<128x512xbf16>, vector<64x512xf32> -> vector<64x512xf32>
    %c0_123 = arith.constant 0 : index
    %c0_124 = arith.constant 0 : index
    %331 = vector.load %arg6[%c0_123, %c0_124] : memref<1x512xf32, #tpu.memory_space<vmem>>, vector<1x512xf32>
    %332 = vector.broadcast %331 : vector<1x512xf32> to vector<64x512xf32>
    %333 = arith.addf %330, %332 : vector<64x512xf32>
    %334 = vector.extract_strided_slice %333 {offsets = [0, 0], sizes = [8, 512], strides = [1, 1]} : vector<64x512xf32> to vector<8x512xf32>
    %335 = vector.extract_strided_slice %333 {offsets = [56, 0], sizes = [8, 512], strides = [1, 1]} : vector<64x512xf32> to vector<8x512xf32>
    %336 = arith.select %18, %334, %335 : vector<8x512xi1>, vector<8x512xf32>
    %c0_125 = arith.constant 0 : index
    %c0_126 = arith.constant 0 : index
    %337 = vector.load %arg12[%c0_125, %c0_126] : memref<64x512xf32, #tpu.memory_space<vmem>>, vector<8x512xf32>
    tpu.vector_store %arg12[%c0_125, %c0_126], %336 {strides = array<i32>} : memref<64x512xf32, #tpu.memory_space<vmem>>, vector<8x512xf32>,
    %338 = vector.extract_strided_slice %333 {offsets = [8, 0], sizes = [8, 512], strides = [1, 1]} : vector<64x512xf32> to vector<8x512xf32>
    %339 = vector.extract_strided_slice %333 {offsets = [48, 0], sizes = [8, 512], strides = [1, 1]} : vector<64x512xf32> to vector<8x512xf32>
    %340 = arith.select %18, %338, %339 : vector<8x512xi1>, vector<8x512xf32>
    %c8_127 = arith.constant 8 : index
    %c0_128 = arith.constant 0 : index
    %341 = vector.load %arg12[%c8_127, %c0_128] : memref<64x512xf32, #tpu.memory_space<vmem>>, vector<8x512xf32>
    tpu.vector_store %arg12[%c8_127, %c0_128], %340 {strides = array<i32>} : memref<64x512xf32, #tpu.memory_space<vmem>>, vector<8x512xf32>,
    %342 = vector.extract_strided_slice %333 {offsets = [16, 0], sizes = [8, 512], strides = [1, 1]} : vector<64x512xf32> to vector<8x512xf32>
    %343 = vector.extract_strided_slice %333 {offsets = [40, 0], sizes = [8, 512], strides = [1, 1]} : vector<64x512xf32> to vector<8x512xf32>
    %344 = arith.select %18, %342, %343 : vector<8x512xi1>, vector<8x512xf32>
    %c16_129 = arith.constant 16 : index
    %c0_130 = arith.constant 0 : index
    %345 = vector.load %arg12[%c16_129, %c0_130] : memref<64x512xf32, #tpu.memory_space<vmem>>, vector<8x512xf32>
    tpu.vector_store %arg12[%c16_129, %c0_130], %344 {strides = array<i32>} : memref<64x512xf32, #tpu.memory_space<vmem>>, vector<8x512xf32>,
    %346 = vector.extract_strided_slice %333 {offsets = [24, 0], sizes = [8, 512], strides = [1, 1]} : vector<64x512xf32> to vector<8x512xf32>
    %347 = vector.extract_strided_slice %333 {offsets = [32, 0], sizes = [8, 512], strides = [1, 1]} : vector<64x512xf32> to vector<8x512xf32>
    %348 = arith.select %18, %346, %347 : vector<8x512xi1>, vector<8x512xf32>
    %c24_131 = arith.constant 24 : index
    %c0_132 = arith.constant 0 : index
    %349 = vector.load %arg12[%c24_131, %c0_132] : memref<64x512xf32, #tpu.memory_space<vmem>>, vector<8x512xf32>
    tpu.vector_store %arg12[%c24_131, %c0_132], %348 {strides = array<i32>} : memref<64x512xf32, #tpu.memory_space<vmem>>, vector<8x512xf32>,
    %350 = vector.extract_strided_slice %333 {offsets = [32, 0], sizes = [8, 512], strides = [1, 1]} : vector<64x512xf32> to vector<8x512xf32>
    %351 = vector.extract_strided_slice %333 {offsets = [24, 0], sizes = [8, 512], strides = [1, 1]} : vector<64x512xf32> to vector<8x512xf32>
    %352 = arith.select %18, %350, %351 : vector<8x512xi1>, vector<8x512xf32>
    %c32_133 = arith.constant 32 : index
    %c0_134 = arith.constant 0 : index
    %353 = vector.load %arg12[%c32_133, %c0_134] : memref<64x512xf32, #tpu.memory_space<vmem>>, vector<8x512xf32>
    tpu.vector_store %arg12[%c32_133, %c0_134], %352 {strides = array<i32>} : memref<64x512xf32, #tpu.memory_space<vmem>>, vector<8x512xf32>,
    %354 = vector.extract_strided_slice %333 {offsets = [40, 0], sizes = [8, 512], strides = [1, 1]} : vector<64x512xf32> to vector<8x512xf32>
    %355 = vector.extract_strided_slice %333 {offsets = [16, 0], sizes = [8, 512], strides = [1, 1]} : vector<64x512xf32> to vector<8x512xf32>
    %356 = arith.select %18, %354, %355 : vector<8x512xi1>, vector<8x512xf32>
    %c40_135 = arith.constant 40 : index
    %c0_136 = arith.constant 0 : index
    %357 = vector.load %arg12[%c40_135, %c0_136] : memref<64x512xf32, #tpu.memory_space<vmem>>, vector<8x512xf32>
    tpu.vector_store %arg12[%c40_135, %c0_136], %356 {strides = array<i32>} : memref<64x512xf32, #tpu.memory_space<vmem>>, vector<8x512xf32>,
    %358 = vector.extract_strided_slice %333 {offsets = [48, 0], sizes = [8, 512], strides = [1, 1]} : vector<64x512xf32> to vector<8x512xf32>
    %359 = vector.extract_strided_slice %333 {offsets = [8, 0], sizes = [8, 512], strides = [1, 1]} : vector<64x512xf32> to vector<8x512xf32>
    %360 = arith.select %18, %358, %359 : vector<8x512xi1>, vector<8x512xf32>
    %c48_137 = arith.constant 48 : index
    %c0_138 = arith.constant 0 : index
    %361 = vector.load %arg12[%c48_137, %c0_138] : memref<64x512xf32, #tpu.memory_space<vmem>>, vector<8x512xf32>
    tpu.vector_store %arg12[%c48_137, %c0_138], %360 {strides = array<i32>} : memref<64x512xf32, #tpu.memory_space<vmem>>, vector<8x512xf32>,
    %362 = vector.extract_strided_slice %333 {offsets = [56, 0], sizes = [8, 512], strides = [1, 1]} : vector<64x512xf32> to vector<8x512xf32>
    %363 = vector.extract_strided_slice %333 {offsets = [0, 0], sizes = [8, 512], strides = [1, 1]} : vector<64x512xf32> to vector<8x512xf32>
    %364 = arith.select %18, %362, %363 : vector<8x512xi1>, vector<8x512xf32>
    %c56_139 = arith.constant 56 : index
    %c0_140 = arith.constant 0 : index
    %365 = vector.load %arg12[%c56_139, %c0_140] : memref<64x512xf32, #tpu.memory_space<vmem>>, vector<8x512xf32>
    tpu.vector_store %arg12[%c56_139, %c0_140], %364 {strides = array<i32>} : memref<64x512xf32, #tpu.memory_space<vmem>>, vector<8x512xf32>,
    %c0_141 = arith.constant 0 : index
    %c0_142 = arith.constant 0 : index
    %366 = vector.load %arg5[%c0_141, %c0_142] : memref<128x512xbf16, #tpu.memory_space<vmem>>, vector<128x512xbf16>
    %cst_143 = arith.constant 0.000000e+00 : f32
    %367 = vector.broadcast %cst_143 : f32 to vector<8x128xf32>
    %cst_144 = arith.constant 0.000000e+00 : f32
    %368 = vector.broadcast %cst_144 : f32 to vector<8x128xf32>
    %c0_145 = arith.constant 0 : index
    %c0_146 = arith.constant 0 : index
    %369 = vector.load %arg12[%c0_145, %c0_146] : memref<64x512xf32, #tpu.memory_space<vmem>>, vector<8x512xf32>
    %370 = arith.truncf %367 : vector<8x128xf32> to vector<8x128xbf16>
    %cst_147 = arith.constant dense<0.000000e+00> : vector<8x512xf32>
    %371 = tpu.matmul %370, %366, %cst_147 {dimension_numbers = #tpu.dot_dimension_numbers<[1], [0], [0], [1], [0, 0, 1, 1], [], []>} : vector<8x128xbf16>, vector<128x512xbf16>, vector<8x512xf32> -> vector<8x512xf32>
    %372 = arith.addf %369, %371 : vector<8x512xf32>
    %373 = vector.extract_strided_slice %372 {offsets = [0, 0], sizes = [8, 128], strides = [1, 1]} : vector<8x512xf32> to vector<8x128xf32>
    %374 = arith.negf %373 : vector<8x128xf32>
    %375 = math.exp %374 : vector<8x128xf32>
    %cst_148 = arith.constant 1.000000e+00 : f32
    %376 = vector.broadcast %cst_148 : f32 to vector<8x128xf32>
    %377 = arith.addf %376, %375 : vector<8x128xf32>
    %378 = arith.divf %376, %377 : vector<8x128xf32>
    %379 = vector.extract_strided_slice %372 {offsets = [0, 128], sizes = [8, 128], strides = [1, 1]} : vector<8x512xf32> to vector<8x128xf32>
    %380 = arith.negf %379 : vector<8x128xf32>
    %381 = math.exp %380 : vector<8x128xf32>
    %cst_149 = arith.constant 1.000000e+00 : f32
    %382 = vector.broadcast %cst_149 : f32 to vector<8x128xf32>
    %383 = arith.addf %382, %381 : vector<8x128xf32>
    %384 = arith.divf %382, %383 : vector<8x128xf32>
    %385 = vector.extract_strided_slice %372 {offsets = [0, 256], sizes = [8, 128], strides = [1, 1]} : vector<8x512xf32> to vector<8x128xf32>
    %386 = math.tanh %385 : vector<8x128xf32>
    %387 = vector.extract_strided_slice %372 {offsets = [0, 384], sizes = [8, 128], strides = [1, 1]} : vector<8x512xf32> to vector<8x128xf32>
    %388 = arith.negf %387 : vector<8x128xf32>
    %389 = math.exp %388 : vector<8x128xf32>
    %cst_150 = arith.constant 1.000000e+00 : f32
    %390 = vector.broadcast %cst_150 : f32 to vector<8x128xf32>
    %391 = arith.addf %390, %389 : vector<8x128xf32>
    %392 = arith.divf %390, %391 : vector<8x128xf32>
    %393 = arith.mulf %384, %368 : vector<8x128xf32>
    %394 = arith.mulf %378, %386 : vector<8x128xf32>
    %395 = arith.addf %393, %394 : vector<8x128xf32>
    %396 = math.tanh %395 : vector<8x128xf32>
    %397 = arith.mulf %392, %396 : vector<8x128xf32>
    %c0_151 = arith.constant 0 : index
    %c0_152 = arith.constant 0 : index
    %398 = vector.load %arg14[%c0_151, %c0_152] : memref<64x128xf32, #tpu.memory_space<vmem>>, vector<8x128xf32>
    tpu.vector_store %arg14[%c0_151, %c0_152], %397 {strides = array<i32>} : memref<64x128xf32, #tpu.memory_space<vmem>>, vector<8x128xf32>,
    %c8_153 = arith.constant 8 : index
    %c0_154 = arith.constant 0 : index
    %399 = vector.load %arg12[%c8_153, %c0_154] : memref<64x512xf32, #tpu.memory_space<vmem>>, vector<8x512xf32>
    %400 = arith.truncf %397 : vector<8x128xf32> to vector<8x128xbf16>
    %cst_155 = arith.constant dense<0.000000e+00> : vector<8x512xf32>
    %401 = tpu.matmul %400, %366, %cst_155 {dimension_numbers = #tpu.dot_dimension_numbers<[1], [0], [0], [1], [0, 0, 1, 1], [], []>} : vector<8x128xbf16>, vector<128x512xbf16>, vector<8x512xf32> -> vector<8x512xf32>
    %402 = arith.addf %399, %401 : vector<8x512xf32>
    %403 = vector.extract_strided_slice %402 {offsets = [0, 0], sizes = [8, 128], strides = [1, 1]} : vector<8x512xf32> to vector<8x128xf32>
    %404 = arith.negf %403 : vector<8x128xf32>
    %405 = math.exp %404 : vector<8x128xf32>
    %cst_156 = arith.constant 1.000000e+00 : f32
    %406 = vector.broadcast %cst_156 : f32 to vector<8x128xf32>
    %407 = arith.addf %406, %405 : vector<8x128xf32>
    %408 = arith.divf %406, %407 : vector<8x128xf32>
    %409 = vector.extract_strided_slice %402 {offsets = [0, 128], sizes = [8, 128], strides = [1, 1]} : vector<8x512xf32> to vector<8x128xf32>
    %410 = arith.negf %409 : vector<8x128xf32>
    %411 = math.exp %410 : vector<8x128xf32>
    %cst_157 = arith.constant 1.000000e+00 : f32
    %412 = vector.broadcast %cst_157 : f32 to vector<8x128xf32>
    %413 = arith.addf %412, %411 : vector<8x128xf32>
    %414 = arith.divf %412, %413 : vector<8x128xf32>
    %415 = vector.extract_strided_slice %402 {offsets = [0, 256], sizes = [8, 128], strides = [1, 1]} : vector<8x512xf32> to vector<8x128xf32>
    %416 = math.tanh %415 : vector<8x128xf32>
    %417 = vector.extract_strided_slice %402 {offsets = [0, 384], sizes = [8, 128], strides = [1, 1]} : vector<8x512xf32> to vector<8x128xf32>
    %418 = arith.negf %417 : vector<8x128xf32>
    %419 = math.exp %418 : vector<8x128xf32>
    %cst_158 = arith.constant 1.000000e+00 : f32
    %420 = vector.broadcast %cst_158 : f32 to vector<8x128xf32>
    %421 = arith.addf %420, %419 : vector<8x128xf32>
    %422 = arith.divf %420, %421 : vector<8x128xf32>
    %423 = arith.mulf %414, %395 : vector<8x128xf32>
    %424 = arith.mulf %408, %416 : vector<8x128xf32>
    %425 = arith.addf %423, %424 : vector<8x128xf32>
    %426 = math.tanh %425 : vector<8x128xf32>
    %427 = arith.mulf %422, %426 : vector<8x128xf32>
    %c8_159 = arith.constant 8 : index
    %c0_160 = arith.constant 0 : index
    %428 = vector.load %arg14[%c8_159, %c0_160] : memref<64x128xf32, #tpu.memory_space<vmem>>, vector<8x128xf32>
    tpu.vector_store %arg14[%c8_159, %c0_160], %427 {strides = array<i32>} : memref<64x128xf32, #tpu.memory_space<vmem>>, vector<8x128xf32>,
    %c16_161 = arith.constant 16 : index
    %c0_162 = arith.constant 0 : index
    %429 = vector.load %arg12[%c16_161, %c0_162] : memref<64x512xf32, #tpu.memory_space<vmem>>, vector<8x512xf32>
    %430 = arith.truncf %427 : vector<8x128xf32> to vector<8x128xbf16>
    %cst_163 = arith.constant dense<0.000000e+00> : vector<8x512xf32>
    %431 = tpu.matmul %430, %366, %cst_163 {dimension_numbers = #tpu.dot_dimension_numbers<[1], [0], [0], [1], [0, 0, 1, 1], [], []>} : vector<8x128xbf16>, vector<128x512xbf16>, vector<8x512xf32> -> vector<8x512xf32>
    %432 = arith.addf %429, %431 : vector<8x512xf32>
    %433 = vector.extract_strided_slice %432 {offsets = [0, 0], sizes = [8, 128], strides = [1, 1]} : vector<8x512xf32> to vector<8x128xf32>
    %434 = arith.negf %433 : vector<8x128xf32>
    %435 = math.exp %434 : vector<8x128xf32>
    %cst_164 = arith.constant 1.000000e+00 : f32
    %436 = vector.broadcast %cst_164 : f32 to vector<8x128xf32>
    %437 = arith.addf %436, %435 : vector<8x128xf32>
    %438 = arith.divf %436, %437 : vector<8x128xf32>
    %439 = vector.extract_strided_slice %432 {offsets = [0, 128], sizes = [8, 128], strides = [1, 1]} : vector<8x512xf32> to vector<8x128xf32>
    %440 = arith.negf %439 : vector<8x128xf32>
    %441 = math.exp %440 : vector<8x128xf32>
    %cst_165 = arith.constant 1.000000e+00 : f32
    %442 = vector.broadcast %cst_165 : f32 to vector<8x128xf32>
    %443 = arith.addf %442, %441 : vector<8x128xf32>
    %444 = arith.divf %442, %443 : vector<8x128xf32>
    %445 = vector.extract_strided_slice %432 {offsets = [0, 256], sizes = [8, 128], strides = [1, 1]} : vector<8x512xf32> to vector<8x128xf32>
    %446 = math.tanh %445 : vector<8x128xf32>
    %447 = vector.extract_strided_slice %432 {offsets = [0, 384], sizes = [8, 128], strides = [1, 1]} : vector<8x512xf32> to vector<8x128xf32>
    %448 = arith.negf %447 : vector<8x128xf32>
    %449 = math.exp %448 : vector<8x128xf32>
    %cst_166 = arith.constant 1.000000e+00 : f32
    %450 = vector.broadcast %cst_166 : f32 to vector<8x128xf32>
    %451 = arith.addf %450, %449 : vector<8x128xf32>
    %452 = arith.divf %450, %451 : vector<8x128xf32>
    %453 = arith.mulf %444, %425 : vector<8x128xf32>
    %454 = arith.mulf %438, %446 : vector<8x128xf32>
    %455 = arith.addf %453, %454 : vector<8x128xf32>
    %456 = math.tanh %455 : vector<8x128xf32>
    %457 = arith.mulf %452, %456 : vector<8x128xf32>
    %c16_167 = arith.constant 16 : index
    %c0_168 = arith.constant 0 : index
    %458 = vector.load %arg14[%c16_167, %c0_168] : memref<64x128xf32, #tpu.memory_space<vmem>>, vector<8x128xf32>
    tpu.vector_store %arg14[%c16_167, %c0_168], %457 {strides = array<i32>} : memref<64x128xf32, #tpu.memory_space<vmem>>, vector<8x128xf32>,
    %c24_169 = arith.constant 24 : index
    %c0_170 = arith.constant 0 : index
    %459 = vector.load %arg12[%c24_169, %c0_170] : memref<64x512xf32, #tpu.memory_space<vmem>>, vector<8x512xf32>
    %460 = arith.truncf %457 : vector<8x128xf32> to vector<8x128xbf16>
    %cst_171 = arith.constant dense<0.000000e+00> : vector<8x512xf32>
    %461 = tpu.matmul %460, %366, %cst_171 {dimension_numbers = #tpu.dot_dimension_numbers<[1], [0], [0], [1], [0, 0, 1, 1], [], []>} : vector<8x128xbf16>, vector<128x512xbf16>, vector<8x512xf32> -> vector<8x512xf32>
    %462 = arith.addf %459, %461 : vector<8x512xf32>
    %463 = vector.extract_strided_slice %462 {offsets = [0, 0], sizes = [8, 128], strides = [1, 1]} : vector<8x512xf32> to vector<8x128xf32>
    %464 = arith.negf %463 : vector<8x128xf32>
    %465 = math.exp %464 : vector<8x128xf32>
    %cst_172 = arith.constant 1.000000e+00 : f32
    %466 = vector.broadcast %cst_172 : f32 to vector<8x128xf32>
    %467 = arith.addf %466, %465 : vector<8x128xf32>
    %468 = arith.divf %466, %467 : vector<8x128xf32>
    %469 = vector.extract_strided_slice %462 {offsets = [0, 128], sizes = [8, 128], strides = [1, 1]} : vector<8x512xf32> to vector<8x128xf32>
    %470 = arith.negf %469 : vector<8x128xf32>
    %471 = math.exp %470 : vector<8x128xf32>
    %cst_173 = arith.constant 1.000000e+00 : f32
    %472 = vector.broadcast %cst_173 : f32 to vector<8x128xf32>
    %473 = arith.addf %472, %471 : vector<8x128xf32>
    %474 = arith.divf %472, %473 : vector<8x128xf32>
    %475 = vector.extract_strided_slice %462 {offsets = [0, 256], sizes = [8, 128], strides = [1, 1]} : vector<8x512xf32> to vector<8x128xf32>
    %476 = math.tanh %475 : vector<8x128xf32>
    %477 = vector.extract_strided_slice %462 {offsets = [0, 384], sizes = [8, 128], strides = [1, 1]} : vector<8x512xf32> to vector<8x128xf32>
    %478 = arith.negf %477 : vector<8x128xf32>
    %479 = math.exp %478 : vector<8x128xf32>
    %cst_174 = arith.constant 1.000000e+00 : f32
    %480 = vector.broadcast %cst_174 : f32 to vector<8x128xf32>
    %481 = arith.addf %480, %479 : vector<8x128xf32>
    %482 = arith.divf %480, %481 : vector<8x128xf32>
    %483 = arith.mulf %474, %455 : vector<8x128xf32>
    %484 = arith.mulf %468, %476 : vector<8x128xf32>
    %485 = arith.addf %483, %484 : vector<8x128xf32>
    %486 = math.tanh %485 : vector<8x128xf32>
    %487 = arith.mulf %482, %486 : vector<8x128xf32>
    %c24_175 = arith.constant 24 : index
    %c0_176 = arith.constant 0 : index
    %488 = vector.load %arg14[%c24_175, %c0_176] : memref<64x128xf32, #tpu.memory_space<vmem>>, vector<8x128xf32>
    tpu.vector_store %arg14[%c24_175, %c0_176], %487 {strides = array<i32>} : memref<64x128xf32, #tpu.memory_space<vmem>>, vector<8x128xf32>,
    %c32_177 = arith.constant 32 : index
    %c0_178 = arith.constant 0 : index
    %489 = vector.load %arg12[%c32_177, %c0_178] : memref<64x512xf32, #tpu.memory_space<vmem>>, vector<8x512xf32>
    %490 = arith.truncf %487 : vector<8x128xf32> to vector<8x128xbf16>
    %cst_179 = arith.constant dense<0.000000e+00> : vector<8x512xf32>
    %491 = tpu.matmul %490, %366, %cst_179 {dimension_numbers = #tpu.dot_dimension_numbers<[1], [0], [0], [1], [0, 0, 1, 1], [], []>} : vector<8x128xbf16>, vector<128x512xbf16>, vector<8x512xf32> -> vector<8x512xf32>
    %492 = arith.addf %489, %491 : vector<8x512xf32>
    %493 = vector.extract_strided_slice %492 {offsets = [0, 0], sizes = [8, 128], strides = [1, 1]} : vector<8x512xf32> to vector<8x128xf32>
    %494 = arith.negf %493 : vector<8x128xf32>
    %495 = math.exp %494 : vector<8x128xf32>
    %cst_180 = arith.constant 1.000000e+00 : f32
    %496 = vector.broadcast %cst_180 : f32 to vector<8x128xf32>
    %497 = arith.addf %496, %495 : vector<8x128xf32>
    %498 = arith.divf %496, %497 : vector<8x128xf32>
    %499 = vector.extract_strided_slice %492 {offsets = [0, 128], sizes = [8, 128], strides = [1, 1]} : vector<8x512xf32> to vector<8x128xf32>
    %500 = arith.negf %499 : vector<8x128xf32>
    %501 = math.exp %500 : vector<8x128xf32>
    %cst_181 = arith.constant 1.000000e+00 : f32
    %502 = vector.broadcast %cst_181 : f32 to vector<8x128xf32>
    %503 = arith.addf %502, %501 : vector<8x128xf32>
    %504 = arith.divf %502, %503 : vector<8x128xf32>
    %505 = vector.extract_strided_slice %492 {offsets = [0, 256], sizes = [8, 128], strides = [1, 1]} : vector<8x512xf32> to vector<8x128xf32>
    %506 = math.tanh %505 : vector<8x128xf32>
    %507 = vector.extract_strided_slice %492 {offsets = [0, 384], sizes = [8, 128], strides = [1, 1]} : vector<8x512xf32> to vector<8x128xf32>
    %508 = arith.negf %507 : vector<8x128xf32>
    %509 = math.exp %508 : vector<8x128xf32>
    %cst_182 = arith.constant 1.000000e+00 : f32
    %510 = vector.broadcast %cst_182 : f32 to vector<8x128xf32>
    %511 = arith.addf %510, %509 : vector<8x128xf32>
    %512 = arith.divf %510, %511 : vector<8x128xf32>
    %513 = arith.mulf %504, %485 : vector<8x128xf32>
    %514 = arith.mulf %498, %506 : vector<8x128xf32>
    %515 = arith.addf %513, %514 : vector<8x128xf32>
    %516 = math.tanh %515 : vector<8x128xf32>
    %517 = arith.mulf %512, %516 : vector<8x128xf32>
    %c32_183 = arith.constant 32 : index
    %c0_184 = arith.constant 0 : index
    %518 = vector.load %arg14[%c32_183, %c0_184] : memref<64x128xf32, #tpu.memory_space<vmem>>, vector<8x128xf32>
    tpu.vector_store %arg14[%c32_183, %c0_184], %517 {strides = array<i32>} : memref<64x128xf32, #tpu.memory_space<vmem>>, vector<8x128xf32>,
    %c40_185 = arith.constant 40 : index
    %c0_186 = arith.constant 0 : index
    %519 = vector.load %arg12[%c40_185, %c0_186] : memref<64x512xf32, #tpu.memory_space<vmem>>, vector<8x512xf32>
    %520 = arith.truncf %517 : vector<8x128xf32> to vector<8x128xbf16>
    %cst_187 = arith.constant dense<0.000000e+00> : vector<8x512xf32>
    %521 = tpu.matmul %520, %366, %cst_187 {dimension_numbers = #tpu.dot_dimension_numbers<[1], [0], [0], [1], [0, 0, 1, 1], [], []>} : vector<8x128xbf16>, vector<128x512xbf16>, vector<8x512xf32> -> vector<8x512xf32>
    %522 = arith.addf %519, %521 : vector<8x512xf32>
    %523 = vector.extract_strided_slice %522 {offsets = [0, 0], sizes = [8, 128], strides = [1, 1]} : vector<8x512xf32> to vector<8x128xf32>
    %524 = arith.negf %523 : vector<8x128xf32>
    %525 = math.exp %524 : vector<8x128xf32>
    %cst_188 = arith.constant 1.000000e+00 : f32
    %526 = vector.broadcast %cst_188 : f32 to vector<8x128xf32>
    %527 = arith.addf %526, %525 : vector<8x128xf32>
    %528 = arith.divf %526, %527 : vector<8x128xf32>
    %529 = vector.extract_strided_slice %522 {offsets = [0, 128], sizes = [8, 128], strides = [1, 1]} : vector<8x512xf32> to vector<8x128xf32>
    %530 = arith.negf %529 : vector<8x128xf32>
    %531 = math.exp %530 : vector<8x128xf32>
    %cst_189 = arith.constant 1.000000e+00 : f32
    %532 = vector.broadcast %cst_189 : f32 to vector<8x128xf32>
    %533 = arith.addf %532, %531 : vector<8x128xf32>
    %534 = arith.divf %532, %533 : vector<8x128xf32>
    %535 = vector.extract_strided_slice %522 {offsets = [0, 256], sizes = [8, 128], strides = [1, 1]} : vector<8x512xf32> to vector<8x128xf32>
    %536 = math.tanh %535 : vector<8x128xf32>
    %537 = vector.extract_strided_slice %522 {offsets = [0, 384], sizes = [8, 128], strides = [1, 1]} : vector<8x512xf32> to vector<8x128xf32>
    %538 = arith.negf %537 : vector<8x128xf32>
    %539 = math.exp %538 : vector<8x128xf32>
    %cst_190 = arith.constant 1.000000e+00 : f32
    %540 = vector.broadcast %cst_190 : f32 to vector<8x128xf32>
    %541 = arith.addf %540, %539 : vector<8x128xf32>
    %542 = arith.divf %540, %541 : vector<8x128xf32>
    %543 = arith.mulf %534, %515 : vector<8x128xf32>
    %544 = arith.mulf %528, %536 : vector<8x128xf32>
    %545 = arith.addf %543, %544 : vector<8x128xf32>
    %546 = math.tanh %545 : vector<8x128xf32>
    %547 = arith.mulf %542, %546 : vector<8x128xf32>
    %c40_191 = arith.constant 40 : index
    %c0_192 = arith.constant 0 : index
    %548 = vector.load %arg14[%c40_191, %c0_192] : memref<64x128xf32, #tpu.memory_space<vmem>>, vector<8x128xf32>
    tpu.vector_store %arg14[%c40_191, %c0_192], %547 {strides = array<i32>} : memref<64x128xf32, #tpu.memory_space<vmem>>, vector<8x128xf32>,
    %c48_193 = arith.constant 48 : index
    %c0_194 = arith.constant 0 : index
    %549 = vector.load %arg12[%c48_193, %c0_194] : memref<64x512xf32, #tpu.memory_space<vmem>>, vector<8x512xf32>
    %550 = arith.truncf %547 : vector<8x128xf32> to vector<8x128xbf16>
    %cst_195 = arith.constant dense<0.000000e+00> : vector<8x512xf32>
    %551 = tpu.matmul %550, %366, %cst_195 {dimension_numbers = #tpu.dot_dimension_numbers<[1], [0], [0], [1], [0, 0, 1, 1], [], []>} : vector<8x128xbf16>, vector<128x512xbf16>, vector<8x512xf32> -> vector<8x512xf32>
    %552 = arith.addf %549, %551 : vector<8x512xf32>
    %553 = vector.extract_strided_slice %552 {offsets = [0, 0], sizes = [8, 128], strides = [1, 1]} : vector<8x512xf32> to vector<8x128xf32>
    %554 = arith.negf %553 : vector<8x128xf32>
    %555 = math.exp %554 : vector<8x128xf32>
    %cst_196 = arith.constant 1.000000e+00 : f32
    %556 = vector.broadcast %cst_196 : f32 to vector<8x128xf32>
    %557 = arith.addf %556, %555 : vector<8x128xf32>
    %558 = arith.divf %556, %557 : vector<8x128xf32>
    %559 = vector.extract_strided_slice %552 {offsets = [0, 128], sizes = [8, 128], strides = [1, 1]} : vector<8x512xf32> to vector<8x128xf32>
    %560 = arith.negf %559 : vector<8x128xf32>
    %561 = math.exp %560 : vector<8x128xf32>
    %cst_197 = arith.constant 1.000000e+00 : f32
    %562 = vector.broadcast %cst_197 : f32 to vector<8x128xf32>
    %563 = arith.addf %562, %561 : vector<8x128xf32>
    %564 = arith.divf %562, %563 : vector<8x128xf32>
    %565 = vector.extract_strided_slice %552 {offsets = [0, 256], sizes = [8, 128], strides = [1, 1]} : vector<8x512xf32> to vector<8x128xf32>
    %566 = math.tanh %565 : vector<8x128xf32>
    %567 = vector.extract_strided_slice %552 {offsets = [0, 384], sizes = [8, 128], strides = [1, 1]} : vector<8x512xf32> to vector<8x128xf32>
    %568 = arith.negf %567 : vector<8x128xf32>
    %569 = math.exp %568 : vector<8x128xf32>
    %cst_198 = arith.constant 1.000000e+00 : f32
    %570 = vector.broadcast %cst_198 : f32 to vector<8x128xf32>
    %571 = arith.addf %570, %569 : vector<8x128xf32>
    %572 = arith.divf %570, %571 : vector<8x128xf32>
    %573 = arith.mulf %564, %545 : vector<8x128xf32>
    %574 = arith.mulf %558, %566 : vector<8x128xf32>
    %575 = arith.addf %573, %574 : vector<8x128xf32>
    %576 = math.tanh %575 : vector<8x128xf32>
    %577 = arith.mulf %572, %576 : vector<8x128xf32>
    %c48_199 = arith.constant 48 : index
    %c0_200 = arith.constant 0 : index
    %578 = vector.load %arg14[%c48_199, %c0_200] : memref<64x128xf32, #tpu.memory_space<vmem>>, vector<8x128xf32>
    tpu.vector_store %arg14[%c48_199, %c0_200], %577 {strides = array<i32>} : memref<64x128xf32, #tpu.memory_space<vmem>>, vector<8x128xf32>,
    %c56_201 = arith.constant 56 : index
    %c0_202 = arith.constant 0 : index
    %579 = vector.load %arg12[%c56_201, %c0_202] : memref<64x512xf32, #tpu.memory_space<vmem>>, vector<8x512xf32>
    %580 = arith.truncf %577 : vector<8x128xf32> to vector<8x128xbf16>
    %cst_203 = arith.constant dense<0.000000e+00> : vector<8x512xf32>
    %581 = tpu.matmul %580, %366, %cst_203 {dimension_numbers = #tpu.dot_dimension_numbers<[1], [0], [0], [1], [0, 0, 1, 1], [], []>} : vector<8x128xbf16>, vector<128x512xbf16>, vector<8x512xf32> -> vector<8x512xf32>
    %582 = arith.addf %579, %581 : vector<8x512xf32>
    %583 = vector.extract_strided_slice %582 {offsets = [0, 0], sizes = [8, 128], strides = [1, 1]} : vector<8x512xf32> to vector<8x128xf32>
    %584 = arith.negf %583 : vector<8x128xf32>
    %585 = math.exp %584 : vector<8x128xf32>
    %cst_204 = arith.constant 1.000000e+00 : f32
    %586 = vector.broadcast %cst_204 : f32 to vector<8x128xf32>
    %587 = arith.addf %586, %585 : vector<8x128xf32>
    %588 = arith.divf %586, %587 : vector<8x128xf32>
    %589 = vector.extract_strided_slice %582 {offsets = [0, 128], sizes = [8, 128], strides = [1, 1]} : vector<8x512xf32> to vector<8x128xf32>
    %590 = arith.negf %589 : vector<8x128xf32>
    %591 = math.exp %590 : vector<8x128xf32>
    %cst_205 = arith.constant 1.000000e+00 : f32
    %592 = vector.broadcast %cst_205 : f32 to vector<8x128xf32>
    %593 = arith.addf %592, %591 : vector<8x128xf32>
    %594 = arith.divf %592, %593 : vector<8x128xf32>
    %595 = vector.extract_strided_slice %582 {offsets = [0, 256], sizes = [8, 128], strides = [1, 1]} : vector<8x512xf32> to vector<8x128xf32>
    %596 = math.tanh %595 : vector<8x128xf32>
    %597 = vector.extract_strided_slice %582 {offsets = [0, 384], sizes = [8, 128], strides = [1, 1]} : vector<8x512xf32> to vector<8x128xf32>
    %598 = arith.negf %597 : vector<8x128xf32>
    %599 = math.exp %598 : vector<8x128xf32>
    %cst_206 = arith.constant 1.000000e+00 : f32
    %600 = vector.broadcast %cst_206 : f32 to vector<8x128xf32>
    %601 = arith.addf %600, %599 : vector<8x128xf32>
    %602 = arith.divf %600, %601 : vector<8x128xf32>
    %603 = arith.mulf %594, %575 : vector<8x128xf32>
    %604 = arith.mulf %588, %596 : vector<8x128xf32>
    %605 = arith.addf %603, %604 : vector<8x128xf32>
    %606 = math.tanh %605 : vector<8x128xf32>
    %607 = arith.mulf %602, %606 : vector<8x128xf32>
    %c56_207 = arith.constant 56 : index
    %c0_208 = arith.constant 0 : index
    %608 = vector.load %arg14[%c56_207, %c0_208] : memref<64x128xf32, #tpu.memory_space<vmem>>, vector<8x128xf32>
    tpu.vector_store %arg14[%c56_207, %c0_208], %607 {strides = array<i32>} : memref<64x128xf32, #tpu.memory_space<vmem>>, vector<8x128xf32>,
    %c0_209 = arith.constant 0 : index
    %c0_210 = arith.constant 0 : index
    %609 = vector.load %arg14[%c0_209, %c0_210] : memref<64x128xf32, #tpu.memory_space<vmem>>, vector<8x128xf32>
    %c56_211 = arith.constant 56 : index
    %c0_212 = arith.constant 0 : index
    %610 = vector.load %arg14[%c56_211, %c0_212] : memref<64x128xf32, #tpu.memory_space<vmem>>, vector<8x128xf32>
    %611 = arith.select %21, %609, %610 : vector<8x128xi1>, vector<8x128xf32>
    %c0_213 = arith.constant 0 : index
    %c0_214 = arith.constant 0 : index
    %612 = vector.load %arg14[%c0_213, %c0_214] : memref<64x128xf32, #tpu.memory_space<vmem>>, vector<8x128xf32>
    tpu.vector_store %arg14[%c0_213, %c0_214], %611 {strides = array<i32>} : memref<64x128xf32, #tpu.memory_space<vmem>>, vector<8x128xf32>,
    %613 = arith.select %21, %610, %609 : vector<8x128xi1>, vector<8x128xf32>
    %c56_215 = arith.constant 56 : index
    %c0_216 = arith.constant 0 : index
    %614 = vector.load %arg14[%c56_215, %c0_216] : memref<64x128xf32, #tpu.memory_space<vmem>>, vector<8x128xf32>
    tpu.vector_store %arg14[%c56_215, %c0_216], %613 {strides = array<i32>} : memref<64x128xf32, #tpu.memory_space<vmem>>, vector<8x128xf32>,
    %c8_217 = arith.constant 8 : index
    %c0_218 = arith.constant 0 : index
    %615 = vector.load %arg14[%c8_217, %c0_218] : memref<64x128xf32, #tpu.memory_space<vmem>>, vector<8x128xf32>
    %c48_219 = arith.constant 48 : index
    %c0_220 = arith.constant 0 : index
    %616 = vector.load %arg14[%c48_219, %c0_220] : memref<64x128xf32, #tpu.memory_space<vmem>>, vector<8x128xf32>
    %617 = arith.select %21, %615, %616 : vector<8x128xi1>, vector<8x128xf32>
    %c8_221 = arith.constant 8 : index
    %c0_222 = arith.constant 0 : index
    %618 = vector.load %arg14[%c8_221, %c0_222] : memref<64x128xf32, #tpu.memory_space<vmem>>, vector<8x128xf32>
    tpu.vector_store %arg14[%c8_221, %c0_222], %617 {strides = array<i32>} : memref<64x128xf32, #tpu.memory_space<vmem>>, vector<8x128xf32>,
    %619 = arith.select %21, %616, %615 : vector<8x128xi1>, vector<8x128xf32>
    %c48_223 = arith.constant 48 : index
    %c0_224 = arith.constant 0 : index
    %620 = vector.load %arg14[%c48_223, %c0_224] : memref<64x128xf32, #tpu.memory_space<vmem>>, vector<8x128xf32>
    tpu.vector_store %arg14[%c48_223, %c0_224], %619 {strides = array<i32>} : memref<64x128xf32, #tpu.memory_space<vmem>>, vector<8x128xf32>,
    %c16_225 = arith.constant 16 : index
    %c0_226 = arith.constant 0 : index
    %621 = vector.load %arg14[%c16_225, %c0_226] : memref<64x128xf32, #tpu.memory_space<vmem>>, vector<8x128xf32>
    %c40_227 = arith.constant 40 : index
    %c0_228 = arith.constant 0 : index
    %622 = vector.load %arg14[%c40_227, %c0_228] : memref<64x128xf32, #tpu.memory_space<vmem>>, vector<8x128xf32>
    %623 = arith.select %21, %621, %622 : vector<8x128xi1>, vector<8x128xf32>
    %c16_229 = arith.constant 16 : index
    %c0_230 = arith.constant 0 : index
    %624 = vector.load %arg14[%c16_229, %c0_230] : memref<64x128xf32, #tpu.memory_space<vmem>>, vector<8x128xf32>
    tpu.vector_store %arg14[%c16_229, %c0_230], %623 {strides = array<i32>} : memref<64x128xf32, #tpu.memory_space<vmem>>, vector<8x128xf32>,
    %625 = arith.select %21, %622, %621 : vector<8x128xi1>, vector<8x128xf32>
    %c40_231 = arith.constant 40 : index
    %c0_232 = arith.constant 0 : index
    %626 = vector.load %arg14[%c40_231, %c0_232] : memref<64x128xf32, #tpu.memory_space<vmem>>, vector<8x128xf32>
    tpu.vector_store %arg14[%c40_231, %c0_232], %625 {strides = array<i32>} : memref<64x128xf32, #tpu.memory_space<vmem>>, vector<8x128xf32>,
    %c24_233 = arith.constant 24 : index
    %c0_234 = arith.constant 0 : index
    %627 = vector.load %arg14[%c24_233, %c0_234] : memref<64x128xf32, #tpu.memory_space<vmem>>, vector<8x128xf32>
    %c32_235 = arith.constant 32 : index
    %c0_236 = arith.constant 0 : index
    %628 = vector.load %arg14[%c32_235, %c0_236] : memref<64x128xf32, #tpu.memory_space<vmem>>, vector<8x128xf32>
    %629 = arith.select %21, %627, %628 : vector<8x128xi1>, vector<8x128xf32>
    %c24_237 = arith.constant 24 : index
    %c0_238 = arith.constant 0 : index
    %630 = vector.load %arg14[%c24_237, %c0_238] : memref<64x128xf32, #tpu.memory_space<vmem>>, vector<8x128xf32>
    tpu.vector_store %arg14[%c24_237, %c0_238], %629 {strides = array<i32>} : memref<64x128xf32, #tpu.memory_space<vmem>>, vector<8x128xf32>,
    %631 = arith.select %21, %628, %627 : vector<8x128xi1>, vector<8x128xf32>
    %c32_239 = arith.constant 32 : index
    %c0_240 = arith.constant 0 : index
    %632 = vector.load %arg14[%c32_239, %c0_240] : memref<64x128xf32, #tpu.memory_space<vmem>>, vector<8x128xf32>
    tpu.vector_store %arg14[%c32_239, %c0_240], %631 {strides = array<i32>} : memref<64x128xf32, #tpu.memory_space<vmem>>, vector<8x128xf32>,
    %c0_241 = arith.constant 0 : index
    %c0_242 = arith.constant 0 : index
    %633 = vector.load %arg14[%c0_241, %c0_242] : memref<64x128xf32, #tpu.memory_space<vmem>>, vector<64x128xf32>
    %634 = arith.truncf %633 : vector<64x128xf32> to vector<64x128xbf16>
    %c0_243 = arith.constant 0 : index
    %c0_244 = arith.constant 0 : index
    %635 = vector.load %arg7[%c0_243, %c0_244] : memref<128x128xbf16, #tpu.memory_space<vmem>>, vector<128x128xbf16>
    %cst_245 = arith.constant dense<0.000000e+00> : vector<64x128xf32>
    %636 = tpu.matmul %634, %635, %cst_245 {dimension_numbers = #tpu.dot_dimension_numbers<[1], [0], [0], [1], [0, 0, 1, 1], [], []>} : vector<64x128xbf16>, vector<128x128xbf16>, vector<64x128xf32> -> vector<64x128xf32>
    %637 = math.tanh %636 : vector<64x128xf32>
    %c0_246 = arith.constant 0 : index
    %c0_247 = arith.constant 0 : index
    %638 = vector.load %arg8[%c0_246, %c0_247] : memref<1x128xf32, #tpu.memory_space<vmem>>, vector<1x128xf32>
    %639 = vector.broadcast %638 : vector<1x128xf32> to vector<64x128xf32>
    %640 = arith.mulf %637, %639 : vector<64x128xf32>
    %cst_248 = arith.constant dense<0.000000e+00> : vector<64xf32>
    %641 = vector.multi_reduction <add>, %640, %cst_248 [1] : vector<64x128xf32> to vector<64xf32>
    %642 = vector.shape_cast %641 : vector<64xf32> to vector<64x1xf32>
    %643 = vector.extract_strided_slice %642 {offsets = [0, 0], sizes = [8, 1], strides = [1, 1]} : vector<64x1xf32> to vector<8x1xf32>
    %644 = vector.extract_strided_slice %642 {offsets = [8, 0], sizes = [8, 1], strides = [1, 1]} : vector<64x1xf32> to vector<8x1xf32>
    %645 = arith.maximumf %643, %644 : vector<8x1xf32>
    %646 = vector.extract_strided_slice %642 {offsets = [16, 0], sizes = [8, 1], strides = [1, 1]} : vector<64x1xf32> to vector<8x1xf32>
    %647 = arith.maximumf %645, %646 : vector<8x1xf32>
    %648 = vector.extract_strided_slice %642 {offsets = [24, 0], sizes = [8, 1], strides = [1, 1]} : vector<64x1xf32> to vector<8x1xf32>
    %649 = arith.maximumf %647, %648 : vector<8x1xf32>
    %650 = vector.extract_strided_slice %642 {offsets = [32, 0], sizes = [8, 1], strides = [1, 1]} : vector<64x1xf32> to vector<8x1xf32>
    %651 = arith.maximumf %649, %650 : vector<8x1xf32>
    %652 = vector.extract_strided_slice %642 {offsets = [40, 0], sizes = [8, 1], strides = [1, 1]} : vector<64x1xf32> to vector<8x1xf32>
    %653 = arith.maximumf %651, %652 : vector<8x1xf32>
    %654 = vector.extract_strided_slice %642 {offsets = [48, 0], sizes = [8, 1], strides = [1, 1]} : vector<64x1xf32> to vector<8x1xf32>
    %655 = arith.maximumf %653, %654 : vector<8x1xf32>
    %656 = vector.extract_strided_slice %642 {offsets = [56, 0], sizes = [8, 1], strides = [1, 1]} : vector<64x1xf32> to vector<8x1xf32>
    %657 = arith.maximumf %655, %656 : vector<8x1xf32>
    %cst_249 = arith.constant 0.000000e+00 : f32
    %658 = vector.broadcast %cst_249 : f32 to vector<8x1xf32>
    %cst_250 = arith.constant 0.000000e+00 : f32
    %659 = vector.broadcast %cst_250 : f32 to vector<8x128xf32>
    %660 = vector.extract_strided_slice %642 {offsets = [0, 0], sizes = [8, 1], strides = [1, 1]} : vector<64x1xf32> to vector<8x1xf32>
    %661 = arith.subf %660, %657 : vector<8x1xf32>
    %662 = math.exp %661 : vector<8x1xf32>
    %663 = arith.addf %658, %662 : vector<8x1xf32>
    %664 = vector.extract_strided_slice %633 {offsets = [0, 0], sizes = [8, 128], strides = [1, 1]} : vector<64x128xf32> to vector<8x128xf32>
    %665 = vector.broadcast %662 : vector<8x1xf32> to vector<8x128xf32>
    %666 = arith.mulf %665, %664 : vector<8x128xf32>
    %667 = arith.addf %659, %666 : vector<8x128xf32>
    %668 = vector.extract_strided_slice %642 {offsets = [8, 0], sizes = [8, 1], strides = [1, 1]} : vector<64x1xf32> to vector<8x1xf32>
    %669 = arith.subf %668, %657 : vector<8x1xf32>
    %670 = math.exp %669 : vector<8x1xf32>
    %671 = arith.addf %663, %670 : vector<8x1xf32>
    %672 = vector.extract_strided_slice %633 {offsets = [8, 0], sizes = [8, 128], strides = [1, 1]} : vector<64x128xf32> to vector<8x128xf32>
    %673 = vector.broadcast %670 : vector<8x1xf32> to vector<8x128xf32>
    %674 = arith.mulf %673, %672 : vector<8x128xf32>
    %675 = arith.addf %667, %674 : vector<8x128xf32>
    %676 = vector.extract_strided_slice %642 {offsets = [16, 0], sizes = [8, 1], strides = [1, 1]} : vector<64x1xf32> to vector<8x1xf32>
    %677 = arith.subf %676, %657 : vector<8x1xf32>
    %678 = math.exp %677 : vector<8x1xf32>
    %679 = arith.addf %671, %678 : vector<8x1xf32>
    %680 = vector.extract_strided_slice %633 {offsets = [16, 0], sizes = [8, 128], strides = [1, 1]} : vector<64x128xf32> to vector<8x128xf32>
    %681 = vector.broadcast %678 : vector<8x1xf32> to vector<8x128xf32>
    %682 = arith.mulf %681, %680 : vector<8x128xf32>
    %683 = arith.addf %675, %682 : vector<8x128xf32>
    %684 = vector.extract_strided_slice %642 {offsets = [24, 0], sizes = [8, 1], strides = [1, 1]} : vector<64x1xf32> to vector<8x1xf32>
    %685 = arith.subf %684, %657 : vector<8x1xf32>
    %686 = math.exp %685 : vector<8x1xf32>
    %687 = arith.addf %679, %686 : vector<8x1xf32>
    %688 = vector.extract_strided_slice %633 {offsets = [24, 0], sizes = [8, 128], strides = [1, 1]} : vector<64x128xf32> to vector<8x128xf32>
    %689 = vector.broadcast %686 : vector<8x1xf32> to vector<8x128xf32>
    %690 = arith.mulf %689, %688 : vector<8x128xf32>
    %691 = arith.addf %683, %690 : vector<8x128xf32>
    %692 = vector.extract_strided_slice %642 {offsets = [32, 0], sizes = [8, 1], strides = [1, 1]} : vector<64x1xf32> to vector<8x1xf32>
    %693 = arith.subf %692, %657 : vector<8x1xf32>
    %694 = math.exp %693 : vector<8x1xf32>
    %695 = arith.addf %687, %694 : vector<8x1xf32>
    %696 = vector.extract_strided_slice %633 {offsets = [32, 0], sizes = [8, 128], strides = [1, 1]} : vector<64x128xf32> to vector<8x128xf32>
    %697 = vector.broadcast %694 : vector<8x1xf32> to vector<8x128xf32>
    %698 = arith.mulf %697, %696 : vector<8x128xf32>
    %699 = arith.addf %691, %698 : vector<8x128xf32>
    %700 = vector.extract_strided_slice %642 {offsets = [40, 0], sizes = [8, 1], strides = [1, 1]} : vector<64x1xf32> to vector<8x1xf32>
    %701 = arith.subf %700, %657 : vector<8x1xf32>
    %702 = math.exp %701 : vector<8x1xf32>
    %703 = arith.addf %695, %702 : vector<8x1xf32>
    %704 = vector.extract_strided_slice %633 {offsets = [40, 0], sizes = [8, 128], strides = [1, 1]} : vector<64x128xf32> to vector<8x128xf32>
    %705 = vector.broadcast %702 : vector<8x1xf32> to vector<8x128xf32>
    %706 = arith.mulf %705, %704 : vector<8x128xf32>
    %707 = arith.addf %699, %706 : vector<8x128xf32>
    %708 = vector.extract_strided_slice %642 {offsets = [48, 0], sizes = [8, 1], strides = [1, 1]} : vector<64x1xf32> to vector<8x1xf32>
    %709 = arith.subf %708, %657 : vector<8x1xf32>
    %710 = math.exp %709 : vector<8x1xf32>
    %711 = arith.addf %703, %710 : vector<8x1xf32>
    %712 = vector.extract_strided_slice %633 {offsets = [48, 0], sizes = [8, 128], strides = [1, 1]} : vector<64x128xf32> to vector<8x128xf32>
    %713 = vector.broadcast %710 : vector<8x1xf32> to vector<8x128xf32>
    %714 = arith.mulf %713, %712 : vector<8x128xf32>
    %715 = arith.addf %707, %714 : vector<8x128xf32>
    %716 = vector.extract_strided_slice %642 {offsets = [56, 0], sizes = [8, 1], strides = [1, 1]} : vector<64x1xf32> to vector<8x1xf32>
    %717 = arith.subf %716, %657 : vector<8x1xf32>
    %718 = math.exp %717 : vector<8x1xf32>
    %719 = arith.addf %711, %718 : vector<8x1xf32>
    %720 = vector.extract_strided_slice %633 {offsets = [56, 0], sizes = [8, 128], strides = [1, 1]} : vector<64x128xf32> to vector<8x128xf32>
    %721 = vector.broadcast %718 : vector<8x1xf32> to vector<8x128xf32>
    %722 = arith.mulf %721, %720 : vector<8x128xf32>
    %723 = arith.addf %715, %722 : vector<8x128xf32>
    %724 = tpu.reciprocal %719 {approx = true} : vector<8x1xf32> -> vector<8x1xf32>
    %725 = vector.broadcast %724 : vector<8x1xf32> to vector<8x128xf32>
    %726 = arith.mulf %723, %725 : vector<8x128xf32>
    %727 = arith.truncf %726 : vector<8x128xf32> to vector<8x128xbf16>
    %c0_251 = arith.constant 0 : index
    %c0_252 = arith.constant 0 : index
    %728 = vector.load %arg9[%c0_251, %c0_252] : memref<128x4xbf16, #tpu.memory_space<vmem>>, vector<128x4xbf16>
    %cst_253 = arith.constant dense<0.000000e+00> : vector<8x4xf32>
    %729 = tpu.matmul %727, %728, %cst_253 {dimension_numbers = #tpu.dot_dimension_numbers<[1], [0], [0], [1], [0, 0, 1, 1], [], []>} : vector<8x128xbf16>, vector<128x4xbf16>, vector<8x4xf32> -> vector<8x4xf32>
    %c0_254 = arith.constant 0 : index
    %c0_255 = arith.constant 0 : index
    %730 = vector.load %arg10[%c0_254, %c0_255] : memref<1x4xf32, #tpu.memory_space<vmem>>, vector<1x4xf32>
    %731 = vector.broadcast %730 : vector<1x4xf32> to vector<8x4xf32>
    %732 = arith.addf %729, %731 : vector<8x4xf32>
    %733 = vector.extract_strided_slice %732 {offsets = [0, 0], sizes = [2, 4], strides = [1, 1]} : vector<8x4xf32> to vector<2x4xf32>
    %c0_256 = arith.constant 0 : index
    %c0_257 = arith.constant 0 : index
    %734 = vector.load %arg11[%c0_256, %c0_257] : memref<2x4xf32, #tpu.memory_space<vmem>>, vector<2x4xf32>
    tpu.vector_store %arg11[%c0_256, %c0_257], %733 {strides = array<i32>} : memref<2x4xf32, #tpu.memory_space<vmem>>, vector<2x4xf32>,
    return
  }
}

</mosaic_0001>

<llo_original>
// kernel: bilstm_attention_forward.1
$region0: #{bilstm_attention_forward.1}
  #allocation0 [shape = 'u32[]', space=smem, size = 0x4, offset = 0x4, fixed_abs, tag = 'smem constant byte address 0x4 - core index']
  #allocation1 [shape = 'u32[144,128]{1,0:T(1,128)}', space=vmem, size = 0x12000, scoped, tag = 'internal scratch']
  #allocation2 [shape = 'f32[64,512]{1,0:T(8,128)}', space=vmem, size = 0x20000, scoped, tag = 'scratch operand']
  #allocation3 [shape = 'f32[64,128]{1,0:T(8,128)}', space=vmem, size = 0x8000, scoped, tag = 'scratch operand']
  #allocation4 [shape = 'f32[64,128]{1,0:T(8,128)}', space=vmem, size = 0x8000, scoped, tag = 'scratch operand']
  %s0 = inlined_call_operand.vmem [shape: bf16[64,32], index: 0, kind: input, shape index: {}]
  %s1 = inlined_call_operand.vmem [shape: bf16[32,512], index: 1, kind: input, shape index: {}]
  %s2 = inlined_call_operand.vmem [shape: bf16[128,512], index: 2, kind: input, shape index: {}]
  %s3 = inlined_call_operand.vmem [shape: f32[1,512], index: 3, kind: input, shape index: {}]
  %s4 = inlined_call_operand.vmem [shape: bf16[128,512], index: 4, kind: input, shape index: {}]
  %s5 = inlined_call_operand.vmem [shape: bf16[128,512], index: 5, kind: input, shape index: {}]
  %s6 = inlined_call_operand.vmem [shape: f32[1,512], index: 6, kind: input, shape index: {}]
  %s7 = inlined_call_operand.vmem [shape: bf16[128,128], index: 7, kind: input, shape index: {}]
  %s8 = inlined_call_operand.vmem [shape: f32[1,128], index: 8, kind: input, shape index: {}]
  %s9 = inlined_call_operand.vmem [shape: bf16[128,4], index: 9, kind: input, shape index: {}]
  %s10 = inlined_call_operand.vmem [shape: f32[1,4], index: 10, kind: input, shape index: {}]
  %s11 = inlined_call_operand.hbm [shape: f32[2,4], index: 11, kind: output, shape index: {}]
  %s12 = sld [smem:[#allocation0]]
  $region54: #{bilstm_attention_forward.1} parent=0
    _
  %s14 = ssub.s32 1, %s12
  %s15 = scalar_select 0, %s14, %s12
  $region1: #{bilstm_attention_forward.1} parent=0
    #allocation5 [shape = 'u8[1024]{0}', space=vmem, size = 0x400, scoped, tag = 'output window, operand 0, single buffered']
    #allocation6 [shape = 's32[1]{0}', space=sflag, size = 0x4, scoped, tag = 'scoped memory for bilstm_attention_forward.1']
    %16 = vsyncpa [#allocation6], 0
    // Predicated region
    $region2: #{bilstm_attention_forward.1} parent=1 // pred_check
      _
    $region3: #{bilstm_attention_forward.1} parent=1 // pred_check_branch
      %18 = sbr.rel (0) target = $region5
    $region4: #{bilstm_attention_forward.1} parent=1 // pred_region
      _
    $region5: #{bilstm_attention_forward.1} parent=1 // pred_fallthru
      _
    // Predicated region
    $region6: #{bilstm_attention_forward.1} parent=1 // pred_check
      _
    $region7: #{bilstm_attention_forward.1} parent=1 // pred_check_branch
      %20 = sbr.rel (0) target = $region9
    $region8: #{bilstm_attention_forward.1} parent=1 // pred_region
      _
    $region9: #{bilstm_attention_forward.1} parent=1 // pred_fallthru
      _
    // Predicated region
    $region10: #{bilstm_attention_forward.1} parent=1 // pred_check
      _
    $region11: #{bilstm_attention_forward.1} parent=1 // pred_check_branch
      %22 = sbr.rel (0) target = $region13
    $region12: #{bilstm_attention_forward.1} parent=1 // pred_region
      _
    $region13: #{bilstm_attention_forward.1} parent=1 // pred_fallthru
      _
    // Predicated region
    $region14: #{bilstm_attention_forward.1} parent=1 // pred_check
      _
    $region15: #{bilstm_attention_forward.1} parent=1 // pred_check_branch
      %24 = sbr.rel (0) target = $region17
    $region16: #{bilstm_attention_forward.1} parent=1 // pred_region
      _
    $region17: #{bilstm_attention_forward.1} parent=1 // pred_fallthru
      _
    // Predicated region
    $region18: #{bilstm_attention_forward.1} parent=1 // pred_check
      _
    $region19: #{bilstm_attention_forward.1} parent=1 // pred_check_branch
      %26 = sbr.rel (0) target = $region21
    $region20: #{bilstm_attention_forward.1} parent=1 // pred_region
      _
    $region21: #{bilstm_attention_forward.1} parent=1 // pred_fallthru
      _
    // Predicated region
    $region22: #{bilstm_attention_forward.1} parent=1 // pred_check
      _
    $region23: #{bilstm_attention_forward.1} parent=1 // pred_check_branch
      %28 = sbr.rel (0) target = $region25
    $region24: #{bilstm_attention_forward.1} parent=1 // pred_region
      _
    $region25: #{bilstm_attention_forward.1} parent=1 // pred_fallthru
      _
    // Predicated region
    $region26: #{bilstm_attention_forward.1} parent=1 // pred_check
      _
    $region27: #{bilstm_attention_forward.1} parent=1 // pred_check_branch
      %30 = sbr.rel (0) target = $region29
    $region28: #{bilstm_attention_forward.1} parent=1 // pred_region
      _
    $region29: #{bilstm_attention_forward.1} parent=1 // pred_fallthru
      _
    // Predicated region
    $region30: #{bilstm_attention_forward.1} parent=1 // pred_check
      _
    $region31: #{bilstm_attention_forward.1} parent=1 // pred_check_branch
      %32 = sbr.rel (0) target = $region33
    $region32: #{bilstm_attention_forward.1} parent=1 // pred_region
      _
    $region33: #{bilstm_attention_forward.1} parent=1 // pred_fallthru
      _
    // Predicated region
    $region34: #{bilstm_attention_forward.1} parent=1 // pred_check
      _
    $region35: #{bilstm_attention_forward.1} parent=1 // pred_check_branch
      %34 = sbr.rel (0) target = $region37
    $region36: #{bilstm_attention_forward.1} parent=1 // pred_region
      _
    $region37: #{bilstm_attention_forward.1} parent=1 // pred_fallthru
      _
    // Predicated region
    $region38: #{bilstm_attention_forward.1} parent=1 // pred_check
      _
    $region39: #{bilstm_attention_forward.1} parent=1 // pred_check_branch
      %36 = sbr.rel (0) target = $region41
    $region40: #{bilstm_attention_forward.1} parent=1 // pred_region
      _
    $region41: #{bilstm_attention_forward.1} parent=1 // pred_fallthru
      _
    // Predicated region
    $region42: #{bilstm_attention_forward.1} parent=1 // pred_check
      _
    $region43: #{bilstm_attention_forward.1} parent=1 // pred_check_branch
      %38 = sbr.rel (0) target = $region45
    $region44: #{bilstm_attention_forward.1} parent=1 // pred_region
      _
    $region45: #{bilstm_attention_forward.1} parent=1 // pred_fallthru
      _
    %v40 = vlaneseq
    %v41 = vand.u32 %v40, 127
    %v42 = vadd.s32 %v41, 128
    %v43 = vadd.s32 %v41, 256
    %v44 = vadd.s32 %v41, 384
    %vm45 = vcmp.lt.s32.totalorder %v41, 0
    %v46 = vsub.s32 0, %v41
    %v47 = vsel %vm45, %v46, %v41
    %v48 = vshrl.u32 %v47, 7
    %v49 = vand.u32 %v47, 127
    %v50 = vsub.s32 0, %v49
    %v51 = vsel %vm45, %v50, %v49
    %vm52 = vcmp.lt.s32.totalorder %v42, 0
    %v53 = vsub.s32 0, %v42
    %v54 = vsel %vm52, %v53, %v42
    %v55 = vshrl.u32 %v54, 7
    %v56 = vand.u32 %v54, 127
    %v57 = vsub.s32 0, %v56
    %v58 = vsel %vm52, %v57, %v56
    %vm59 = vcmp.lt.s32.totalorder %v43, 0
    %v60 = vsub.s32 0, %v43
    %v61 = vsel %vm59, %v60, %v43
    %v62 = vshrl.u32 %v61, 7
    %v63 = vand.u32 %v61, 127
    %v64 = vsub.s32 0, %v63
    %v65 = vsel %vm59, %v64, %v63
    %vm66 = vcmp.lt.s32.totalorder %v44, 0
    %v67 = vsub.s32 0, %v44
    %v68 = vsel %vm66, %v67, %v44
    %v69 = vshrl.u32 %v68, 7
    %v70 = vand.u32 %v68, 127
    %v71 = vsub.s32 0, %v70
    %v72 = vsel %vm66, %v71, %v70
    %vm73 = vcmp.ne.s32.totalorder %v51, 0
    %vm74 = vcmp.ne.s32.totalorder %v58, 0
    %vm75 = vcmp.ne.s32.totalorder %v65, 0
    %vm76 = vcmp.ne.s32.totalorder %v72, 0
    %vm77 = vcmp.lt.s32.totalorder %v51, 0
    %vm78 = vcmp.lt.s32.totalorder %v58, 0
    %vm79 = vcmp.lt.s32.totalorder %v65, 0
    %vm80 = vcmp.lt.s32.totalorder %v72, 0
    %vm81 = vmand %vm77, %vm73
    %vm82 = vmand %vm78, %vm74
    %vm83 = vmand %vm79, %vm75
    %vm84 = vmand %vm80, %vm76
    %v85 = vadd.s32 %v51, 128
    %v86 = vadd.s32 %v58, 128
    %v87 = vadd.s32 %v65, 128
    %v88 = vadd.s32 %v72, 128
    %v89 = vsel %vm81, %v85, %v51
    %v90 = vsel %vm82, %v86, %v58
    %v91 = vsel %vm83, %v87, %v65
    %v92 = vsel %vm84, %v88, %v72
    %vm93 = vcmp.lt.s32.totalorder %v89, 64
    %vm94 = vcmp.lt.s32.totalorder %v90, 64
    %vm95 = vcmp.lt.s32.totalorder %v91, 64
    %vm96 = vcmp.lt.s32.totalorder %v92, 64
    %vm97 = vcmp.lt.s32.totalorder %v41, 64
    %v98 = vld [vmem:[%s0] sm:$0xf]
    %v99 = vld [vmem:[%s0 + $0x4] sm:$0xf]
    %v100 = vld [vmem:[%s0 + $0x8] sm:$0xf]
    %v101 = vld [vmem:[%s0 + $0xc] sm:$0xf]
    %v102 = vld [vmem:[%s0 + $0x10] sm:$0xf]
    %v103 = vld [vmem:[%s0 + $0x14] sm:$0xf]
    %v104 = vld [vmem:[%s0 + $0x18] sm:$0xf]
    %v105 = vld [vmem:[%s0 + $0x1c] sm:$0xf]
    %v106 = vld [vmem:[%s1] sm:$0xff]
    %v107 = vld [vmem:[%s1 + $0x8] sm:$0xff]
    %v108 = vld [vmem:[%s1 + $0x10] sm:$0xff]
    %v109 = vld [vmem:[%s1 + $0x18] sm:$0xff]
    %v110 = vld [vmem:[%s1 + $0x20] sm:$0xff]
    %v111 = vld [vmem:[%s1 + $0x28] sm:$0xff]
    %v112 = vld [vmem:[%s1 + $0x30] sm:$0xff]
    %v113 = vld [vmem:[%s1 + $0x38] sm:$0xff]
    %v114 = vld [vmem:[%s3] sm:$0xf]
    %v116 = vlaneseq
    %v117 = vshrl.u32 %v116, 7
    %v118 = vsub.s32 0, %v117
    %v119 = vrot.slane %v114, %v118
    %v120 = vlaneseq
    %v121 = vshrl.u32 %v120, 7
    %v122 = vsub.s32 1, %v121
    %v123 = vrot.slane %v114, %v122
    %v124 = vlaneseq
    %v125 = vshrl.u32 %v124, 7
    %v126 = vsub.s32 2, %v125
    %v127 = vrot.slane %v114, %v126
    %v128 = vlaneseq
    %v129 = vshrl.u32 %v128, 7
    %v130 = vsub.s32 3, %v129
    %v131 = vrot.slane %v114, %v130
    %v144 = vunpack.c.l.b16 %v98
    %v145 = vunpack.c.l.b16 %v99
    %v146 = vunpack.c.l.b16 %v100
    %v147 = vunpack.c.l.b16 %v101
    %v148 = vunpack.c.l.b16 %v102
    %v149 = vunpack.c.l.b16 %v103
    %v150 = vunpack.c.l.b16 %v104
    %v151 = vunpack.c.l.b16 %v105
    %v152 = vpack.c.b16 %v145, %v144
    %v153 = vpack.c.b16 %v147, %v146
    %v154 = vpack.c.b16 %v149, %v148
    %v155 = vpack.c.b16 %v151, %v150
    %v164 = vunpack.c.l.b16 %v106
    %v165 = vunpack.c.h.b16 %v106
    %v166 = vunpack.c.l.b16 %v107
    %v167 = vunpack.c.h.b16 %v107
    %v168 = vunpack.c.l.b16 %v108
    %v169 = vunpack.c.h.b16 %v108
    %v170 = vunpack.c.l.b16 %v109
    %v171 = vunpack.c.h.b16 %v109
    %v172 = vunpack.c.l.b16 %v110
    %v173 = vunpack.c.h.b16 %v110
    %v174 = vunpack.c.l.b16 %v111
    %v175 = vunpack.c.h.b16 %v111
    %v176 = vunpack.c.l.b16 %v112
    %v177 = vunpack.c.h.b16 %v112
    %v178 = vunpack.c.l.b16 %v113
    %v179 = vunpack.c.h.b16 %v113
    %v180 = vpack.c.b16 %v168, %v164
    %v181 = vpack.c.b16 %v169, %v165
    %v182 = vpack.c.b16 %v170, %v166
    %v183 = vpack.c.b16 %v171, %v167
    %v184 = vpack.c.b16 %v176, %v172
    %v185 = vpack.c.b16 %v177, %v173
    %v186 = vpack.c.b16 %v178, %v174
    %v187 = vpack.c.b16 %v179, %v175
    %vm196 = vcmask 261120
    %v198 = vsel %vm196, %v152, 0
    %v201 = vsel %vm196, %v153, 0
    %v204 = vsel %vm196, %v154, 0
    %v207 = vsel %vm196, %v155, 0
    %209 = vmatprep.subr.bf16.mxu0 %v181
    %210 = vmatpush1.bf16.msra.mxu0 %v180
    %211 = vmatprep.subr.bf16.mxu0 %v185
    %212 = vmatpush1.bf16.msra.mxu0 %v184
    %213 = vmatprep.subr.bf16.mxu0 0
    %214 = vmatpush1.bf16.msra.mxu0 0
    %215 = vmatprep.subr.bf16.mxu0 0
    %216 = vmatpush1.bf16.msra.mxu0 0
    %217 = vmatprep.subr.bf16.mxu0 0
    %218 = vmatpush1.bf16.msra.mxu0 0
    %219 = vmatprep.subr.bf16.mxu0 0
    %220 = vmatpush1.bf16.msra.mxu0 0
    %221 = vmatprep.subr.bf16.mxu0 0
    %222 = vmatpush1.bf16.msra.mxu0 0
    %223 = vmatprep.subr.bf16.mxu0 0
    %224 = vmatpush1.bf16.msra.mxu0 0
    %225 = vmatprep.subr.bf16.mxu0 0
    %226 = vmatpush1.bf16.msra.mxu0 0
    %227 = vmatprep.subr.bf16.mxu0 0
    %228 = vmatpush1.bf16.msra.mxu0 0
    %229 = vmatprep.subr.bf16.mxu0 0
    %230 = vmatpush1.bf16.msra.mxu0 0
    %231 = vmatprep.subr.bf16.mxu0 0
    %232 = vmatpush1.bf16.msra.mxu0 0
    %233 = vmatprep.subr.bf16.mxu0 0
    %234 = vmatpush1.bf16.msra.mxu0 0
    %235 = vmatprep.subr.bf16.mxu0 0
    %236 = vmatpush1.bf16.msra.mxu0 0
    %237 = vmatprep.subr.bf16.mxu0 0
    %238 = vmatpush1.bf16.msra.mxu0 0
    %239 = vmatprep.subr.bf16.mxu0 0
    %240 = vmatpush1.bf16.msra.mxu0 0
    %241 = vmatprep.mubr.bf16.mxu0 0
    %242 = vmatmul.mubr.bf16.gmra.mrb[0].mxu0 %v198
    %v243 = vpop.f32.mrb[0].mxu0
    %v244 = vadd.f32 %v119, %v243
    %v245 = vpop.f32.mrb[0].mxu0
    %v246 = vadd.f32 %v123, %v245
    %v247 = vpop.f32.mrb[0].mxu0
    %v248 = vadd.f32 %v119, %v247
    %v249 = vpop.f32.mrb[0].mxu0
    %v250 = vadd.f32 %v123, %v249
    %251 = vmatprep.mubr.bf16.mxu0 0
    %252 = vmatmul.mubr.bf16.gmra.mrb[0].mxu0 %v201
    %v253 = vpop.f32.mrb[0].mxu0
    %v254 = vadd.f32 %v119, %v253
    %v255 = vpop.f32.mrb[0].mxu0
    %v256 = vadd.f32 %v123, %v255
    %v257 = vpop.f32.mrb[0].mxu0
    %v258 = vadd.f32 %v119, %v257
    %v259 = vpop.f32.mrb[0].mxu0
    %v260 = vadd.f32 %v123, %v259
    %261 = vmatprep.mubr.bf16.mxu0 0
    %262 = vmatmul.mubr.bf16.gmra.mrb[0].mxu0 %v204
    %v263 = vpop.f32.mrb[0].mxu0
    %v264 = vadd.f32 %v119, %v263
    %v265 = vpop.f32.mrb[0].mxu0
    %v266 = vadd.f32 %v123, %v265
    %v267 = vpop.f32.mrb[0].mxu0
    %v268 = vadd.f32 %v119, %v267
    %v269 = vpop.f32.mrb[0].mxu0
    %v270 = vadd.f32 %v123, %v269
    %271 = vmatprep.mubr.bf16.mxu0 0
    %272 = vmatmul.mubr.bf16.gmra.mrb[0].mxu0 %v207
    %v273 = vpop.f32.mrb[0].mxu0
    %v274 = vadd.f32 %v119, %v273
    %v275 = vpop.f32.mrb[0].mxu0
    %v276 = vadd.f32 %v123, %v275
    %v277 = vpop.f32.mrb[0].mxu0
    %v278 = vadd.f32 %v119, %v277
    %v279 = vpop.f32.mrb[0].mxu0
    %v280 = vadd.f32 %v123, %v279
    %281 = vdwg.mxu0
    %282 = vmatprep.subr.bf16.mxu0 %v183
    %283 = vmatpush1.bf16.msra.mxu0 %v182
    %284 = vmatprep.subr.bf16.mxu0 %v187
    %285 = vmatpush1.bf16.msra.mxu0 %v186
    %286 = vmatprep.subr.bf16.mxu0 0
    %287 = vmatpush1.bf16.msra.mxu0 0
    %288 = vmatprep.subr.bf16.mxu0 0
    %289 = vmatpush1.bf16.msra.mxu0 0
    %290 = vmatprep.subr.bf16.mxu0 0
    %291 = vmatpush1.bf16.msra.mxu0 0
    %292 = vmatprep.subr.bf16.mxu0 0
    %293 = vmatpush1.bf16.msra.mxu0 0
    %294 = vmatprep.subr.bf16.mxu0 0
    %295 = vmatpush1.bf16.msra.mxu0 0
    %296 = vmatprep.subr.bf16.mxu0 0
    %297 = vmatpush1.bf16.msra.mxu0 0
    %298 = vmatprep.subr.bf16.mxu0 0
    %299 = vmatpush1.bf16.msra.mxu0 0
    %300 = vmatprep.subr.bf16.mxu0 0
    %301 = vmatpush1.bf16.msra.mxu0 0
    %302 = vmatprep.subr.bf16.mxu0 0
    %303 = vmatpush1.bf16.msra.mxu0 0
    %304 = vmatprep.subr.bf16.mxu0 0
    %305 = vmatpush1.bf16.msra.mxu0 0
    %306 = vmatprep.subr.bf16.mxu0 0
    %307 = vmatpush1.bf16.msra.mxu0 0
    %308 = vmatprep.subr.bf16.mxu0 0
    %309 = vmatpush1.bf16.msra.mxu0 0
    %310 = vmatprep.subr.bf16.mxu0 0
    %311 = vmatpush1.bf16.msra.mxu0 0
    %312 = vmatprep.subr.bf16.mxu0 0
    %313 = vmatpush1.bf16.msra.mxu0 0
    %314 = vmatprep.mubr.bf16.mxu0 0
    %315 = vmatmul.mubr.bf16.gmra.mrb[0].mxu0 %v198
    %v316 = vpop.f32.mrb[0].mxu0
    %v317 = vadd.f32 %v127, %v316
    %v318 = vpop.f32.mrb[0].mxu0
    %v319 = vadd.f32 %v131, %v318
    %v320 = vpop.f32.mrb[0].mxu0
    %v321 = vadd.f32 %v127, %v320
    %v322 = vpop.f32.mrb[0].mxu0
    %v323 = vadd.f32 %v131, %v322
    %324 = vmatprep.mubr.bf16.mxu0 0
    %325 = vmatmul.mubr.bf16.gmra.mrb[0].mxu0 %v201
    %v326 = vpop.f32.mrb[0].mxu0
    %v327 = vadd.f32 %v127, %v326
    %v328 = vpop.f32.mrb[0].mxu0
    %v329 = vadd.f32 %v131, %v328
    %v330 = vpop.f32.mrb[0].mxu0
    %v331 = vadd.f32 %v127, %v330
    %v332 = vpop.f32.mrb[0].mxu0
    %v333 = vadd.f32 %v131, %v332
    %334 = vmatprep.mubr.bf16.mxu0 0
    %335 = vmatmul.mubr.bf16.gmra.mrb[0].mxu0 %v204
    %v336 = vpop.f32.mrb[0].mxu0
    %v337 = vadd.f32 %v127, %v336
    %v338 = vpop.f32.mrb[0].mxu0
    %v339 = vadd.f32 %v131, %v338
    %v340 = vpop.f32.mrb[0].mxu0
    %v341 = vadd.f32 %v127, %v340
    %v342 = vpop.f32.mrb[0].mxu0
    %v343 = vadd.f32 %v131, %v342
    %344 = vmatprep.mubr.bf16.mxu0 0
    %345 = vmatmul.mubr.bf16.gmra.mrb[0].mxu0 %v207
    %v346 = vpop.f32.mrb[0].mxu0
    %v347 = vadd.f32 %v127, %v346
    %v348 = vpop.f32.mrb[0].mxu0
    %v349 = vadd.f32 %v131, %v348
    %v350 = vpop.f32.mrb[0].mxu0
    %v351 = vadd.f32 %v127, %v350
    %v352 = vpop.f32.mrb[0].mxu0
    %v353 = vadd.f32 %v131, %v352
    %354 = vdwg.mxu0
    %v355 = vsel %vm93, %v244, %v278
    %v356 = vsel %vm94, %v246, %v280
    %v357 = vsel %vm95, %v317, %v351
    %v358 = vsel %vm96, %v319, %v353
    %359 = vst [vmem:[#allocation2] sm:$0xff] %v355
    %360 = vst [vmem:[#allocation2 + $0x8] sm:$0xff] %v356
    %361 = vst [vmem:[#allocation2 + $0x10] sm:$0xff] %v357
    %362 = vst [vmem:[#allocation2 + $0x18] sm:$0xff] %v358
    %v363 = vsel %vm93, %v248, %v274
    %v364 = vsel %vm94, %v250, %v276
    %v365 = vsel %vm95, %v321, %v347
    %v366 = vsel %vm96, %v323, %v349
    %367 = vst [vmem:[#allocation2 + $0x20] sm:$0xff] %v363
    %368 = vst [vmem:[#allocation2 + $0x28] sm:$0xff] %v364
    %369 = vst [vmem:[#allocation2 + $0x30] sm:$0xff] %v365
    %370 = vst [vmem:[#allocation2 + $0x38] sm:$0xff] %v366
    %v371 = vsel %vm93, %v254, %v268
    %v372 = vsel %vm94, %v256, %v270
    %v373 = vsel %vm95, %v327, %v341
    %v374 = vsel %vm96, %v329, %v343
    %375 = vst [vmem:[#allocation2 + $0x40] sm:$0xff] %v371
    %376 = vst [vmem:[#allocation2 + $0x48] sm:$0xff] %v372
    %377 = vst [vmem:[#allocation2 + $0x50] sm:$0xff] %v373
    %378 = vst [vmem:[#allocation2 + $0x58] sm:$0xff] %v374
    %v379 = vsel %vm93, %v258, %v264
    %v380 = vsel %vm94, %v260, %v266
    %v381 = vsel %vm95, %v331, %v337
    %v382 = vsel %vm96, %v333, %v339
    %383 = vst [vmem:[#allocation2 + $0x60] sm:$0xff] %v379
    %384 = vst [vmem:[#allocation2 + $0x68] sm:$0xff] %v380
    %385 = vst [vmem:[#allocation2 + $0x70] sm:$0xff] %v381
    %386 = vst [vmem:[#allocation2 + $0x78] sm:$0xff] %v382
    %v387 = vsel %vm93, %v264, %v258
    %v388 = vsel %vm94, %v266, %v260
    %v389 = vsel %vm95, %v337, %v331
    %v390 = vsel %vm96, %v339, %v333
    %391 = vst [vmem:[#allocation2 + $0x80] sm:$0xff] %v387
    %392 = vst [vmem:[#allocation2 + $0x88] sm:$0xff] %v388
    %393 = vst [vmem:[#allocation2 + $0x90] sm:$0xff] %v389
    %394 = vst [vmem:[#allocation2 + $0x98] sm:$0xff] %v390
    %v395 = vsel %vm93, %v268, %v254
    %v396 = vsel %vm94, %v270, %v256
    %v397 = vsel %vm95, %v341, %v327
    %v398 = vsel %vm96, %v343, %v329
    %399 = vst [vmem:[#allocation2 + $0xa0] sm:$0xff] %v395
    %400 = vst [vmem:[#allocation2 + $0xa8] sm:$0xff] %v396
    %401 = vst [vmem:[#allocation2 + $0xb0] sm:$0xff] %v397
    %402 = vst [vmem:[#allocation2 + $0xb8] sm:$0xff] %v398
    %v403 = vsel %vm93, %v274, %v248
    %v404 = vsel %vm94, %v276, %v250
    %v405 = vsel %vm95, %v347, %v321
    %v406 = vsel %vm96, %v349, %v323
    %407 = vst [vmem:[#allocation2 + $0xc0] sm:$0xff] %v403
    %408 = vst [vmem:[#allocation2 + $0xc8] sm:$0xff] %v404
    %409 = vst [vmem:[#allocation2 + $0xd0] sm:$0xff] %v405
    %410 = vst [vmem:[#allocation2 + $0xd8] sm:$0xff] %v406
    %v411 = vsel %vm93, %v278, %v244
    %v412 = vsel %vm94, %v280, %v246
    %v413 = vsel %vm95, %v351, %v317
    %v414 = vsel %vm96, %v353, %v319
    %415 = vst [vmem:[#allocation2 + $0xe0] sm:$0xff] %v411
    %416 = vst [vmem:[#allocation2 + $0xe8] sm:$0xff] %v412
    %417 = vst [vmem:[#allocation2 + $0xf0] sm:$0xff] %v413
    %418 = vst [vmem:[#allocation2 + $0xf8] sm:$0xff] %v414
    %v419 = vld [vmem:[%s2] sm:$0xff]
    %v420 = vld [vmem:[%s2 + $0x8] sm:$0xff]
    %v421 = vld [vmem:[%s2 + $0x10] sm:$0xff]
    %v422 = vld [vmem:[%s2 + $0x18] sm:$0xff]
    %v423 = vld [vmem:[%s2 + $0x20] sm:$0xff]
    %v424 = vld [vmem:[%s2 + $0x28] sm:$0xff]
    %v425 = vld [vmem:[%s2 + $0x30] sm:$0xff]
    %v426 = vld [vmem:[%s2 + $0x38] sm:$0xff]
    %v427 = vld [vmem:[%s2 + $0x40] sm:$0xff]
    %v428 = vld [vmem:[%s2 + $0x48] sm:$0xff]
    %v429 = vld [vmem:[%s2 + $0x50] sm:$0xff]
    %v430 = vld [vmem:[%s2 + $0x58] sm:$0xff]
    %v431 = vld [vmem:[%s2 + $0x60] sm:$0xff]
    %v432 = vld [vmem:[%s2 + $0x68] sm:$0xff]
    %v433 = vld [vmem:[%s2 + $0x70] sm:$0xff]
    %v434 = vld [vmem:[%s2 + $0x78] sm:$0xff]
    %v435 = vld [vmem:[%s2 + $0x80] sm:$0xff]
    %v436 = vld [vmem:[%s2 + $0x88] sm:$0xff]
    %v437 = vld [vmem:[%s2 + $0x90] sm:$0xff]
    %v438 = vld [vmem:[%s2 + $0x98] sm:$0xff]
    %v439 = vld [vmem:[%s2 + $0xa0] sm:$0xff]
    %v440 = vld [vmem:[%s2 + $0xa8] sm:$0xff]
    %v441 = vld [vmem:[%s2 + $0xb0] sm:$0xff]
    %v442 = vld [vmem:[%s2 + $0xb8] sm:$0xff]
    %v443 = vld [vmem:[%s2 + $0xc0] sm:$0xff]
    %v444 = vld [vmem:[%s2 + $0xc8] sm:$0xff]
    %v445 = vld [vmem:[%s2 + $0xd0] sm:$0xff]
    %v446 = vld [vmem:[%s2 + $0xd8] sm:$0xff]
    %v447 = vld [vmem:[%s2 + $0xe0] sm:$0xff]
    %v448 = vld [vmem:[%s2 + $0xe8] sm:$0xff]
    %v449 = vld [vmem:[%s2 + $0xf0] sm:$0xff]
    %v450 = vld [vmem:[%s2 + $0xf8] sm:$0xff]
    %v451 = vld [vmem:[#allocation2] sm:$0xff]
    %v452 = vld [vmem:[#allocation2 + $0x8] sm:$0xff]
    %v453 = vld [vmem:[#allocation2 + $0x10] sm:$0xff]
    %v454 = vld [vmem:[#allocation2 + $0x18] sm:$0xff]
    %v487 = vunpack.c.l.b16 %v419
    %v488 = vunpack.c.h.b16 %v419
    %v489 = vunpack.c.l.b16 %v420
    %v490 = vunpack.c.h.b16 %v420
    %v491 = vunpack.c.l.b16 %v421
    %v492 = vunpack.c.h.b16 %v421
    %v493 = vunpack.c.l.b16 %v422
    %v494 = vunpack.c.h.b16 %v422
    %v495 = vunpack.c.l.b16 %v423
    %v496 = vunpack.c.h.b16 %v423
    %v497 = vunpack.c.l.b16 %v424
    %v498 = vunpack.c.h.b16 %v424
    %v499 = vunpack.c.l.b16 %v425
    %v500 = vunpack.c.h.b16 %v425
    %v501 = vunpack.c.l.b16 %v426
    %v502 = vunpack.c.h.b16 %v426
    %v503 = vunpack.c.l.b16 %v427
    %v504 = vunpack.c.h.b16 %v427
    %v505 = vunpack.c.l.b16 %v428
    %v506 = vunpack.c.h.b16 %v428
    %v507 = vunpack.c.l.b16 %v429
    %v508 = vunpack.c.h.b16 %v429
    %v509 = vunpack.c.l.b16 %v430
    %v510 = vunpack.c.h.b16 %v430
    %v511 = vunpack.c.l.b16 %v431
    %v512 = vunpack.c.h.b16 %v431
    %v513 = vunpack.c.l.b16 %v432
    %v514 = vunpack.c.h.b16 %v432
    %v515 = vunpack.c.l.b16 %v433
    %v516 = vunpack.c.h.b16 %v433
    %v517 = vunpack.c.l.b16 %v434
    %v518 = vunpack.c.h.b16 %v434
    %v519 = vunpack.c.l.b16 %v435
    %v520 = vunpack.c.h.b16 %v435
    %v521 = vunpack.c.l.b16 %v436
    %v522 = vunpack.c.h.b16 %v436
    %v523 = vunpack.c.l.b16 %v437
    %v524 = vunpack.c.h.b16 %v437
    %v525 = vunpack.c.l.b16 %v438
    %v526 = vunpack.c.h.b16 %v438
    %v527 = vunpack.c.l.b16 %v439
    %v528 = vunpack.c.h.b16 %v439
    %v529 = vunpack.c.l.b16 %v440
    %v530 = vunpack.c.h.b16 %v440
    %v531 = vunpack.c.l.b16 %v441
    %v532 = vunpack.c.h.b16 %v441
    %v533 = vunpack.c.l.b16 %v442
    %v534 = vunpack.c.h.b16 %v442
    %v535 = vunpack.c.l.b16 %v443
    %v536 = vunpack.c.h.b16 %v443
    %v537 = vunpack.c.l.b16 %v444
    %v538 = vunpack.c.h.b16 %v444
    %v539 = vunpack.c.l.b16 %v445
    %v540 = vunpack.c.h.b16 %v445
    %v541 = vunpack.c.l.b16 %v446
    %v542 = vunpack.c.h.b16 %v446
    %v543 = vunpack.c.l.b16 %v447
    %v544 = vunpack.c.h.b16 %v447
    %v545 = vunpack.c.l.b16 %v448
    %v546 = vunpack.c.h.b16 %v448
    %v547 = vunpack.c.l.b16 %v449
    %v548 = vunpack.c.h.b16 %v449
    %v549 = vunpack.c.l.b16 %v450
    %v550 = vunpack.c.h.b16 %v450
    %v551 = vpack.c.b16 %v491, %v487
    %v552 = vpack.c.b16 %v492, %v488
    %v553 = vpack.c.b16 %v493, %v489
    %v554 = vpack.c.b16 %v494, %v490
    %v555 = vpack.c.b16 %v499, %v495
    %v556 = vpack.c.b16 %v500, %v496
    %v557 = vpack.c.b16 %v501, %v497
    %v558 = vpack.c.b16 %v502, %v498
    %v559 = vpack.c.b16 %v507, %v503
    %v560 = vpack.c.b16 %v508, %v504
    %v561 = vpack.c.b16 %v509, %v505
    %v562 = vpack.c.b16 %v510, %v506
    %v563 = vpack.c.b16 %v515, %v511
    %v564 = vpack.c.b16 %v516, %v512
    %v565 = vpack.c.b16 %v517, %v513
    %v566 = vpack.c.b16 %v518, %v514
    %v567 = vpack.c.b16 %v523, %v519
    %v568 = vpack.c.b16 %v524, %v520
    %v569 = vpack.c.b16 %v525, %v521
    %v570 = vpack.c.b16 %v526, %v522
    %v571 = vpack.c.b16 %v531, %v527
    %v572 = vpack.c.b16 %v532, %v528
    %v573 = vpack.c.b16 %v533, %v529
    %v574 = vpack.c.b16 %v534, %v530
    %v575 = vpack.c.b16 %v539, %v535
    %v576 = vpack.c.b16 %v540, %v536
    %v577 = vpack.c.b16 %v541, %v537
    %v578 = vpack.c.b16 %v542, %v538
    %v579 = vpack.c.b16 %v547, %v543
    %v580 = vpack.c.b16 %v548, %v544
    %v581 = vpack.c.b16 %v549, %v545
    %v582 = vpack.c.b16 %v550, %v546
    %615 = vmatprep.subr.bf16.mxu0 %v552
    %616 = vmatpush1.bf16.msra.mxu0 %v551
    %617 = vmatprep.subr.bf16.mxu0 %v556
    %618 = vmatpush1.bf16.msra.mxu0 %v555
    %619 = vmatprep.subr.bf16.mxu0 %v560
    %620 = vmatpush1.bf16.msra.mxu0 %v559
    %621 = vmatprep.subr.bf16.mxu0 %v564
    %622 = vmatpush1.bf16.msra.mxu0 %v563
    %623 = vmatprep.subr.bf16.mxu0 %v568
    %624 = vmatpush1.bf16.msra.mxu0 %v567
    %625 = vmatprep.subr.bf16.mxu0 %v572
    %626 = vmatpush1.bf16.msra.mxu0 %v571
    %627 = vmatprep.subr.bf16.mxu0 %v576
    %628 = vmatpush1.bf16.msra.mxu0 %v575
    %629 = vmatprep.subr.bf16.mxu0 %v580
    %630 = vmatpush1.bf16.msra.mxu0 %v579
    %631 = vmatprep.subr.bf16.mxu0 0
    %632 = vmatpush1.bf16.msra.mxu0 0
    %633 = vmatprep.subr.bf16.mxu0 0
    %634 = vmatpush1.bf16.msra.mxu0 0
    %635 = vmatprep.subr.bf16.mxu0 0
    %636 = vmatpush1.bf16.msra.mxu0 0
    %637 = vmatprep.subr.bf16.mxu0 0
    %638 = vmatpush1.bf16.msra.mxu0 0
    %639 = vmatprep.subr.bf16.mxu0 0
    %640 = vmatpush1.bf16.msra.mxu0 0
    %641 = vmatprep.subr.bf16.mxu0 0
    %642 = vmatpush1.bf16.msra.mxu0 0
    %643 = vmatprep.subr.bf16.mxu0 0
    %644 = vmatpush1.bf16.msra.mxu0 0
    %645 = vmatprep.subr.bf16.mxu0 0
    %646 = vmatpush1.bf16.msra.mxu0 0
    %647 = vmatprep.mubr.bf16.mxu0 0
    %648 = vmatmul.mubr.bf16.gmra.mrb[0].mxu0 0
    %v649 = vpop.f32.mrb[0].mxu0
    %v650 = vadd.f32 0.0, %v649
    %v651 = vpop.f32.mrb[0].mxu0
    %v652 = vadd.f32 0.0, %v651
    %v653 = vpop.f32.mrb[0].mxu0
    %v654 = vpop.f32.mrb[0].mxu0
    %655 = vdwg.mxu0
    %656 = vmatprep.subr.bf16.mxu0 %v554
    %657 = vmatpush1.bf16.msra.mxu0 %v553
    %658 = vmatprep.subr.bf16.mxu0 %v558
    %659 = vmatpush1.bf16.msra.mxu0 %v557
    %660 = vmatprep.subr.bf16.mxu0 %v562
    %661 = vmatpush1.bf16.msra.mxu0 %v561
    %662 = vmatprep.subr.bf16.mxu0 %v566
    %663 = vmatpush1.bf16.msra.mxu0 %v565
    %664 = vmatprep.subr.bf16.mxu0 %v570
    %665 = vmatpush1.bf16.msra.mxu0 %v569
    %666 = vmatprep.subr.bf16.mxu0 %v574
    %667 = vmatpush1.bf16.msra.mxu0 %v573
    %668 = vmatprep.subr.bf16.mxu0 %v578
    %669 = vmatpush1.bf16.msra.mxu0 %v577
    %670 = vmatprep.subr.bf16.mxu0 %v582
    %671 = vmatpush1.bf16.msra.mxu0 %v581
    %672 = vmatprep.subr.bf16.mxu0 0
    %673 = vmatpush1.bf16.msra.mxu0 0
    %674 = vmatprep.subr.bf16.mxu0 0
    %675 = vmatpush1.bf16.msra.mxu0 0
    %676 = vmatprep.subr.bf16.mxu0 0
    %677 = vmatpush1.bf16.msra.mxu0 0
    %678 = vmatprep.subr.bf16.mxu0 0
    %679 = vmatpush1.bf16.msra.mxu0 0
    %680 = vmatprep.subr.bf16.mxu0 0
    %681 = vmatpush1.bf16.msra.mxu0 0
    %682 = vmatprep.subr.bf16.mxu0 0
    %683 = vmatpush1.bf16.msra.mxu0 0
    %684 = vmatprep.subr.bf16.mxu0 0
    %685 = vmatpush1.bf16.msra.mxu0 0
    %686 = vmatprep.subr.bf16.mxu0 0
    %687 = vmatpush1.bf16.msra.mxu0 0
    %688 = vmatprep.mubr.bf16.mxu0 0
    %689 = vmatmul.mubr.bf16.gmra.mrb[0].mxu0 0
    %v690 = vpop.f32.mrb[0].mxu0
    %v691 = vadd.f32 0.0, %v690
    %v692 = vpop.f32.mrb[0].mxu0
    %v693 = vadd.f32 0.0, %v692
    %v694 = vpop.f32.mrb[0].mxu0
    %v695 = vpop.f32.mrb[0].mxu0
    %696 = vdwg.mxu0
    %v697 = vadd.f32 %v451, %v650
    %v698 = vadd.f32 %v452, %v652
    %v699 = vadd.f32 %v453, %v691
    %v700 = vadd.f32 %v454, %v693
    %v701 = vxor.u32 %v697, 2147483648
    %v702 = vmul.f32 %v701, 1.442695
    %v703 = vpow.pop %v702
    %v704 = vadd.f32 %v703, 1.0
    %v705 = vrcp.pop %v704
    %v706 = vmul.f32 1.0, %v705
    %v707 = vxor.u32 %v698, 2147483648
    %v708 = vmul.f32 %v707, 1.442695
    %v709 = vpow.pop %v708
    %v710 = vadd.f32 %v709, 1.0
    %v711 = vrcp.pop %v710
    %v712 = vmul.f32 1.0, %v711
    %v713 = vtanh.pop %v699
    %v714 = vxor.u32 %v700, 2147483648
    %v715 = vmul.f32 %v714, 1.442695
    %v716 = vpow.pop %v715
    %v717 = vadd.f32 %v716, 1.0
    %v718 = vrcp.pop %v717
    %v719 = vmul.f32 1.0, %v718
    %v720 = vmul.f32 %v712, 0.0
    %v721 = vmul.f32 %v706, %v713
    %v722 = vadd.f32 %v720, %v721
    %v723 = vtanh.pop %v722
    %v724 = vmul.f32 %v719, %v723
    %725 = vst [vmem:[#allocation3] sm:$0xff] %v724
    %v726 = vld [vmem:[#allocation2 + $0x20] sm:$0xff]
    %v727 = vld [vmem:[#allocation2 + $0x28] sm:$0xff]
    %v728 = vld [vmem:[#allocation2 + $0x30] sm:$0xff]
    %v729 = vld [vmem:[#allocation2 + $0x38] sm:$0xff]
    %v730 = vpack.c.bf16 %v724, %v724
    %731 = vmatprep.subr.bf16.mxu0 %v552
    %732 = vmatpush1.bf16.msra.mxu0 %v551
    %733 = vmatprep.subr.bf16.mxu0 %v556
    %734 = vmatpush1.bf16.msra.mxu0 %v555
    %735 = vmatprep.subr.bf16.mxu0 %v560
    %736 = vmatpush1.bf16.msra.mxu0 %v559
    %737 = vmatprep.subr.bf16.mxu0 %v564
    %738 = vmatpush1.bf16.msra.mxu0 %v563
    %739 = vmatprep.subr.bf16.mxu0 %v568
    %740 = vmatpush1.bf16.msra.mxu0 %v567
    %741 = vmatprep.subr.bf16.mxu0 %v572
    %742 = vmatpush1.bf16.msra.mxu0 %v571
    %743 = vmatprep.subr.bf16.mxu0 %v576
    %744 = vmatpush1.bf16.msra.mxu0 %v575
    %745 = vmatprep.subr.bf16.mxu0 %v580
    %746 = vmatpush1.bf16.msra.mxu0 %v579
    %747 = vmatprep.subr.bf16.mxu0 0
    %748 = vmatpush1.bf16.msra.mxu0 0
    %749 = vmatprep.subr.bf16.mxu0 0
    %750 = vmatpush1.bf16.msra.mxu0 0
    %751 = vmatprep.subr.bf16.mxu0 0
    %752 = vmatpush1.bf16.msra.mxu0 0
    %753 = vmatprep.subr.bf16.mxu0 0
    %754 = vmatpush1.bf16.msra.mxu0 0
    %755 = vmatprep.subr.bf16.mxu0 0
    %756 = vmatpush1.bf16.msra.mxu0 0
    %757 = vmatprep.subr.bf16.mxu0 0
    %758 = vmatpush1.bf16.msra.mxu0 0
    %759 = vmatprep.subr.bf16.mxu0 0
    %760 = vmatpush1.bf16.msra.mxu0 0
    %761 = vmatprep.subr.bf16.mxu0 0
    %762 = vmatpush1.bf16.msra.mxu0 0
    %763 = vmatprep.mubr.bf16.mxu0 0
    %764 = vmatmul.mubr.bf16.gmra.mrb[0].mxu0 %v730
    %v765 = vpop.f32.mrb[0].mxu0
    %v766 = vadd.f32 0.0, %v765
    %v767 = vpop.f32.mrb[0].mxu0
    %v768 = vadd.f32 0.0, %v767
    %v769 = vpop.f32.mrb[0].mxu0
    %v770 = vpop.f32.mrb[0].mxu0
    %771 = vdwg.mxu0
    %772 = vmatprep.subr.bf16.mxu0 %v554
    %773 = vmatpush1.bf16.msra.mxu0 %v553
    %774 = vmatprep.subr.bf16.mxu0 %v558
    %775 = vmatpush1.bf16.msra.mxu0 %v557
    %776 = vmatprep.subr.bf16.mxu0 %v562
    %777 = vmatpush1.bf16.msra.mxu0 %v561
    %778 = vmatprep.subr.bf16.mxu0 %v566
    %779 = vmatpush1.bf16.msra.mxu0 %v565
    %780 = vmatprep.subr.bf16.mxu0 %v570
    %781 = vmatpush1.bf16.msra.mxu0 %v569
    %782 = vmatprep.subr.bf16.mxu0 %v574
    %783 = vmatpush1.bf16.msra.mxu0 %v573
    %784 = vmatprep.subr.bf16.mxu0 %v578
    %785 = vmatpush1.bf16.msra.mxu0 %v577
    %786 = vmatprep.subr.bf16.mxu0 %v582
    %787 = vmatpush1.bf16.msra.mxu0 %v581
    %788 = vmatprep.subr.bf16.mxu0 0
    %789 = vmatpush1.bf16.msra.mxu0 0
    %790 = vmatprep.subr.bf16.mxu0 0
    %791 = vmatpush1.bf16.msra.mxu0 0
    %792 = vmatprep.subr.bf16.mxu0 0
    %793 = vmatpush1.bf16.msra.mxu0 0
    %794 = vmatprep.subr.bf16.mxu0 0
    %795 = vmatpush1.bf16.msra.mxu0 0
    %796 = vmatprep.subr.bf16.mxu0 0
    %797 = vmatpush1.bf16.msra.mxu0 0
    %798 = vmatprep.subr.bf16.mxu0 0
    %799 = vmatpush1.bf16.msra.mxu0 0
    %800 = vmatprep.subr.bf16.mxu0 0
    %801 = vmatpush1.bf16.msra.mxu0 0
    %802 = vmatprep.subr.bf16.mxu0 0
    %803 = vmatpush1.bf16.msra.mxu0 0
    %804 = vmatprep.mubr.bf16.mxu0 0
    %805 = vmatmul.mubr.bf16.gmra.mrb[0].mxu0 %v730
    %v806 = vpop.f32.mrb[0].mxu0
    %v807 = vadd.f32 0.0, %v806
    %v808 = vpop.f32.mrb[0].mxu0
    %v809 = vadd.f32 0.0, %v808
    %v810 = vpop.f32.mrb[0].mxu0
    %v811 = vpop.f32.mrb[0].mxu0
    %812 = vdwg.mxu0
    %v813 = vadd.f32 %v726, %v766
    %v814 = vadd.f32 %v727, %v768
    %v815 = vadd.f32 %v728, %v807
    %v816 = vadd.f32 %v729, %v809
    %v817 = vxor.u32 %v813, 2147483648
    %v818 = vmul.f32 %v817, 1.442695
    %v819 = vpow.pop %v818
    %v820 = vadd.f32 %v819, 1.0
    %v821 = vrcp.pop %v820
    %v822 = vmul.f32 1.0, %v821
    %v823 = vxor.u32 %v814, 2147483648
    %v824 = vmul.f32 %v823, 1.442695
    %v825 = vpow.pop %v824
    %v826 = vadd.f32 %v825, 1.0
    %v827 = vrcp.pop %v826
    %v828 = vmul.f32 1.0, %v827
    %v829 = vtanh.pop %v815
    %v830 = vxor.u32 %v816, 2147483648
    %v831 = vmul.f32 %v830, 1.442695
    %v832 = vpow.pop %v831
    %v833 = vadd.f32 %v832, 1.0
    %v834 = vrcp.pop %v833
    %v835 = vmul.f32 1.0, %v834
    %v836 = vmul.f32 %v828, %v722
    %v837 = vmul.f32 %v822, %v829
    %v838 = vadd.f32 %v836, %v837
    %v839 = vtanh.pop %v838
    %v840 = vmul.f32 %v835, %v839
    %841 = vst [vmem:[#allocation3 + $0x8] sm:$0xff] %v840
    %v842 = vld [vmem:[#allocation2 + $0x40] sm:$0xff]
    %v843 = vld [vmem:[#allocation2 + $0x48] sm:$0xff]
    %v844 = vld [vmem:[#allocation2 + $0x50] sm:$0xff]
    %v845 = vld [vmem:[#allocation2 + $0x58] sm:$0xff]
    %v846 = vpack.c.bf16 %v840, %v840
    %847 = vmatprep.subr.bf16.mxu0 %v552
    %848 = vmatpush1.bf16.msra.mxu0 %v551
    %849 = vmatprep.subr.bf16.mxu0 %v556
    %850 = vmatpush1.bf16.msra.mxu0 %v555
    %851 = vmatprep.subr.bf16.mxu0 %v560
    %852 = vmatpush1.bf16.msra.mxu0 %v559
    %853 = vmatprep.subr.bf16.mxu0 %v564
    %854 = vmatpush1.bf16.msra.mxu0 %v563
    %855 = vmatprep.subr.bf16.mxu0 %v568
    %856 = vmatpush1.bf16.msra.mxu0 %v567
    %857 = vmatprep.subr.bf16.mxu0 %v572
    %858 = vmatpush1.bf16.msra.mxu0 %v571
    %859 = vmatprep.subr.bf16.mxu0 %v576
    %860 = vmatpush1.bf16.msra.mxu0 %v575
    %861 = vmatprep.subr.bf16.mxu0 %v580
    %862 = vmatpush1.bf16.msra.mxu0 %v579
    %863 = vmatprep.subr.bf16.mxu0 0
    %864 = vmatpush1.bf16.msra.mxu0 0
    %865 = vmatprep.subr.bf16.mxu0 0
    %866 = vmatpush1.bf16.msra.mxu0 0
    %867 = vmatprep.subr.bf16.mxu0 0
    %868 = vmatpush1.bf16.msra.mxu0 0
    %869 = vmatprep.subr.bf16.mxu0 0
    %870 = vmatpush1.bf16.msra.mxu0 0
    %871 = vmatprep.subr.bf16.mxu0 0
    %872 = vmatpush1.bf16.msra.mxu0 0
    %873 = vmatprep.subr.bf16.mxu0 0
    %874 = vmatpush1.bf16.msra.mxu0 0
    %875 = vmatprep.subr.bf16.mxu0 0
    %876 = vmatpush1.bf16.msra.mxu0 0
    %877 = vmatprep.subr.bf16.mxu0 0
    %878 = vmatpush1.bf16.msra.mxu0 0
    %879 = vmatprep.mubr.bf16.mxu0 0
    %880 = vmatmul.mubr.bf16.gmra.mrb[0].mxu0 %v846
    %v881 = vpop.f32.mrb[0].mxu0
    %v882 = vadd.f32 0.0, %v881
    %v883 = vpop.f32.mrb[0].mxu0
    %v884 = vadd.f32 0.0, %v883
    %v885 = vpop.f32.mrb[0].mxu0
    %v886 = vpop.f32.mrb[0].mxu0
    %887 = vdwg.mxu0
    %888 = vmatprep.subr.bf16.mxu0 %v554
    %889 = vmatpush1.bf16.msra.mxu0 %v553
    %890 = vmatprep.subr.bf16.mxu0 %v558
    %891 = vmatpush1.bf16.msra.mxu0 %v557
    %892 = vmatprep.subr.bf16.mxu0 %v562
    %893 = vmatpush1.bf16.msra.mxu0 %v561
    %894 = vmatprep.subr.bf16.mxu0 %v566
    %895 = vmatpush1.bf16.msra.mxu0 %v565
    %896 = vmatprep.subr.bf16.mxu0 %v570
    %897 = vmatpush1.bf16.msra.mxu0 %v569
    %898 = vmatprep.subr.bf16.mxu0 %v574
    %899 = vmatpush1.bf16.msra.mxu0 %v573
    %900 = vmatprep.subr.bf16.mxu0 %v578
    %901 = vmatpush1.bf16.msra.mxu0 %v577
    %902 = vmatprep.subr.bf16.mxu0 %v582
    %903 = vmatpush1.bf16.msra.mxu0 %v581
    %904 = vmatprep.subr.bf16.mxu0 0
    %905 = vmatpush1.bf16.msra.mxu0 0
    %906 = vmatprep.subr.bf16.mxu0 0
    %907 = vmatpush1.bf16.msra.mxu0 0
    %908 = vmatprep.subr.bf16.mxu0 0
    %909 = vmatpush1.bf16.msra.mxu0 0
    %910 = vmatprep.subr.bf16.mxu0 0
    %911 = vmatpush1.bf16.msra.mxu0 0
    %912 = vmatprep.subr.bf16.mxu0 0
    %913 = vmatpush1.bf16.msra.mxu0 0
    %914 = vmatprep.subr.bf16.mxu0 0
    %915 = vmatpush1.bf16.msra.mxu0 0
    %916 = vmatprep.subr.bf16.mxu0 0
    %917 = vmatpush1.bf16.msra.mxu0 0
    %918 = vmatprep.subr.bf16.mxu0 0
    %919 = vmatpush1.bf16.msra.mxu0 0
    %920 = vmatprep.mubr.bf16.mxu0 0
    %921 = vmatmul.mubr.bf16.gmra.mrb[0].mxu0 %v846
    %v922 = vpop.f32.mrb[0].mxu0
    %v923 = vadd.f32 0.0, %v922
    %v924 = vpop.f32.mrb[0].mxu0
    %v925 = vadd.f32 0.0, %v924
    %v926 = vpop.f32.mrb[0].mxu0
    %v927 = vpop.f32.mrb[0].mxu0
    %928 = vdwg.mxu0
    %v929 = vadd.f32 %v842, %v882
    %v930 = vadd.f32 %v843, %v884
    %v931 = vadd.f32 %v844, %v923
    %v932 = vadd.f32 %v845, %v925
    %v933 = vxor.u32 %v929, 2147483648
    %v934 = vmul.f32 %v933, 1.442695
    %v935 = vpow.pop %v934
    %v936 = vadd.f32 %v935, 1.0
    %v937 = vrcp.pop %v936
    %v938 = vmul.f32 1.0, %v937
    %v939 = vxor.u32 %v930, 2147483648
    %v940 = vmul.f32 %v939, 1.442695
    %v941 = vpow.pop %v940
    %v942 = vadd.f32 %v941, 1.0
    %v943 = vrcp.pop %v942
    %v944 = vmul.f32 1.0, %v943
    %v945 = vtanh.pop %v931
    %v946 = vxor.u32 %v932, 2147483648
    %v947 = vmul.f32 %v946, 1.442695
    %v948 = vpow.pop %v947
    %v949 = vadd.f32 %v948, 1.0
    %v950 = vrcp.pop %v949
    %v951 = vmul.f32 1.0, %v950
    %v952 = vmul.f32 %v944, %v838
    %v953 = vmul.f32 %v938, %v945
    %v954 = vadd.f32 %v952, %v953
    %v955 = vtanh.pop %v954
    %v956 = vmul.f32 %v951, %v955
    %957 = vst [vmem:[#allocation3 + $0x10] sm:$0xff] %v956
    %v958 = vld [vmem:[#allocation2 + $0x60] sm:$0xff]
    %v959 = vld [vmem:[#allocation2 + $0x68] sm:$0xff]
    %v960 = vld [vmem:[#allocation2 + $0x70] sm:$0xff]
    %v961 = vld [vmem:[#allocation2 + $0x78] sm:$0xff]
    %v962 = vpack.c.bf16 %v956, %v956
    %963 = vmatprep.subr.bf16.mxu0 %v552
    %964 = vmatpush1.bf16.msra.mxu0 %v551
    %965 = vmatprep.subr.bf16.mxu0 %v556
    %966 = vmatpush1.bf16.msra.mxu0 %v555
    %967 = vmatprep.subr.bf16.mxu0 %v560
    %968 = vmatpush1.bf16.msra.mxu0 %v559
    %969 = vmatprep.subr.bf16.mxu0 %v564
    %970 = vmatpush1.bf16.msra.mxu0 %v563
    %971 = vmatprep.subr.bf16.mxu0 %v568
    %972 = vmatpush1.bf16.msra.mxu0 %v567
    %973 = vmatprep.subr.bf16.mxu0 %v572
    %974 = vmatpush1.bf16.msra.mxu0 %v571
    %975 = vmatprep.subr.bf16.mxu0 %v576
    %976 = vmatpush1.bf16.msra.mxu0 %v575
    %977 = vmatprep.subr.bf16.mxu0 %v580
    %978 = vmatpush1.bf16.msra.mxu0 %v579
    %979 = vmatprep.subr.bf16.mxu0 0
    %980 = vmatpush1.bf16.msra.mxu0 0
    %981 = vmatprep.subr.bf16.mxu0 0
    %982 = vmatpush1.bf16.msra.mxu0 0
    %983 = vmatprep.subr.bf16.mxu0 0
    %984 = vmatpush1.bf16.msra.mxu0 0
    %985 = vmatprep.subr.bf16.mxu0 0
    %986 = vmatpush1.bf16.msra.mxu0 0
    %987 = vmatprep.subr.bf16.mxu0 0
    %988 = vmatpush1.bf16.msra.mxu0 0
    %989 = vmatprep.subr.bf16.mxu0 0
    %990 = vmatpush1.bf16.msra.mxu0 0
    %991 = vmatprep.subr.bf16.mxu0 0
    %992 = vmatpush1.bf16.msra.mxu0 0
    %993 = vmatprep.subr.bf16.mxu0 0
    %994 = vmatpush1.bf16.msra.mxu0 0
    %995 = vmatprep.mubr.bf16.mxu0 0
    %996 = vmatmul.mubr.bf16.gmra.mrb[0].mxu0 %v962
    %v997 = vpop.f32.mrb[0].mxu0
    %v998 = vadd.f32 0.0, %v997
    %v999 = vpop.f32.mrb[0].mxu0
    %v1000 = vadd.f32 0.0, %v999
    %v1001 = vpop.f32.mrb[0].mxu0
    %v1002 = vpop.f32.mrb[0].mxu0
    %1003 = vdwg.mxu0
    %1004 = vmatprep.subr.bf16.mxu0 %v554
    %1005 = vmatpush1.bf16.msra.mxu0 %v553
    %1006 = vmatprep.subr.bf16.mxu0 %v558
    %1007 = vmatpush1.bf16.msra.mxu0 %v557
    %1008 = vmatprep.subr.bf16.mxu0 %v562
    %1009 = vmatpush1.bf16.msra.mxu0 %v561
    %1010 = vmatprep.subr.bf16.mxu0 %v566
    %1011 = vmatpush1.bf16.msra.mxu0 %v565
    %1012 = vmatprep.subr.bf16.mxu0 %v570
    %1013 = vmatpush1.bf16.msra.mxu0 %v569
    %1014 = vmatprep.subr.bf16.mxu0 %v574
    %1015 = vmatpush1.bf16.msra.mxu0 %v573
    %1016 = vmatprep.subr.bf16.mxu0 %v578
    %1017 = vmatpush1.bf16.msra.mxu0 %v577
    %1018 = vmatprep.subr.bf16.mxu0 %v582
    %1019 = vmatpush1.bf16.msra.mxu0 %v581
    %1020 = vmatprep.subr.bf16.mxu0 0
    %1021 = vmatpush1.bf16.msra.mxu0 0
    %1022 = vmatprep.subr.bf16.mxu0 0
    %1023 = vmatpush1.bf16.msra.mxu0 0
    %1024 = vmatprep.subr.bf16.mxu0 0
    %1025 = vmatpush1.bf16.msra.mxu0 0
    %1026 = vmatprep.subr.bf16.mxu0 0
    %1027 = vmatpush1.bf16.msra.mxu0 0
    %1028 = vmatprep.subr.bf16.mxu0 0
    %1029 = vmatpush1.bf16.msra.mxu0 0
    %1030 = vmatprep.subr.bf16.mxu0 0
    %1031 = vmatpush1.bf16.msra.mxu0 0
    %1032 = vmatprep.subr.bf16.mxu0 0
    %1033 = vmatpush1.bf16.msra.mxu0 0
    %1034 = vmatprep.subr.bf16.mxu0 0
    %1035 = vmatpush1.bf16.msra.mxu0 0
    %1036 = vmatprep.mubr.bf16.mxu0 0
    %1037 = vmatmul.mubr.bf16.gmra.mrb[0].mxu0 %v962
    %v1038 = vpop.f32.mrb[0].mxu0
    %v1039 = vadd.f32 0.0, %v1038
    %v1040 = vpop.f32.mrb[0].mxu0
    %v1041 = vadd.f32 0.0, %v1040
    %v1042 = vpop.f32.mrb[0].mxu0
    %v1043 = vpop.f32.mrb[0].mxu0
    %1044 = vdwg.mxu0
    %v1045 = vadd.f32 %v958, %v998
    %v1046 = vadd.f32 %v959, %v1000
    %v1047 = vadd.f32 %v960, %v1039
    %v1048 = vadd.f32 %v961, %v1041
    %v1049 = vxor.u32 %v1045, 2147483648
    %v1050 = vmul.f32 %v1049, 1.442695
    %v1051 = vpow.pop %v1050
    %v1052 = vadd.f32 %v1051, 1.0
    %v1053 = vrcp.pop %v1052
    %v1054 = vmul.f32 1.0, %v1053
    %v1055 = vxor.u32 %v1046, 2147483648
    %v1056 = vmul.f32 %v1055, 1.442695
    %v1057 = vpow.pop %v1056
    %v1058 = vadd.f32 %v1057, 1.0
    %v1059 = vrcp.pop %v1058
    %v1060 = vmul.f32 1.0, %v1059
    %v1061 = vtanh.pop %v1047
    %v1062 = vxor.u32 %v1048, 2147483648
    %v1063 = vmul.f32 %v1062, 1.442695
    %v1064 = vpow.pop %v1063
    %v1065 = vadd.f32 %v1064, 1.0
    %v1066 = vrcp.pop %v1065
    %v1067 = vmul.f32 1.0, %v1066
    %v1068 = vmul.f32 %v1060, %v954
    %v1069 = vmul.f32 %v1054, %v1061
    %v1070 = vadd.f32 %v1068, %v1069
    %v1071 = vtanh.pop %v1070
    %v1072 = vmul.f32 %v1067, %v1071
    %1073 = vst [vmem:[#allocation3 + $0x18] sm:$0xff] %v1072
    %v1074 = vld [vmem:[#allocation2 + $0x80] sm:$0xff]
    %v1075 = vld [vmem:[#allocation2 + $0x88] sm:$0xff]
    %v1076 = vld [vmem:[#allocation2 + $0x90] sm:$0xff]
    %v1077 = vld [vmem:[#allocation2 + $0x98] sm:$0xff]
    %v1078 = vpack.c.bf16 %v1072, %v1072
    %1079 = vmatprep.subr.bf16.mxu0 %v552
    %1080 = vmatpush1.bf16.msra.mxu0 %v551
    %1081 = vmatprep.subr.bf16.mxu0 %v556
    %1082 = vmatpush1.bf16.msra.mxu0 %v555
    %1083 = vmatprep.subr.bf16.mxu0 %v560
    %1084 = vmatpush1.bf16.msra.mxu0 %v559
    %1085 = vmatprep.subr.bf16.mxu0 %v564
    %1086 = vmatpush1.bf16.msra.mxu0 %v563
    %1087 = vmatprep.subr.bf16.mxu0 %v568
    %1088 = vmatpush1.bf16.msra.mxu0 %v567
    %1089 = vmatprep.subr.bf16.mxu0 %v572
    %1090 = vmatpush1.bf16.msra.mxu0 %v571
    %1091 = vmatprep.subr.bf16.mxu0 %v576
    %1092 = vmatpush1.bf16.msra.mxu0 %v575
    %1093 = vmatprep.subr.bf16.mxu0 %v580
    %1094 = vmatpush1.bf16.msra.mxu0 %v579
    %1095 = vmatprep.subr.bf16.mxu0 0
    %1096 = vmatpush1.bf16.msra.mxu0 0
    %1097 = vmatprep.subr.bf16.mxu0 0
    %1098 = vmatpush1.bf16.msra.mxu0 0
    %1099 = vmatprep.subr.bf16.mxu0 0
    %1100 = vmatpush1.bf16.msra.mxu0 0
    %1101 = vmatprep.subr.bf16.mxu0 0
    %1102 = vmatpush1.bf16.msra.mxu0 0
    %1103 = vmatprep.subr.bf16.mxu0 0
    %1104 = vmatpush1.bf16.msra.mxu0 0
    %1105 = vmatprep.subr.bf16.mxu0 0
    %1106 = vmatpush1.bf16.msra.mxu0 0
    %1107 = vmatprep.subr.bf16.mxu0 0
    %1108 = vmatpush1.bf16.msra.mxu0 0
    %1109 = vmatprep.subr.bf16.mxu0 0
    %1110 = vmatpush1.bf16.msra.mxu0 0
    %1111 = vmatprep.mubr.bf16.mxu0 0
    %1112 = vmatmul.mubr.bf16.gmra.mrb[0].mxu0 %v1078
    %v1113 = vpop.f32.mrb[0].mxu0
    %v1114 = vadd.f32 0.0, %v1113
    %v1115 = vpop.f32.mrb[0].mxu0
    %v1116 = vadd.f32 0.0, %v1115
    %v1117 = vpop.f32.mrb[0].mxu0
    %v1118 = vpop.f32.mrb[0].mxu0
    %1119 = vdwg.mxu0
    %1120 = vmatprep.subr.bf16.mxu0 %v554
    %1121 = vmatpush1.bf16.msra.mxu0 %v553
    %1122 = vmatprep.subr.bf16.mxu0 %v558
    %1123 = vmatpush1.bf16.msra.mxu0 %v557
    %1124 = vmatprep.subr.bf16.mxu0 %v562
    %1125 = vmatpush1.bf16.msra.mxu0 %v561
    %1126 = vmatprep.subr.bf16.mxu0 %v566
    %1127 = vmatpush1.bf16.msra.mxu0 %v565
    %1128 = vmatprep.subr.bf16.mxu0 %v570
    %1129 = vmatpush1.bf16.msra.mxu0 %v569
    %1130 = vmatprep.subr.bf16.mxu0 %v574
    %1131 = vmatpush1.bf16.msra.mxu0 %v573
    %1132 = vmatprep.subr.bf16.mxu0 %v578
    %1133 = vmatpush1.bf16.msra.mxu0 %v577
    %1134 = vmatprep.subr.bf16.mxu0 %v582
    %1135 = vmatpush1.bf16.msra.mxu0 %v581
    %1136 = vmatprep.subr.bf16.mxu0 0
    %1137 = vmatpush1.bf16.msra.mxu0 0
    %1138 = vmatprep.subr.bf16.mxu0 0
    %1139 = vmatpush1.bf16.msra.mxu0 0
    %1140 = vmatprep.subr.bf16.mxu0 0
    %1141 = vmatpush1.bf16.msra.mxu0 0
    %1142 = vmatprep.subr.bf16.mxu0 0
    %1143 = vmatpush1.bf16.msra.mxu0 0
    %1144 = vmatprep.subr.bf16.mxu0 0
    %1145 = vmatpush1.bf16.msra.mxu0 0
    %1146 = vmatprep.subr.bf16.mxu0 0
    %1147 = vmatpush1.bf16.msra.mxu0 0
    %1148 = vmatprep.subr.bf16.mxu0 0
    %1149 = vmatpush1.bf16.msra.mxu0 0
    %1150 = vmatprep.subr.bf16.mxu0 0
    %1151 = vmatpush1.bf16.msra.mxu0 0
    %1152 = vmatprep.mubr.bf16.mxu0 0
    %1153 = vmatmul.mubr.bf16.gmra.mrb[0].mxu0 %v1078
    %v1154 = vpop.f32.mrb[0].mxu0
    %v1155 = vadd.f32 0.0, %v1154
    %v1156 = vpop.f32.mrb[0].mxu0
    %v1157 = vadd.f32 0.0, %v1156
    %v1158 = vpop.f32.mrb[0].mxu0
    %v1159 = vpop.f32.mrb[0].mxu0
    %1160 = vdwg.mxu0
    %v1161 = vadd.f32 %v1074, %v1114
    %v1162 = vadd.f32 %v1075, %v1116
    %v1163 = vadd.f32 %v1076, %v1155
    %v1164 = vadd.f32 %v1077, %v1157
    %v1165 = vxor.u32 %v1161, 2147483648
    %v1166 = vmul.f32 %v1165, 1.442695
    %v1167 = vpow.pop %v1166
    %v1168 = vadd.f32 %v1167, 1.0
    %v1169 = vrcp.pop %v1168
    %v1170 = vmul.f32 1.0, %v1169
    %v1171 = vxor.u32 %v1162, 2147483648
    %v1172 = vmul.f32 %v1171, 1.442695
    %v1173 = vpow.pop %v1172
    %v1174 = vadd.f32 %v1173, 1.0
    %v1175 = vrcp.pop %v1174
    %v1176 = vmul.f32 1.0, %v1175
    %v1177 = vtanh.pop %v1163
    %v1178 = vxor.u32 %v1164, 2147483648
    %v1179 = vmul.f32 %v1178, 1.442695
    %v1180 = vpow.pop %v1179
    %v1181 = vadd.f32 %v1180, 1.0
    %v1182 = vrcp.pop %v1181
    %v1183 = vmul.f32 1.0, %v1182
    %v1184 = vmul.f32 %v1176, %v1070
    %v1185 = vmul.f32 %v1170, %v1177
    %v1186 = vadd.f32 %v1184, %v1185
    %v1187 = vtanh.pop %v1186
    %v1188 = vmul.f32 %v1183, %v1187
    %1189 = vst [vmem:[#allocation3 + $0x20] sm:$0xff] %v1188
    %v1190 = vld [vmem:[#allocation2 + $0xa0] sm:$0xff]
    %v1191 = vld [vmem:[#allocation2 + $0xa8] sm:$0xff]
    %v1192 = vld [vmem:[#allocation2 + $0xb0] sm:$0xff]
    %v1193 = vld [vmem:[#allocation2 + $0xb8] sm:$0xff]
    %v1194 = vpack.c.bf16 %v1188, %v1188
    %1195 = vmatprep.subr.bf16.mxu0 %v552
    %1196 = vmatpush1.bf16.msra.mxu0 %v551
    %1197 = vmatprep.subr.bf16.mxu0 %v556
    %1198 = vmatpush1.bf16.msra.mxu0 %v555
    %1199 = vmatprep.subr.bf16.mxu0 %v560
    %1200 = vmatpush1.bf16.msra.mxu0 %v559
    %1201 = vmatprep.subr.bf16.mxu0 %v564
    %1202 = vmatpush1.bf16.msra.mxu0 %v563
    %1203 = vmatprep.subr.bf16.mxu0 %v568
    %1204 = vmatpush1.bf16.msra.mxu0 %v567
    %1205 = vmatprep.subr.bf16.mxu0 %v572
    %1206 = vmatpush1.bf16.msra.mxu0 %v571
    %1207 = vmatprep.subr.bf16.mxu0 %v576
    %1208 = vmatpush1.bf16.msra.mxu0 %v575
    %1209 = vmatprep.subr.bf16.mxu0 %v580
    %1210 = vmatpush1.bf16.msra.mxu0 %v579
    %1211 = vmatprep.subr.bf16.mxu0 0
    %1212 = vmatpush1.bf16.msra.mxu0 0
    %1213 = vmatprep.subr.bf16.mxu0 0
    %1214 = vmatpush1.bf16.msra.mxu0 0
    %1215 = vmatprep.subr.bf16.mxu0 0
    %1216 = vmatpush1.bf16.msra.mxu0 0
    %1217 = vmatprep.subr.bf16.mxu0 0
    %1218 = vmatpush1.bf16.msra.mxu0 0
    %1219 = vmatprep.subr.bf16.mxu0 0
    %1220 = vmatpush1.bf16.msra.mxu0 0
    %1221 = vmatprep.subr.bf16.mxu0 0
    %1222 = vmatpush1.bf16.msra.mxu0 0
    %1223 = vmatprep.subr.bf16.mxu0 0
    %1224 = vmatpush1.bf16.msra.mxu0 0
    %1225 = vmatprep.subr.bf16.mxu0 0
    %1226 = vmatpush1.bf16.msra.mxu0 0
    %1227 = vmatprep.mubr.bf16.mxu0 0
    %1228 = vmatmul.mubr.bf16.gmra.mrb[0].mxu0 %v1194
    %v1229 = vpop.f32.mrb[0].mxu0
    %v1230 = vadd.f32 0.0, %v1229
    %v1231 = vpop.f32.mrb[0].mxu0
    %v1232 = vadd.f32 0.0, %v1231
    %v1233 = vpop.f32.mrb[0].mxu0
    %v1234 = vpop.f32.mrb[0].mxu0
    %1235 = vdwg.mxu0
    %1236 = vmatprep.subr.bf16.mxu0 %v554
    %1237 = vmatpush1.bf16.msra.mxu0 %v553
    %1238 = vmatprep.subr.bf16.mxu0 %v558
    %1239 = vmatpush1.bf16.msra.mxu0 %v557
    %1240 = vmatprep.subr.bf16.mxu0 %v562
    %1241 = vmatpush1.bf16.msra.mxu0 %v561
    %1242 = vmatprep.subr.bf16.mxu0 %v566
    %1243 = vmatpush1.bf16.msra.mxu0 %v565
    %1244 = vmatprep.subr.bf16.mxu0 %v570
    %1245 = vmatpush1.bf16.msra.mxu0 %v569
    %1246 = vmatprep.subr.bf16.mxu0 %v574
    %1247 = vmatpush1.bf16.msra.mxu0 %v573
    %1248 = vmatprep.subr.bf16.mxu0 %v578
    %1249 = vmatpush1.bf16.msra.mxu0 %v577
    %1250 = vmatprep.subr.bf16.mxu0 %v582
    %1251 = vmatpush1.bf16.msra.mxu0 %v581
    %1252 = vmatprep.subr.bf16.mxu0 0
    %1253 = vmatpush1.bf16.msra.mxu0 0
    %1254 = vmatprep.subr.bf16.mxu0 0
    %1255 = vmatpush1.bf16.msra.mxu0 0
    %1256 = vmatprep.subr.bf16.mxu0 0
    %1257 = vmatpush1.bf16.msra.mxu0 0
    %1258 = vmatprep.subr.bf16.mxu0 0
    %1259 = vmatpush1.bf16.msra.mxu0 0
    %1260 = vmatprep.subr.bf16.mxu0 0
    %1261 = vmatpush1.bf16.msra.mxu0 0
    %1262 = vmatprep.subr.bf16.mxu0 0
    %1263 = vmatpush1.bf16.msra.mxu0 0
    %1264 = vmatprep.subr.bf16.mxu0 0
    %1265 = vmatpush1.bf16.msra.mxu0 0
    %1266 = vmatprep.subr.bf16.mxu0 0
    %1267 = vmatpush1.bf16.msra.mxu0 0
    %1268 = vmatprep.mubr.bf16.mxu0 0
    %1269 = vmatmul.mubr.bf16.gmra.mrb[0].mxu0 %v1194
    %v1270 = vpop.f32.mrb[0].mxu0
    %v1271 = vadd.f32 0.0, %v1270
    %v1272 = vpop.f32.mrb[0].mxu0
    %v1273 = vadd.f32 0.0, %v1272
    %v1274 = vpop.f32.mrb[0].mxu0
    %v1275 = vpop.f32.mrb[0].mxu0
    %1276 = vdwg.mxu0
    %v1277 = vadd.f32 %v1190, %v1230
    %v1278 = vadd.f32 %v1191, %v1232
    %v1279 = vadd.f32 %v1192, %v1271
    %v1280 = vadd.f32 %v1193, %v1273
    %v1281 = vxor.u32 %v1277, 2147483648
    %v1282 = vmul.f32 %v1281, 1.442695
    %v1283 = vpow.pop %v1282
    %v1284 = vadd.f32 %v1283, 1.0
    %v1285 = vrcp.pop %v1284
    %v1286 = vmul.f32 1.0, %v1285
    %v1287 = vxor.u32 %v1278, 2147483648
    %v1288 = vmul.f32 %v1287, 1.442695
    %v1289 = vpow.pop %v1288
    %v1290 = vadd.f32 %v1289, 1.0
    %v1291 = vrcp.pop %v1290
    %v1292 = vmul.f32 1.0, %v1291
    %v1293 = vtanh.pop %v1279
    %v1294 = vxor.u32 %v1280, 2147483648
    %v1295 = vmul.f32 %v1294, 1.442695
    %v1296 = vpow.pop %v1295
    %v1297 = vadd.f32 %v1296, 1.0
    %v1298 = vrcp.pop %v1297
    %v1299 = vmul.f32 1.0, %v1298
    %v1300 = vmul.f32 %v1292, %v1186
    %v1301 = vmul.f32 %v1286, %v1293
    %v1302 = vadd.f32 %v1300, %v1301
    %v1303 = vtanh.pop %v1302
    %v1304 = vmul.f32 %v1299, %v1303
    %1305 = vst [vmem:[#allocation3 + $0x28] sm:$0xff] %v1304
    %v1306 = vld [vmem:[#allocation2 + $0xc0] sm:$0xff]
    %v1307 = vld [vmem:[#allocation2 + $0xc8] sm:$0xff]
    %v1308 = vld [vmem:[#allocation2 + $0xd0] sm:$0xff]
    %v1309 = vld [vmem:[#allocation2 + $0xd8] sm:$0xff]
    %v1310 = vpack.c.bf16 %v1304, %v1304
    %1311 = vmatprep.subr.bf16.mxu0 %v552
    %1312 = vmatpush1.bf16.msra.mxu0 %v551
    %1313 = vmatprep.subr.bf16.mxu0 %v556
    %1314 = vmatpush1.bf16.msra.mxu0 %v555
    %1315 = vmatprep.subr.bf16.mxu0 %v560
    %1316 = vmatpush1.bf16.msra.mxu0 %v559
    %1317 = vmatprep.subr.bf16.mxu0 %v564
    %1318 = vmatpush1.bf16.msra.mxu0 %v563
    %1319 = vmatprep.subr.bf16.mxu0 %v568
    %1320 = vmatpush1.bf16.msra.mxu0 %v567
    %1321 = vmatprep.subr.bf16.mxu0 %v572
    %1322 = vmatpush1.bf16.msra.mxu0 %v571
    %1323 = vmatprep.subr.bf16.mxu0 %v576
    %1324 = vmatpush1.bf16.msra.mxu0 %v575
    %1325 = vmatprep.subr.bf16.mxu0 %v580
    %1326 = vmatpush1.bf16.msra.mxu0 %v579
    %1327 = vmatprep.subr.bf16.mxu0 0
    %1328 = vmatpush1.bf16.msra.mxu0 0
    %1329 = vmatprep.subr.bf16.mxu0 0
    %1330 = vmatpush1.bf16.msra.mxu0 0
    %1331 = vmatprep.subr.bf16.mxu0 0
    %1332 = vmatpush1.bf16.msra.mxu0 0
    %1333 = vmatprep.subr.bf16.mxu0 0
    %1334 = vmatpush1.bf16.msra.mxu0 0
    %1335 = vmatprep.subr.bf16.mxu0 0
    %1336 = vmatpush1.bf16.msra.mxu0 0
    %1337 = vmatprep.subr.bf16.mxu0 0
    %1338 = vmatpush1.bf16.msra.mxu0 0
    %1339 = vmatprep.subr.bf16.mxu0 0
    %1340 = vmatpush1.bf16.msra.mxu0 0
    %1341 = vmatprep.subr.bf16.mxu0 0
    %1342 = vmatpush1.bf16.msra.mxu0 0
    %1343 = vmatprep.mubr.bf16.mxu0 0
    %1344 = vmatmul.mubr.bf16.gmra.mrb[0].mxu0 %v1310
    %v1345 = vpop.f32.mrb[0].mxu0
    %v1346 = vadd.f32 0.0, %v1345
    %v1347 = vpop.f32.mrb[0].mxu0
    %v1348 = vadd.f32 0.0, %v1347
    %v1349 = vpop.f32.mrb[0].mxu0
    %v1350 = vpop.f32.mrb[0].mxu0
    %1351 = vdwg.mxu0
    %1352 = vmatprep.subr.bf16.mxu0 %v554
    %1353 = vmatpush1.bf16.msra.mxu0 %v553
    %1354 = vmatprep.subr.bf16.mxu0 %v558
    %1355 = vmatpush1.bf16.msra.mxu0 %v557
    %1356 = vmatprep.subr.bf16.mxu0 %v562
    %1357 = vmatpush1.bf16.msra.mxu0 %v561
    %1358 = vmatprep.subr.bf16.mxu0 %v566
    %1359 = vmatpush1.bf16.msra.mxu0 %v565
    %1360 = vmatprep.subr.bf16.mxu0 %v570
    %1361 = vmatpush1.bf16.msra.mxu0 %v569
    %1362 = vmatprep.subr.bf16.mxu0 %v574
    %1363 = vmatpush1.bf16.msra.mxu0 %v573
    %1364 = vmatprep.subr.bf16.mxu0 %v578
    %1365 = vmatpush1.bf16.msra.mxu0 %v577
    %1366 = vmatprep.subr.bf16.mxu0 %v582
    %1367 = vmatpush1.bf16.msra.mxu0 %v581
    %1368 = vmatprep.subr.bf16.mxu0 0
    %1369 = vmatpush1.bf16.msra.mxu0 0
    %1370 = vmatprep.subr.bf16.mxu0 0
    %1371 = vmatpush1.bf16.msra.mxu0 0
    %1372 = vmatprep.subr.bf16.mxu0 0
    %1373 = vmatpush1.bf16.msra.mxu0 0
    %1374 = vmatprep.subr.bf16.mxu0 0
    %1375 = vmatpush1.bf16.msra.mxu0 0
    %1376 = vmatprep.subr.bf16.mxu0 0
    %1377 = vmatpush1.bf16.msra.mxu0 0
    %1378 = vmatprep.subr.bf16.mxu0 0
    %1379 = vmatpush1.bf16.msra.mxu0 0
    %1380 = vmatprep.subr.bf16.mxu0 0
    %1381 = vmatpush1.bf16.msra.mxu0 0
    %1382 = vmatprep.subr.bf16.mxu0 0
    %1383 = vmatpush1.bf16.msra.mxu0 0
    %1384 = vmatprep.mubr.bf16.mxu0 0
    %1385 = vmatmul.mubr.bf16.gmra.mrb[0].mxu0 %v1310
    %v1386 = vpop.f32.mrb[0].mxu0
    %v1387 = vadd.f32 0.0, %v1386
    %v1388 = vpop.f32.mrb[0].mxu0
    %v1389 = vadd.f32 0.0, %v1388
    %v1390 = vpop.f32.mrb[0].mxu0
    %v1391 = vpop.f32.mrb[0].mxu0
    %1392 = vdwg.mxu0
    %v1393 = vadd.f32 %v1306, %v1346
    %v1394 = vadd.f32 %v1307, %v1348
    %v1395 = vadd.f32 %v1308, %v1387
    %v1396 = vadd.f32 %v1309, %v1389
    %v1397 = vxor.u32 %v1393, 2147483648
    %v1398 = vmul.f32 %v1397, 1.442695
    %v1399 = vpow.pop %v1398
    %v1400 = vadd.f32 %v1399, 1.0
    %v1401 = vrcp.pop %v1400
    %v1402 = vmul.f32 1.0, %v1401
    %v1403 = vxor.u32 %v1394, 2147483648
    %v1404 = vmul.f32 %v1403, 1.442695
    %v1405 = vpow.pop %v1404
    %v1406 = vadd.f32 %v1405, 1.0
    %v1407 = vrcp.pop %v1406
    %v1408 = vmul.f32 1.0, %v1407
    %v1409 = vtanh.pop %v1395
    %v1410 = vxor.u32 %v1396, 2147483648
    %v1411 = vmul.f32 %v1410, 1.442695
    %v1412 = vpow.pop %v1411
    %v1413 = vadd.f32 %v1412, 1.0
    %v1414 = vrcp.pop %v1413
    %v1415 = vmul.f32 1.0, %v1414
    %v1416 = vmul.f32 %v1408, %v1302
    %v1417 = vmul.f32 %v1402, %v1409
    %v1418 = vadd.f32 %v1416, %v1417
    %v1419 = vtanh.pop %v1418
    %v1420 = vmul.f32 %v1415, %v1419
    %1421 = vst [vmem:[#allocation3 + $0x30] sm:$0xff] %v1420
    %v1422 = vld [vmem:[#allocation2 + $0xe0] sm:$0xff]
    %v1423 = vld [vmem:[#allocation2 + $0xe8] sm:$0xff]
    %v1424 = vld [vmem:[#allocation2 + $0xf0] sm:$0xff]
    %v1425 = vld [vmem:[#allocation2 + $0xf8] sm:$0xff]
    %v1426 = vpack.c.bf16 %v1420, %v1420
    %1427 = vmatprep.subr.bf16.mxu0 %v552
    %1428 = vmatpush1.bf16.msra.mxu0 %v551
    %1429 = vmatprep.subr.bf16.mxu0 %v556
    %1430 = vmatpush1.bf16.msra.mxu0 %v555
    %1431 = vmatprep.subr.bf16.mxu0 %v560
    %1432 = vmatpush1.bf16.msra.mxu0 %v559
    %1433 = vmatprep.subr.bf16.mxu0 %v564
    %1434 = vmatpush1.bf16.msra.mxu0 %v563
    %1435 = vmatprep.subr.bf16.mxu0 %v568
    %1436 = vmatpush1.bf16.msra.mxu0 %v567
    %1437 = vmatprep.subr.bf16.mxu0 %v572
    %1438 = vmatpush1.bf16.msra.mxu0 %v571
    %1439 = vmatprep.subr.bf16.mxu0 %v576
    %1440 = vmatpush1.bf16.msra.mxu0 %v575
    %1441 = vmatprep.subr.bf16.mxu0 %v580
    %1442 = vmatpush1.bf16.msra.mxu0 %v579
    %1443 = vmatprep.subr.bf16.mxu0 0
    %1444 = vmatpush1.bf16.msra.mxu0 0
    %1445 = vmatprep.subr.bf16.mxu0 0
    %1446 = vmatpush1.bf16.msra.mxu0 0
    %1447 = vmatprep.subr.bf16.mxu0 0
    %1448 = vmatpush1.bf16.msra.mxu0 0
    %1449 = vmatprep.subr.bf16.mxu0 0
    %1450 = vmatpush1.bf16.msra.mxu0 0
    %1451 = vmatprep.subr.bf16.mxu0 0
    %1452 = vmatpush1.bf16.msra.mxu0 0
    %1453 = vmatprep.subr.bf16.mxu0 0
    %1454 = vmatpush1.bf16.msra.mxu0 0
    %1455 = vmatprep.subr.bf16.mxu0 0
    %1456 = vmatpush1.bf16.msra.mxu0 0
    %1457 = vmatprep.subr.bf16.mxu0 0
    %1458 = vmatpush1.bf16.msra.mxu0 0
    %1459 = vmatprep.mubr.bf16.mxu0 0
    %1460 = vmatmul.mubr.bf16.gmra.mrb[0].mxu0 %v1426
    %v1461 = vpop.f32.mrb[0].mxu0
    %v1462 = vadd.f32 0.0, %v1461
    %v1463 = vpop.f32.mrb[0].mxu0
    %v1464 = vadd.f32 0.0, %v1463
    %v1465 = vpop.f32.mrb[0].mxu0
    %v1466 = vpop.f32.mrb[0].mxu0
    %1467 = vdwg.mxu0
    %1468 = vmatprep.subr.bf16.mxu0 %v554
    %1469 = vmatpush1.bf16.msra.mxu0 %v553
    %1470 = vmatprep.subr.bf16.mxu0 %v558
    %1471 = vmatpush1.bf16.msra.mxu0 %v557
    %1472 = vmatprep.subr.bf16.mxu0 %v562
    %1473 = vmatpush1.bf16.msra.mxu0 %v561
    %1474 = vmatprep.subr.bf16.mxu0 %v566
    %1475 = vmatpush1.bf16.msra.mxu0 %v565
    %1476 = vmatprep.subr.bf16.mxu0 %v570
    %1477 = vmatpush1.bf16.msra.mxu0 %v569
    %1478 = vmatprep.subr.bf16.mxu0 %v574
    %1479 = vmatpush1.bf16.msra.mxu0 %v573
    %1480 = vmatprep.subr.bf16.mxu0 %v578
    %1481 = vmatpush1.bf16.msra.mxu0 %v577
    %1482 = vmatprep.subr.bf16.mxu0 %v582
    %1483 = vmatpush1.bf16.msra.mxu0 %v581
    %1484 = vmatprep.subr.bf16.mxu0 0
    %1485 = vmatpush1.bf16.msra.mxu0 0
    %1486 = vmatprep.subr.bf16.mxu0 0
    %1487 = vmatpush1.bf16.msra.mxu0 0
    %1488 = vmatprep.subr.bf16.mxu0 0
    %1489 = vmatpush1.bf16.msra.mxu0 0
    %1490 = vmatprep.subr.bf16.mxu0 0
    %1491 = vmatpush1.bf16.msra.mxu0 0
    %1492 = vmatprep.subr.bf16.mxu0 0
    %1493 = vmatpush1.bf16.msra.mxu0 0
    %1494 = vmatprep.subr.bf16.mxu0 0
    %1495 = vmatpush1.bf16.msra.mxu0 0
    %1496 = vmatprep.subr.bf16.mxu0 0
    %1497 = vmatpush1.bf16.msra.mxu0 0
    %1498 = vmatprep.subr.bf16.mxu0 0
    %1499 = vmatpush1.bf16.msra.mxu0 0
    %1500 = vmatprep.mubr.bf16.mxu0 0
    %1501 = vmatmul.mubr.bf16.gmra.mrb[0].mxu0 %v1426
    %v1502 = vpop.f32.mrb[0].mxu0
    %v1503 = vadd.f32 0.0, %v1502
    %v1504 = vpop.f32.mrb[0].mxu0
    %v1505 = vadd.f32 0.0, %v1504
    %v1506 = vpop.f32.mrb[0].mxu0
    %v1507 = vpop.f32.mrb[0].mxu0
    %1508 = vdwg.mxu0
    %v1509 = vadd.f32 %v1422, %v1462
    %v1510 = vadd.f32 %v1423, %v1464
    %v1511 = vadd.f32 %v1424, %v1503
    %v1512 = vadd.f32 %v1425, %v1505
    %v1513 = vxor.u32 %v1509, 2147483648
    %v1514 = vmul.f32 %v1513, 1.442695
    %v1515 = vpow.pop %v1514
    %v1516 = vadd.f32 %v1515, 1.0
    %v1517 = vrcp.pop %v1516
    %v1518 = vmul.f32 1.0, %v1517
    %v1519 = vxor.u32 %v1510, 2147483648
    %v1520 = vmul.f32 %v1519, 1.442695
    %v1521 = vpow.pop %v1520
    %v1522 = vadd.f32 %v1521, 1.0
    %v1523 = vrcp.pop %v1522
    %v1524 = vmul.f32 1.0, %v1523
    %v1525 = vtanh.pop %v1511
    %v1526 = vxor.u32 %v1512, 2147483648
    %v1527 = vmul.f32 %v1526, 1.442695
    %v1528 = vpow.pop %v1527
    %v1529 = vadd.f32 %v1528, 1.0
    %v1530 = vrcp.pop %v1529
    %v1531 = vmul.f32 1.0, %v1530
    %v1532 = vmul.f32 %v1524, %v1418
    %v1533 = vmul.f32 %v1518, %v1525
    %v1534 = vadd.f32 %v1532, %v1533
    %v1535 = vtanh.pop %v1534
    %v1536 = vmul.f32 %v1531, %v1535
    %1537 = vst [vmem:[#allocation3 + $0x38] sm:$0xff] %v1536
    %v1538 = vld [vmem:[#allocation3] sm:$0xff]
    %v1539 = vld [vmem:[#allocation3 + $0x38] sm:$0xff]
    %v1540 = vsel %vm97, %v1538, %v1539
    %1541 = vst [vmem:[#allocation3] sm:$0xff] %v1540
    %v1542 = vsel %vm97, %v1539, %v1538
    %1543 = vst [vmem:[#allocation3 + $0x38] sm:$0xff] %v1542
    %v1544 = vld [vmem:[#allocation3 + $0x8] sm:$0xff]
    %v1545 = vld [vmem:[#allocation3 + $0x30] sm:$0xff]
    %v1546 = vsel %vm97, %v1544, %v1545
    %1547 = vst [vmem:[#allocation3 + $0x8] sm:$0xff] %v1546
    %v1548 = vsel %vm97, %v1545, %v1544
    %1549 = vst [vmem:[#allocation3 + $0x30] sm:$0xff] %v1548
    %v1550 = vld [vmem:[#allocation3 + $0x10] sm:$0xff]
    %v1551 = vld [vmem:[#allocation3 + $0x28] sm:$0xff]
    %v1552 = vsel %vm97, %v1550, %v1551
    %1553 = vst [vmem:[#allocation3 + $0x10] sm:$0xff] %v1552
    %v1554 = vsel %vm97, %v1551, %v1550
    %1555 = vst [vmem:[#allocation3 + $0x28] sm:$0xff] %v1554
    %v1556 = vld [vmem:[#allocation3 + $0x18] sm:$0xff]
    %v1557 = vld [vmem:[#allocation3 + $0x20] sm:$0xff]
    %v1558 = vsel %vm97, %v1556, %v1557
    %1559 = vst [vmem:[#allocation3 + $0x18] sm:$0xff] %v1558
    %v1560 = vsel %vm97, %v1557, %v1556
    %1561 = vst [vmem:[#allocation3 + $0x20] sm:$0xff] %v1560
    %v1562 = vld [vmem:[#allocation3] sm:$0xff]
    %v1563 = vld [vmem:[#allocation3 + $0x8] sm:$0xff]
    %v1564 = vld [vmem:[#allocation3 + $0x10] sm:$0xff]
    %v1565 = vld [vmem:[#allocation3 + $0x18] sm:$0xff]
    %v1566 = vld [vmem:[#allocation3 + $0x20] sm:$0xff]
    %v1567 = vld [vmem:[#allocation3 + $0x28] sm:$0xff]
    %v1568 = vld [vmem:[#allocation3 + $0x30] sm:$0xff]
    %v1569 = vld [vmem:[#allocation3 + $0x38] sm:$0xff]
    %v1570 = vpack.c.bf16 %v1563, %v1562
    %v1571 = vpack.c.bf16 %v1565, %v1564
    %v1572 = vpack.c.bf16 %v1567, %v1566
    %v1573 = vpack.c.bf16 %v1569, %v1568
    %v1574 = vld [vmem:[%s4] sm:$0xff]
    %v1575 = vld [vmem:[%s4 + $0x8] sm:$0xff]
    %v1576 = vld [vmem:[%s4 + $0x10] sm:$0xff]
    %v1577 = vld [vmem:[%s4 + $0x18] sm:$0xff]
    %v1578 = vld [vmem:[%s4 + $0x20] sm:$0xff]
    %v1579 = vld [vmem:[%s4 + $0x28] sm:$0xff]
    %v1580 = vld [vmem:[%s4 + $0x30] sm:$0xff]
    %v1581 = vld [vmem:[%s4 + $0x38] sm:$0xff]
    %v1582 = vld [vmem:[%s4 + $0x40] sm:$0xff]
    %v1583 = vld [vmem:[%s4 + $0x48] sm:$0xff]
    %v1584 = vld [vmem:[%s4 + $0x50] sm:$0xff]
    %v1585 = vld [vmem:[%s4 + $0x58] sm:$0xff]
    %v1586 = vld [vmem:[%s4 + $0x60] sm:$0xff]
    %v1587 = vld [vmem:[%s4 + $0x68] sm:$0xff]
    %v1588 = vld [vmem:[%s4 + $0x70] sm:$0xff]
    %v1589 = vld [vmem:[%s4 + $0x78] sm:$0xff]
    %v1590 = vld [vmem:[%s4 + $0x80] sm:$0xff]
    %v1591 = vld [vmem:[%s4 + $0x88] sm:$0xff]
    %v1592 = vld [vmem:[%s4 + $0x90] sm:$0xff]
    %v1593 = vld [vmem:[%s4 + $0x98] sm:$0xff]
    %v1594 = vld [vmem:[%s4 + $0xa0] sm:$0xff]
    %v1595 = vld [vmem:[%s4 + $0xa8] sm:$0xff]
    %v1596 = vld [vmem:[%s4 + $0xb0] sm:$0xff]
    %v1597 = vld [vmem:[%s4 + $0xb8] sm:$0xff]
    %v1598 = vld [vmem:[%s4 + $0xc0] sm:$0xff]
    %v1599 = vld [vmem:[%s4 + $0xc8] sm:$0xff]
    %v1600 = vld [vmem:[%s4 + $0xd0] sm:$0xff]
    %v1601 = vld [vmem:[%s4 + $0xd8] sm:$0xff]
    %v1602 = vld [vmem:[%s4 + $0xe0] sm:$0xff]
    %v1603 = vld [vmem:[%s4 + $0xe8] sm:$0xff]
    %v1604 = vld [vmem:[%s4 + $0xf0] sm:$0xff]
    %v1605 = vld [vmem:[%s4 + $0xf8] sm:$0xff]
    %v1606 = vld [vmem:[%s6] sm:$0xf]
    %v1608 = vlaneseq
    %v1609 = vshrl.u32 %v1608, 7
    %v1610 = vsub.s32 0, %v1609
    %v1611 = vrot.slane %v1606, %v1610
    %v1612 = vlaneseq
    %v1613 = vshrl.u32 %v1612, 7
    %v1614 = vsub.s32 1, %v1613
    %v1615 = vrot.slane %v1606, %v1614
    %v1616 = vlaneseq
    %v1617 = vshrl.u32 %v1616, 7
    %v1618 = vsub.s32 2, %v1617
    %v1619 = vrot.slane %v1606, %v1618
    %v1620 = vlaneseq
    %v1621 = vshrl.u32 %v1620, 7
    %v1622 = vsub.s32 3, %v1621
    %v1623 = vrot.slane %v1606, %v1622
    %v1660 = vunpack.c.l.b16 %v1574
    %v1661 = vunpack.c.h.b16 %v1574
    %v1662 = vunpack.c.l.b16 %v1575
    %v1663 = vunpack.c.h.b16 %v1575
    %v1664 = vunpack.c.l.b16 %v1576
    %v1665 = vunpack.c.h.b16 %v1576
    %v1666 = vunpack.c.l.b16 %v1577
    %v1667 = vunpack.c.h.b16 %v1577
    %v1668 = vunpack.c.l.b16 %v1578
    %v1669 = vunpack.c.h.b16 %v1578
    %v1670 = vunpack.c.l.b16 %v1579
    %v1671 = vunpack.c.h.b16 %v1579
    %v1672 = vunpack.c.l.b16 %v1580
    %v1673 = vunpack.c.h.b16 %v1580
    %v1674 = vunpack.c.l.b16 %v1581
    %v1675 = vunpack.c.h.b16 %v1581
    %v1676 = vunpack.c.l.b16 %v1582
    %v1677 = vunpack.c.h.b16 %v1582
    %v1678 = vunpack.c.l.b16 %v1583
    %v1679 = vunpack.c.h.b16 %v1583
    %v1680 = vunpack.c.l.b16 %v1584
    %v1681 = vunpack.c.h.b16 %v1584
    %v1682 = vunpack.c.l.b16 %v1585
    %v1683 = vunpack.c.h.b16 %v1585
    %v1684 = vunpack.c.l.b16 %v1586
    %v1685 = vunpack.c.h.b16 %v1586
    %v1686 = vunpack.c.l.b16 %v1587
    %v1687 = vunpack.c.h.b16 %v1587
    %v1688 = vunpack.c.l.b16 %v1588
    %v1689 = vunpack.c.h.b16 %v1588
    %v1690 = vunpack.c.l.b16 %v1589
    %v1691 = vunpack.c.h.b16 %v1589
    %v1692 = vunpack.c.l.b16 %v1590
    %v1693 = vunpack.c.h.b16 %v1590
    %v1694 = vunpack.c.l.b16 %v1591
    %v1695 = vunpack.c.h.b16 %v1591
    %v1696 = vunpack.c.l.b16 %v1592
    %v1697 = vunpack.c.h.b16 %v1592
    %v1698 = vunpack.c.l.b16 %v1593
    %v1699 = vunpack.c.h.b16 %v1593
    %v1700 = vunpack.c.l.b16 %v1594
    %v1701 = vunpack.c.h.b16 %v1594
    %v1702 = vunpack.c.l.b16 %v1595
    %v1703 = vunpack.c.h.b16 %v1595
    %v1704 = vunpack.c.l.b16 %v1596
    %v1705 = vunpack.c.h.b16 %v1596
    %v1706 = vunpack.c.l.b16 %v1597
    %v1707 = vunpack.c.h.b16 %v1597
    %v1708 = vunpack.c.l.b16 %v1598
    %v1709 = vunpack.c.h.b16 %v1598
    %v1710 = vunpack.c.l.b16 %v1599
    %v1711 = vunpack.c.h.b16 %v1599
    %v1712 = vunpack.c.l.b16 %v1600
    %v1713 = vunpack.c.h.b16 %v1600
    %v1714 = vunpack.c.l.b16 %v1601
    %v1715 = vunpack.c.h.b16 %v1601
    %v1716 = vunpack.c.l.b16 %v1602
    %v1717 = vunpack.c.h.b16 %v1602
    %v1718 = vunpack.c.l.b16 %v1603
    %v1719 = vunpack.c.h.b16 %v1603
    %v1720 = vunpack.c.l.b16 %v1604
    %v1721 = vunpack.c.h.b16 %v1604
    %v1722 = vunpack.c.l.b16 %v1605
    %v1723 = vunpack.c.h.b16 %v1605
    %v1724 = vpack.c.b16 %v1664, %v1660
    %v1725 = vpack.c.b16 %v1665, %v1661
    %v1726 = vpack.c.b16 %v1666, %v1662
    %v1727 = vpack.c.b16 %v1667, %v1663
    %v1728 = vpack.c.b16 %v1672, %v1668
    %v1729 = vpack.c.b16 %v1673, %v1669
    %v1730 = vpack.c.b16 %v1674, %v1670
    %v1731 = vpack.c.b16 %v1675, %v1671
    %v1732 = vpack.c.b16 %v1680, %v1676
    %v1733 = vpack.c.b16 %v1681, %v1677
    %v1734 = vpack.c.b16 %v1682, %v1678
    %v1735 = vpack.c.b16 %v1683, %v1679
    %v1736 = vpack.c.b16 %v1688, %v1684
    %v1737 = vpack.c.b16 %v1689, %v1685
    %v1738 = vpack.c.b16 %v1690, %v1686
    %v1739 = vpack.c.b16 %v1691, %v1687
    %v1740 = vpack.c.b16 %v1696, %v1692
    %v1741 = vpack.c.b16 %v1697, %v1693
    %v1742 = vpack.c.b16 %v1698, %v1694
    %v1743 = vpack.c.b16 %v1699, %v1695
    %v1744 = vpack.c.b16 %v1704, %v1700
    %v1745 = vpack.c.b16 %v1705, %v1701
    %v1746 = vpack.c.b16 %v1706, %v1702
    %v1747 = vpack.c.b16 %v1707, %v1703
    %v1748 = vpack.c.b16 %v1712, %v1708
    %v1749 = vpack.c.b16 %v1713, %v1709
    %v1750 = vpack.c.b16 %v1714, %v1710
    %v1751 = vpack.c.b16 %v1715, %v1711
    %v1752 = vpack.c.b16 %v1720, %v1716
    %v1753 = vpack.c.b16 %v1721, %v1717
    %v1754 = vpack.c.b16 %v1722, %v1718
    %v1755 = vpack.c.b16 %v1723, %v1719
    %1788 = vmatprep.subr.bf16.mxu0 %v1725
    %1789 = vmatpush1.bf16.msra.mxu0 %v1724
    %1790 = vmatprep.subr.bf16.mxu0 %v1729
    %1791 = vmatpush1.bf16.msra.mxu0 %v1728
    %1792 = vmatprep.subr.bf16.mxu0 %v1733
    %1793 = vmatpush1.bf16.msra.mxu0 %v1732
    %1794 = vmatprep.subr.bf16.mxu0 %v1737
    %1795 = vmatpush1.bf16.msra.mxu0 %v1736
    %1796 = vmatprep.subr.bf16.mxu0 %v1741
    %1797 = vmatpush1.bf16.msra.mxu0 %v1740
    %1798 = vmatprep.subr.bf16.mxu0 %v1745
    %1799 = vmatpush1.bf16.msra.mxu0 %v1744
    %1800 = vmatprep.subr.bf16.mxu0 %v1749
    %1801 = vmatpush1.bf16.msra.mxu0 %v1748
    %1802 = vmatprep.subr.bf16.mxu0 %v1753
    %1803 = vmatpush1.bf16.msra.mxu0 %v1752
    %1804 = vmatprep.subr.bf16.mxu0 0
    %1805 = vmatpush1.bf16.msra.mxu0 0
    %1806 = vmatprep.subr.bf16.mxu0 0
    %1807 = vmatpush1.bf16.msra.mxu0 0
    %1808 = vmatprep.subr.bf16.mxu0 0
    %1809 = vmatpush1.bf16.msra.mxu0 0
    %1810 = vmatprep.subr.bf16.mxu0 0
    %1811 = vmatpush1.bf16.msra.mxu0 0
    %1812 = vmatprep.subr.bf16.mxu0 0
    %1813 = vmatpush1.bf16.msra.mxu0 0
    %1814 = vmatprep.subr.bf16.mxu0 0
    %1815 = vmatpush1.bf16.msra.mxu0 0
    %1816 = vmatprep.subr.bf16.mxu0 0
    %1817 = vmatpush1.bf16.msra.mxu0 0
    %1818 = vmatprep.subr.bf16.mxu0 0
    %1819 = vmatpush1.bf16.msra.mxu0 0
    %1820 = vmatprep.mubr.bf16.mxu0 0
    %1821 = vmatmul.mubr.bf16.gmra.mrb[0].mxu0 %v1570
    %v1822 = vpop.f32.mrb[0].mxu0
    %v1823 = vadd.f32 %v1611, %v1822
    %v1824 = vpop.f32.mrb[0].mxu0
    %v1825 = vadd.f32 %v1615, %v1824
    %v1826 = vpop.f32.mrb[0].mxu0
    %v1827 = vadd.f32 %v1611, %v1826
    %v1828 = vpop.f32.mrb[0].mxu0
    %v1829 = vadd.f32 %v1615, %v1828
    %1830 = vmatprep.mubr.bf16.mxu0 0
    %1831 = vmatmul.mubr.bf16.gmra.mrb[0].mxu0 %v1571
    %v1832 = vpop.f32.mrb[0].mxu0
    %v1833 = vadd.f32 %v1611, %v1832
    %v1834 = vpop.f32.mrb[0].mxu0
    %v1835 = vadd.f32 %v1615, %v1834
    %v1836 = vpop.f32.mrb[0].mxu0
    %v1837 = vadd.f32 %v1611, %v1836
    %v1838 = vpop.f32.mrb[0].mxu0
    %v1839 = vadd.f32 %v1615, %v1838
    %1840 = vmatprep.mubr.bf16.mxu0 0
    %1841 = vmatmul.mubr.bf16.gmra.mrb[0].mxu0 %v1572
    %v1842 = vpop.f32.mrb[0].mxu0
    %v1843 = vadd.f32 %v1611, %v1842
    %v1844 = vpop.f32.mrb[0].mxu0
    %v1845 = vadd.f32 %v1615, %v1844
    %v1846 = vpop.f32.mrb[0].mxu0
    %v1847 = vadd.f32 %v1611, %v1846
    %v1848 = vpop.f32.mrb[0].mxu0
    %v1849 = vadd.f32 %v1615, %v1848
    %1850 = vmatprep.mubr.bf16.mxu0 0
    %1851 = vmatmul.mubr.bf16.gmra.mrb[0].mxu0 %v1573
    %v1852 = vpop.f32.mrb[0].mxu0
    %v1853 = vadd.f32 %v1611, %v1852
    %v1854 = vpop.f32.mrb[0].mxu0
    %v1855 = vadd.f32 %v1615, %v1854
    %v1856 = vpop.f32.mrb[0].mxu0
    %v1857 = vadd.f32 %v1611, %v1856
    %v1858 = vpop.f32.mrb[0].mxu0
    %v1859 = vadd.f32 %v1615, %v1858
    %1860 = vdwg.mxu0
    %1861 = vmatprep.subr.bf16.mxu0 %v1727
    %1862 = vmatpush1.bf16.msra.mxu0 %v1726
    %1863 = vmatprep.subr.bf16.mxu0 %v1731
    %1864 = vmatpush1.bf16.msra.mxu0 %v1730
    %1865 = vmatprep.subr.bf16.mxu0 %v1735
    %1866 = vmatpush1.bf16.msra.mxu0 %v1734
    %1867 = vmatprep.subr.bf16.mxu0 %v1739
    %1868 = vmatpush1.bf16.msra.mxu0 %v1738
    %1869 = vmatprep.subr.bf16.mxu0 %v1743
    %1870 = vmatpush1.bf16.msra.mxu0 %v1742
    %1871 = vmatprep.subr.bf16.mxu0 %v1747
    %1872 = vmatpush1.bf16.msra.mxu0 %v1746
    %1873 = vmatprep.subr.bf16.mxu0 %v1751
    %1874 = vmatpush1.bf16.msra.mxu0 %v1750
    %1875 = vmatprep.subr.bf16.mxu0 %v1755
    %1876 = vmatpush1.bf16.msra.mxu0 %v1754
    %1877 = vmatprep.subr.bf16.mxu0 0
    %1878 = vmatpush1.bf16.msra.mxu0 0
    %1879 = vmatprep.subr.bf16.mxu0 0
    %1880 = vmatpush1.bf16.msra.mxu0 0
    %1881 = vmatprep.subr.bf16.mxu0 0
    %1882 = vmatpush1.bf16.msra.mxu0 0
    %1883 = vmatprep.subr.bf16.mxu0 0
    %1884 = vmatpush1.bf16.msra.mxu0 0
    %1885 = vmatprep.subr.bf16.mxu0 0
    %1886 = vmatpush1.bf16.msra.mxu0 0
    %1887 = vmatprep.subr.bf16.mxu0 0
    %1888 = vmatpush1.bf16.msra.mxu0 0
    %1889 = vmatprep.subr.bf16.mxu0 0
    %1890 = vmatpush1.bf16.msra.mxu0 0
    %1891 = vmatprep.subr.bf16.mxu0 0
    %1892 = vmatpush1.bf16.msra.mxu0 0
    %1893 = vmatprep.mubr.bf16.mxu0 0
    %1894 = vmatmul.mubr.bf16.gmra.mrb[0].mxu0 %v1570
    %v1895 = vpop.f32.mrb[0].mxu0
    %v1896 = vadd.f32 %v1619, %v1895
    %v1897 = vpop.f32.mrb[0].mxu0
    %v1898 = vadd.f32 %v1623, %v1897
    %v1899 = vpop.f32.mrb[0].mxu0
    %v1900 = vadd.f32 %v1619, %v1899
    %v1901 = vpop.f32.mrb[0].mxu0
    %v1902 = vadd.f32 %v1623, %v1901
    %1903 = vmatprep.mubr.bf16.mxu0 0
    %1904 = vmatmul.mubr.bf16.gmra.mrb[0].mxu0 %v1571
    %v1905 = vpop.f32.mrb[0].mxu0
    %v1906 = vadd.f32 %v1619, %v1905
    %v1907 = vpop.f32.mrb[0].mxu0
    %v1908 = vadd.f32 %v1623, %v1907
    %v1909 = vpop.f32.mrb[0].mxu0
    %v1910 = vadd.f32 %v1619, %v1909
    %v1911 = vpop.f32.mrb[0].mxu0
    %v1912 = vadd.f32 %v1623, %v1911
    %1913 = vmatprep.mubr.bf16.mxu0 0
    %1914 = vmatmul.mubr.bf16.gmra.mrb[0].mxu0 %v1572
    %v1915 = vpop.f32.mrb[0].mxu0
    %v1916 = vadd.f32 %v1619, %v1915
    %v1917 = vpop.f32.mrb[0].mxu0
    %v1918 = vadd.f32 %v1623, %v1917
    %v1919 = vpop.f32.mrb[0].mxu0
    %v1920 = vadd.f32 %v1619, %v1919
    %v1921 = vpop.f32.mrb[0].mxu0
    %v1922 = vadd.f32 %v1623, %v1921
    %1923 = vmatprep.mubr.bf16.mxu0 0
    %1924 = vmatmul.mubr.bf16.gmra.mrb[0].mxu0 %v1573
    %v1925 = vpop.f32.mrb[0].mxu0
    %v1926 = vadd.f32 %v1619, %v1925
    %v1927 = vpop.f32.mrb[0].mxu0
    %v1928 = vadd.f32 %v1623, %v1927
    %v1929 = vpop.f32.mrb[0].mxu0
    %v1930 = vadd.f32 %v1619, %v1929
    %v1931 = vpop.f32.mrb[0].mxu0
    %v1932 = vadd.f32 %v1623, %v1931
    %1933 = vdwg.mxu0
    %v1934 = vsel %vm93, %v1823, %v1857
    %v1935 = vsel %vm94, %v1825, %v1859
    %v1936 = vsel %vm95, %v1896, %v1930
    %v1937 = vsel %vm96, %v1898, %v1932
    %1938 = vst [vmem:[#allocation2] sm:$0xff] %v1934
    %1939 = vst [vmem:[#allocation2 + $0x8] sm:$0xff] %v1935
    %1940 = vst [vmem:[#allocation2 + $0x10] sm:$0xff] %v1936
    %1941 = vst [vmem:[#allocation2 + $0x18] sm:$0xff] %v1937
    %v1942 = vsel %vm93, %v1827, %v1853
    %v1943 = vsel %vm94, %v1829, %v1855
    %v1944 = vsel %vm95, %v1900, %v1926
    %v1945 = vsel %vm96, %v1902, %v1928
    %1946 = vst [vmem:[#allocation2 + $0x20] sm:$0xff] %v1942
    %1947 = vst [vmem:[#allocation2 + $0x28] sm:$0xff] %v1943
    %1948 = vst [vmem:[#allocation2 + $0x30] sm:$0xff] %v1944
    %1949 = vst [vmem:[#allocation2 + $0x38] sm:$0xff] %v1945
    %v1950 = vsel %vm93, %v1833, %v1847
    %v1951 = vsel %vm94, %v1835, %v1849
    %v1952 = vsel %vm95, %v1906, %v1920
    %v1953 = vsel %vm96, %v1908, %v1922
    %1954 = vst [vmem:[#allocation2 + $0x40] sm:$0xff] %v1950
    %1955 = vst [vmem:[#allocation2 + $0x48] sm:$0xff] %v1951
    %1956 = vst [vmem:[#allocation2 + $0x50] sm:$0xff] %v1952
    %1957 = vst [vmem:[#allocation2 + $0x58] sm:$0xff] %v1953
    %v1958 = vsel %vm93, %v1837, %v1843
    %v1959 = vsel %vm94, %v1839, %v1845
    %v1960 = vsel %vm95, %v1910, %v1916
    %v1961 = vsel %vm96, %v1912, %v1918
    %1962 = vst [vmem:[#allocation2 + $0x60] sm:$0xff] %v1958
    %1963 = vst [vmem:[#allocation2 + $0x68] sm:$0xff] %v1959
    %1964 = vst [vmem:[#allocation2 + $0x70] sm:$0xff] %v1960
    %1965 = vst [vmem:[#allocation2 + $0x78] sm:$0xff] %v1961
    %v1966 = vsel %vm93, %v1843, %v1837
    %v1967 = vsel %vm94, %v1845, %v1839
    %v1968 = vsel %vm95, %v1916, %v1910
    %v1969 = vsel %vm96, %v1918, %v1912
    %1970 = vst [vmem:[#allocation2 + $0x80] sm:$0xff] %v1966
    %1971 = vst [vmem:[#allocation2 + $0x88] sm:$0xff] %v1967
    %1972 = vst [vmem:[#allocation2 + $0x90] sm:$0xff] %v1968
    %1973 = vst [vmem:[#allocation2 + $0x98] sm:$0xff] %v1969
    %v1974 = vsel %vm93, %v1847, %v1833
    %v1975 = vsel %vm94, %v1849, %v1835
    %v1976 = vsel %vm95, %v1920, %v1906
    %v1977 = vsel %vm96, %v1922, %v1908
    %1978 = vst [vmem:[#allocation2 + $0xa0] sm:$0xff] %v1974
    %1979 = vst [vmem:[#allocation2 + $0xa8] sm:$0xff] %v1975
    %1980 = vst [vmem:[#allocation2 + $0xb0] sm:$0xff] %v1976
    %1981 = vst [vmem:[#allocation2 + $0xb8] sm:$0xff] %v1977
    %v1982 = vsel %vm93, %v1853, %v1827
    %v1983 = vsel %vm94, %v1855, %v1829
    %v1984 = vsel %vm95, %v1926, %v1900
    %v1985 = vsel %vm96, %v1928, %v1902
    %1986 = vst [vmem:[#allocation2 + $0xc0] sm:$0xff] %v1982
    %1987 = vst [vmem:[#allocation2 + $0xc8] sm:$0xff] %v1983
    %1988 = vst [vmem:[#allocation2 + $0xd0] sm:$0xff] %v1984
    %1989 = vst [vmem:[#allocation2 + $0xd8] sm:$0xff] %v1985
    %v1990 = vsel %vm93, %v1857, %v1823
    %v1991 = vsel %vm94, %v1859, %v1825
    %v1992 = vsel %vm95, %v1930, %v1896
    %v1993 = vsel %vm96, %v1932, %v1898
    %1994 = vst [vmem:[#allocation2 + $0xe0] sm:$0xff] %v1990
    %1995 = vst [vmem:[#allocation2 + $0xe8] sm:$0xff] %v1991
    %1996 = vst [vmem:[#allocation2 + $0xf0] sm:$0xff] %v1992
    %1997 = vst [vmem:[#allocation2 + $0xf8] sm:$0xff] %v1993
    %v1998 = vld [vmem:[%s5] sm:$0xff]
    %v1999 = vld [vmem:[%s5 + $0x8] sm:$0xff]
    %v2000 = vld [vmem:[%s5 + $0x10] sm:$0xff]
    %v2001 = vld [vmem:[%s5 + $0x18] sm:$0xff]
    %v2002 = vld [vmem:[%s5 + $0x20] sm:$0xff]
    %v2003 = vld [vmem:[%s5 + $0x28] sm:$0xff]
    %v2004 = vld [vmem:[%s5 + $0x30] sm:$0xff]
    %v2005 = vld [vmem:[%s5 + $0x38] sm:$0xff]
    %v2006 = vld [vmem:[%s5 + $0x40] sm:$0xff]
    %v2007 = vld [vmem:[%s5 + $0x48] sm:$0xff]
    %v2008 = vld [vmem:[%s5 + $0x50] sm:$0xff]
    %v2009 = vld [vmem:[%s5 + $0x58] sm:$0xff]
    %v2010 = vld [vmem:[%s5 + $0x60] sm:$0xff]
    %v2011 = vld [vmem:[%s5 + $0x68] sm:$0xff]
    %v2012 = vld [vmem:[%s5 + $0x70] sm:$0xff]
    %v2013 = vld [vmem:[%s5 + $0x78] sm:$0xff]
    %v2014 = vld [vmem:[%s5 + $0x80] sm:$0xff]
    %v2015 = vld [vmem:[%s5 + $0x88] sm:$0xff]
    %v2016 = vld [vmem:[%s5 + $0x90] sm:$0xff]
    %v2017 = vld [vmem:[%s5 + $0x98] sm:$0xff]
    %v2018 = vld [vmem:[%s5 + $0xa0] sm:$0xff]
    %v2019 = vld [vmem:[%s5 + $0xa8] sm:$0xff]
    %v2020 = vld [vmem:[%s5 + $0xb0] sm:$0xff]
    %v2021 = vld [vmem:[%s5 + $0xb8] sm:$0xff]
    %v2022 = vld [vmem:[%s5 + $0xc0] sm:$0xff]
    %v2023 = vld [vmem:[%s5 + $0xc8] sm:$0xff]
    %v2024 = vld [vmem:[%s5 + $0xd0] sm:$0xff]
    %v2025 = vld [vmem:[%s5 + $0xd8] sm:$0xff]
    %v2026 = vld [vmem:[%s5 + $0xe0] sm:$0xff]
    %v2027 = vld [vmem:[%s5 + $0xe8] sm:$0xff]
    %v2028 = vld [vmem:[%s5 + $0xf0] sm:$0xff]
    %v2029 = vld [vmem:[%s5 + $0xf8] sm:$0xff]
    %v2030 = vld [vmem:[#allocation2] sm:$0xff]
    %v2031 = vld [vmem:[#allocation2 + $0x8] sm:$0xff]
    %v2032 = vld [vmem:[#allocation2 + $0x10] sm:$0xff]
    %v2033 = vld [vmem:[#allocation2 + $0x18] sm:$0xff]
    %v2066 = vunpack.c.l.b16 %v1998
    %v2067 = vunpack.c.h.b16 %v1998
    %v2068 = vunpack.c.l.b16 %v1999
    %v2069 = vunpack.c.h.b16 %v1999
    %v2070 = vunpack.c.l.b16 %v2000
    %v2071 = vunpack.c.h.b16 %v2000
    %v2072 = vunpack.c.l.b16 %v2001
    %v2073 = vunpack.c.h.b16 %v2001
    %v2074 = vunpack.c.l.b16 %v2002
    %v2075 = vunpack.c.h.b16 %v2002
    %v2076 = vunpack.c.l.b16 %v2003
    %v2077 = vunpack.c.h.b16 %v2003
    %v2078 = vunpack.c.l.b16 %v2004
    %v2079 = vunpack.c.h.b16 %v2004
    %v2080 = vunpack.c.l.b16 %v2005
    %v2081 = vunpack.c.h.b16 %v2005
    %v2082 = vunpack.c.l.b16 %v2006
    %v2083 = vunpack.c.h.b16 %v2006
    %v2084 = vunpack.c.l.b16 %v2007
    %v2085 = vunpack.c.h.b16 %v2007
    %v2086 = vunpack.c.l.b16 %v2008
    %v2087 = vunpack.c.h.b16 %v2008
    %v2088 = vunpack.c.l.b16 %v2009
    %v2089 = vunpack.c.h.b16 %v2009
    %v2090 = vunpack.c.l.b16 %v2010
    %v2091 = vunpack.c.h.b16 %v2010
    %v2092 = vunpack.c.l.b16 %v2011
    %v2093 = vunpack.c.h.b16 %v2011
    %v2094 = vunpack.c.l.b16 %v2012
    %v2095 = vunpack.c.h.b16 %v2012
    %v2096 = vunpack.c.l.b16 %v2013
    %v2097 = vunpack.c.h.b16 %v2013
    %v2098 = vunpack.c.l.b16 %v2014
    %v2099 = vunpack.c.h.b16 %v2014
    %v2100 = vunpack.c.l.b16 %v2015
    %v2101 = vunpack.c.h.b16 %v2015
    %v2102 = vunpack.c.l.b16 %v2016
    %v2103 = vunpack.c.h.b16 %v2016
    %v2104 = vunpack.c.l.b16 %v2017
    %v2105 = vunpack.c.h.b16 %v2017
    %v2106 = vunpack.c.l.b16 %v2018
    %v2107 = vunpack.c.h.b16 %v2018
    %v2108 = vunpack.c.l.b16 %v2019
    %v2109 = vunpack.c.h.b16 %v2019
    %v2110 = vunpack.c.l.b16 %v2020
    %v2111 = vunpack.c.h.b16 %v2020
    %v2112 = vunpack.c.l.b16 %v2021
    %v2113 = vunpack.c.h.b16 %v2021
    %v2114 = vunpack.c.l.b16 %v2022
    %v2115 = vunpack.c.h.b16 %v2022
    %v2116 = vunpack.c.l.b16 %v2023
    %v2117 = vunpack.c.h.b16 %v2023
    %v2118 = vunpack.c.l.b16 %v2024
    %v2119 = vunpack.c.h.b16 %v2024
    %v2120 = vunpack.c.l.b16 %v2025
    %v2121 = vunpack.c.h.b16 %v2025
    %v2122 = vunpack.c.l.b16 %v2026
    %v2123 = vunpack.c.h.b16 %v2026
    %v2124 = vunpack.c.l.b16 %v2027
    %v2125 = vunpack.c.h.b16 %v2027
    %v2126 = vunpack.c.l.b16 %v2028
    %v2127 = vunpack.c.h.b16 %v2028
    %v2128 = vunpack.c.l.b16 %v2029
    %v2129 = vunpack.c.h.b16 %v2029
    %v2130 = vpack.c.b16 %v2070, %v2066
    %v2131 = vpack.c.b16 %v2071, %v2067
    %v2132 = vpack.c.b16 %v2072, %v2068
    %v2133 = vpack.c.b16 %v2073, %v2069
    %v2134 = vpack.c.b16 %v2078, %v2074
    %v2135 = vpack.c.b16 %v2079, %v2075
    %v2136 = vpack.c.b16 %v2080, %v2076
    %v2137 = vpack.c.b16 %v2081, %v2077
    %v2138 = vpack.c.b16 %v2086, %v2082
    %v2139 = vpack.c.b16 %v2087, %v2083
    %v2140 = vpack.c.b16 %v2088, %v2084
    %v2141 = vpack.c.b16 %v2089, %v2085
    %v2142 = vpack.c.b16 %v2094, %v2090
    %v2143 = vpack.c.b16 %v2095, %v2091
    %v2144 = vpack.c.b16 %v2096, %v2092
    %v2145 = vpack.c.b16 %v2097, %v2093
    %v2146 = vpack.c.b16 %v2102, %v2098
    %v2147 = vpack.c.b16 %v2103, %v2099
    %v2148 = vpack.c.b16 %v2104, %v2100
    %v2149 = vpack.c.b16 %v2105, %v2101
    %v2150 = vpack.c.b16 %v2110, %v2106
    %v2151 = vpack.c.b16 %v2111, %v2107
    %v2152 = vpack.c.b16 %v2112, %v2108
    %v2153 = vpack.c.b16 %v2113, %v2109
    %v2154 = vpack.c.b16 %v2118, %v2114
    %v2155 = vpack.c.b16 %v2119, %v2115
    %v2156 = vpack.c.b16 %v2120, %v2116
    %v2157 = vpack.c.b16 %v2121, %v2117
    %v2158 = vpack.c.b16 %v2126, %v2122
    %v2159 = vpack.c.b16 %v2127, %v2123
    %v2160 = vpack.c.b16 %v2128, %v2124
    %v2161 = vpack.c.b16 %v2129, %v2125
    %2194 = vmatprep.subr.bf16.mxu0 %v2131
    %2195 = vmatpush1.bf16.msra.mxu0 %v2130
    %2196 = vmatprep.subr.bf16.mxu0 %v2135
    %2197 = vmatpush1.bf16.msra.mxu0 %v2134
    %2198 = vmatprep.subr.bf16.mxu0 %v2139
    %2199 = vmatpush1.bf16.msra.mxu0 %v2138
    %2200 = vmatprep.subr.bf16.mxu0 %v2143
    %2201 = vmatpush1.bf16.msra.mxu0 %v2142
    %2202 = vmatprep.subr.bf16.mxu0 %v2147
    %2203 = vmatpush1.bf16.msra.mxu0 %v2146
    %2204 = vmatprep.subr.bf16.mxu0 %v2151
    %2205 = vmatpush1.bf16.msra.mxu0 %v2150
    %2206 = vmatprep.subr.bf16.mxu0 %v2155
    %2207 = vmatpush1.bf16.msra.mxu0 %v2154
    %2208 = vmatprep.subr.bf16.mxu0 %v2159
    %2209 = vmatpush1.bf16.msra.mxu0 %v2158
    %2210 = vmatprep.subr.bf16.mxu0 0
    %2211 = vmatpush1.bf16.msra.mxu0 0
    %2212 = vmatprep.subr.bf16.mxu0 0
    %2213 = vmatpush1.bf16.msra.mxu0 0
    %2214 = vmatprep.subr.bf16.mxu0 0
    %2215 = vmatpush1.bf16.msra.mxu0 0
    %2216 = vmatprep.subr.bf16.mxu0 0
    %2217 = vmatpush1.bf16.msra.mxu0 0
    %2218 = vmatprep.subr.bf16.mxu0 0
    %2219 = vmatpush1.bf16.msra.mxu0 0
    %2220 = vmatprep.subr.bf16.mxu0 0
    %2221 = vmatpush1.bf16.msra.mxu0 0
    %2222 = vmatprep.subr.bf16.mxu0 0
    %2223 = vmatpush1.bf16.msra.mxu0 0
    %2224 = vmatprep.subr.bf16.mxu0 0
    %2225 = vmatpush1.bf16.msra.mxu0 0
    %2226 = vmatprep.mubr.bf16.mxu0 0
    %2227 = vmatmul.mubr.bf16.gmra.mrb[0].mxu0 0
    %v2228 = vpop.f32.mrb[0].mxu0
    %v2229 = vadd.f32 0.0, %v2228
    %v2230 = vpop.f32.mrb[0].mxu0
    %v2231 = vadd.f32 0.0, %v2230
    %v2232 = vpop.f32.mrb[0].mxu0
    %v2233 = vpop.f32.mrb[0].mxu0
    %2234 = vdwg.mxu0
    %2235 = vmatprep.subr.bf16.mxu0 %v2133
    %2236 = vmatpush1.bf16.msra.mxu0 %v2132
    %2237 = vmatprep.subr.bf16.mxu0 %v2137
    %2238 = vmatpush1.bf16.msra.mxu0 %v2136
    %2239 = vmatprep.subr.bf16.mxu0 %v2141
    %2240 = vmatpush1.bf16.msra.mxu0 %v2140
    %2241 = vmatprep.subr.bf16.mxu0 %v2145
    %2242 = vmatpush1.bf16.msra.mxu0 %v2144
    %2243 = vmatprep.subr.bf16.mxu0 %v2149
    %2244 = vmatpush1.bf16.msra.mxu0 %v2148
    %2245 = vmatprep.subr.bf16.mxu0 %v2153
    %2246 = vmatpush1.bf16.msra.mxu0 %v2152
    %2247 = vmatprep.subr.bf16.mxu0 %v2157
    %2248 = vmatpush1.bf16.msra.mxu0 %v2156
    %2249 = vmatprep.subr.bf16.mxu0 %v2161
    %2250 = vmatpush1.bf16.msra.mxu0 %v2160
    %2251 = vmatprep.subr.bf16.mxu0 0
    %2252 = vmatpush1.bf16.msra.mxu0 0
    %2253 = vmatprep.subr.bf16.mxu0 0
    %2254 = vmatpush1.bf16.msra.mxu0 0
    %2255 = vmatprep.subr.bf16.mxu0 0
    %2256 = vmatpush1.bf16.msra.mxu0 0
    %2257 = vmatprep.subr.bf16.mxu0 0
    %2258 = vmatpush1.bf16.msra.mxu0 0
    %2259 = vmatprep.subr.bf16.mxu0 0
    %2260 = vmatpush1.bf16.msra.mxu0 0
    %2261 = vmatprep.subr.bf16.mxu0 0
    %2262 = vmatpush1.bf16.msra.mxu0 0
    %2263 = vmatprep.subr.bf16.mxu0 0
    %2264 = vmatpush1.bf16.msra.mxu0 0
    %2265 = vmatprep.subr.bf16.mxu0 0
    %2266 = vmatpush1.bf16.msra.mxu0 0
    %2267 = vmatprep.mubr.bf16.mxu0 0
    %2268 = vmatmul.mubr.bf16.gmra.mrb[0].mxu0 0
    %v2269 = vpop.f32.mrb[0].mxu0
    %v2270 = vadd.f32 0.0, %v2269
    %v2271 = vpop.f32.mrb[0].mxu0
    %v2272 = vadd.f32 0.0, %v2271
    %v2273 = vpop.f32.mrb[0].mxu0
    %v2274 = vpop.f32.mrb[0].mxu0
    %2275 = vdwg.mxu0
    %v2276 = vadd.f32 %v2030, %v2229
    %v2277 = vadd.f32 %v2031, %v2231
    %v2278 = vadd.f32 %v2032, %v2270
    %v2279 = vadd.f32 %v2033, %v2272
    %v2280 = vxor.u32 %v2276, 2147483648
    %v2281 = vmul.f32 %v2280, 1.442695
    %v2282 = vpow.pop %v2281
    %v2283 = vadd.f32 %v2282, 1.0
    %v2284 = vrcp.pop %v2283
    %v2285 = vmul.f32 1.0, %v2284
    %v2286 = vxor.u32 %v2277, 2147483648
    %v2287 = vmul.f32 %v2286, 1.442695
    %v2288 = vpow.pop %v2287
    %v2289 = vadd.f32 %v2288, 1.0
    %v2290 = vrcp.pop %v2289
    %v2291 = vmul.f32 1.0, %v2290
    %v2292 = vtanh.pop %v2278
    %v2293 = vxor.u32 %v2279, 2147483648
    %v2294 = vmul.f32 %v2293, 1.442695
    %v2295 = vpow.pop %v2294
    %v2296 = vadd.f32 %v2295, 1.0
    %v2297 = vrcp.pop %v2296
    %v2298 = vmul.f32 1.0, %v2297
    %v2299 = vmul.f32 %v2291, 0.0
    %v2300 = vmul.f32 %v2285, %v2292
    %v2301 = vadd.f32 %v2299, %v2300
    %v2302 = vtanh.pop %v2301
    %v2303 = vmul.f32 %v2298, %v2302
    %2304 = vst [vmem:[#allocation4] sm:$0xff] %v2303
    %v2305 = vld [vmem:[#allocation2 + $0x20] sm:$0xff]
    %v2306 = vld [vmem:[#allocation2 + $0x28] sm:$0xff]
    %v2307 = vld [vmem:[#allocation2 + $0x30] sm:$0xff]
    %v2308 = vld [vmem:[#allocation2 + $0x38] sm:$0xff]
    %v2309 = vpack.c.bf16 %v2303, %v2303
    %2310 = vmatprep.subr.bf16.mxu0 %v2131
    %2311 = vmatpush1.bf16.msra.mxu0 %v2130
    %2312 = vmatprep.subr.bf16.mxu0 %v2135
    %2313 = vmatpush1.bf16.msra.mxu0 %v2134
    %2314 = vmatprep.subr.bf16.mxu0 %v2139
    %2315 = vmatpush1.bf16.msra.mxu0 %v2138
    %2316 = vmatprep.subr.bf16.mxu0 %v2143
    %2317 = vmatpush1.bf16.msra.mxu0 %v2142
    %2318 = vmatprep.subr.bf16.mxu0 %v2147
    %2319 = vmatpush1.bf16.msra.mxu0 %v2146
    %2320 = vmatprep.subr.bf16.mxu0 %v2151
    %2321 = vmatpush1.bf16.msra.mxu0 %v2150
    %2322 = vmatprep.subr.bf16.mxu0 %v2155
    %2323 = vmatpush1.bf16.msra.mxu0 %v2154
    %2324 = vmatprep.subr.bf16.mxu0 %v2159
    %2325 = vmatpush1.bf16.msra.mxu0 %v2158
    %2326 = vmatprep.subr.bf16.mxu0 0
    %2327 = vmatpush1.bf16.msra.mxu0 0
    %2328 = vmatprep.subr.bf16.mxu0 0
    %2329 = vmatpush1.bf16.msra.mxu0 0
    %2330 = vmatprep.subr.bf16.mxu0 0
    %2331 = vmatpush1.bf16.msra.mxu0 0
    %2332 = vmatprep.subr.bf16.mxu0 0
    %2333 = vmatpush1.bf16.msra.mxu0 0
    %2334 = vmatprep.subr.bf16.mxu0 0
    %2335 = vmatpush1.bf16.msra.mxu0 0
    %2336 = vmatprep.subr.bf16.mxu0 0
    %2337 = vmatpush1.bf16.msra.mxu0 0
    %2338 = vmatprep.subr.bf16.mxu0 0
    %2339 = vmatpush1.bf16.msra.mxu0 0
    %2340 = vmatprep.subr.bf16.mxu0 0
    %2341 = vmatpush1.bf16.msra.mxu0 0
    %2342 = vmatprep.mubr.bf16.mxu0 0
    %2343 = vmatmul.mubr.bf16.gmra.mrb[0].mxu0 %v2309
    %v2344 = vpop.f32.mrb[0].mxu0
    %v2345 = vadd.f32 0.0, %v2344
    %v2346 = vpop.f32.mrb[0].mxu0
    %v2347 = vadd.f32 0.0, %v2346
    %v2348 = vpop.f32.mrb[0].mxu0
    %v2349 = vpop.f32.mrb[0].mxu0
    %2350 = vdwg.mxu0
    %2351 = vmatprep.subr.bf16.mxu0 %v2133
    %2352 = vmatpush1.bf16.msra.mxu0 %v2132
    %2353 = vmatprep.subr.bf16.mxu0 %v2137
    %2354 = vmatpush1.bf16.msra.mxu0 %v2136
    %2355 = vmatprep.subr.bf16.mxu0 %v2141
    %2356 = vmatpush1.bf16.msra.mxu0 %v2140
    %2357 = vmatprep.subr.bf16.mxu0 %v2145
    %2358 = vmatpush1.bf16.msra.mxu0 %v2144
    %2359 = vmatprep.subr.bf16.mxu0 %v2149
    %2360 = vmatpush1.bf16.msra.mxu0 %v2148
    %2361 = vmatprep.subr.bf16.mxu0 %v2153
    %2362 = vmatpush1.bf16.msra.mxu0 %v2152
    %2363 = vmatprep.subr.bf16.mxu0 %v2157
    %2364 = vmatpush1.bf16.msra.mxu0 %v2156
    %2365 = vmatprep.subr.bf16.mxu0 %v2161
    %2366 = vmatpush1.bf16.msra.mxu0 %v2160
    %2367 = vmatprep.subr.bf16.mxu0 0
    %2368 = vmatpush1.bf16.msra.mxu0 0
    %2369 = vmatprep.subr.bf16.mxu0 0
    %2370 = vmatpush1.bf16.msra.mxu0 0
    %2371 = vmatprep.subr.bf16.mxu0 0
    %2372 = vmatpush1.bf16.msra.mxu0 0
    %2373 = vmatprep.subr.bf16.mxu0 0
    %2374 = vmatpush1.bf16.msra.mxu0 0
    %2375 = vmatprep.subr.bf16.mxu0 0
    %2376 = vmatpush1.bf16.msra.mxu0 0
    %2377 = vmatprep.subr.bf16.mxu0 0
    %2378 = vmatpush1.bf16.msra.mxu0 0
    %2379 = vmatprep.subr.bf16.mxu0 0
    %2380 = vmatpush1.bf16.msra.mxu0 0
    %2381 = vmatprep.subr.bf16.mxu0 0
    %2382 = vmatpush1.bf16.msra.mxu0 0
    %2383 = vmatprep.mubr.bf16.mxu0 0
    %2384 = vmatmul.mubr.bf16.gmra.mrb[0].mxu0 %v2309
    %v2385 = vpop.f32.mrb[0].mxu0
    %v2386 = vadd.f32 0.0, %v2385
    %v2387 = vpop.f32.mrb[0].mxu0
    %v2388 = vadd.f32 0.0, %v2387
    %v2389 = vpop.f32.mrb[0].mxu0
    %v2390 = vpop.f32.mrb[0].mxu0
    %2391 = vdwg.mxu0
    %v2392 = vadd.f32 %v2305, %v2345
    %v2393 = vadd.f32 %v2306, %v2347
    %v2394 = vadd.f32 %v2307, %v2386
    %v2395 = vadd.f32 %v2308, %v2388
    %v2396 = vxor.u32 %v2392, 2147483648
    %v2397 = vmul.f32 %v2396, 1.442695
    %v2398 = vpow.pop %v2397
    %v2399 = vadd.f32 %v2398, 1.0
    %v2400 = vrcp.pop %v2399
    %v2401 = vmul.f32 1.0, %v2400
    %v2402 = vxor.u32 %v2393, 2147483648
    %v2403 = vmul.f32 %v2402, 1.442695
    %v2404 = vpow.pop %v2403
    %v2405 = vadd.f32 %v2404, 1.0
    %v2406 = vrcp.pop %v2405
    %v2407 = vmul.f32 1.0, %v2406
    %v2408 = vtanh.pop %v2394
    %v2409 = vxor.u32 %v2395, 2147483648
    %v2410 = vmul.f32 %v2409, 1.442695
    %v2411 = vpow.pop %v2410
    %v2412 = vadd.f32 %v2411, 1.0
    %v2413 = vrcp.pop %v2412
    %v2414 = vmul.f32 1.0, %v2413
    %v2415 = vmul.f32 %v2407, %v2301
    %v2416 = vmul.f32 %v2401, %v2408
    %v2417 = vadd.f32 %v2415, %v2416
    %v2418 = vtanh.pop %v2417
    %v2419 = vmul.f32 %v2414, %v2418
    %2420 = vst [vmem:[#allocation4 + $0x8] sm:$0xff] %v2419
    %v2421 = vld [vmem:[#allocation2 + $0x40] sm:$0xff]
    %v2422 = vld [vmem:[#allocation2 + $0x48] sm:$0xff]
    %v2423 = vld [vmem:[#allocation2 + $0x50] sm:$0xff]
    %v2424 = vld [vmem:[#allocation2 + $0x58] sm:$0xff]
    %v2425 = vpack.c.bf16 %v2419, %v2419
    %2426 = vmatprep.subr.bf16.mxu0 %v2131
    %2427 = vmatpush1.bf16.msra.mxu0 %v2130
    %2428 = vmatprep.subr.bf16.mxu0 %v2135
    %2429 = vmatpush1.bf16.msra.mxu0 %v2134
    %2430 = vmatprep.subr.bf16.mxu0 %v2139
    %2431 = vmatpush1.bf16.msra.mxu0 %v2138
    %2432 = vmatprep.subr.bf16.mxu0 %v2143
    %2433 = vmatpush1.bf16.msra.mxu0 %v2142
    %2434 = vmatprep.subr.bf16.mxu0 %v2147
    %2435 = vmatpush1.bf16.msra.mxu0 %v2146
    %2436 = vmatprep.subr.bf16.mxu0 %v2151
    %2437 = vmatpush1.bf16.msra.mxu0 %v2150
    %2438 = vmatprep.subr.bf16.mxu0 %v2155
    %2439 = vmatpush1.bf16.msra.mxu0 %v2154
    %2440 = vmatprep.subr.bf16.mxu0 %v2159
    %2441 = vmatpush1.bf16.msra.mxu0 %v2158
    %2442 = vmatprep.subr.bf16.mxu0 0
    %2443 = vmatpush1.bf16.msra.mxu0 0
    %2444 = vmatprep.subr.bf16.mxu0 0
    %2445 = vmatpush1.bf16.msra.mxu0 0
    %2446 = vmatprep.subr.bf16.mxu0 0
    %2447 = vmatpush1.bf16.msra.mxu0 0
    %2448 = vmatprep.subr.bf16.mxu0 0
    %2449 = vmatpush1.bf16.msra.mxu0 0
    %2450 = vmatprep.subr.bf16.mxu0 0
    %2451 = vmatpush1.bf16.msra.mxu0 0
    %2452 = vmatprep.subr.bf16.mxu0 0
    %2453 = vmatpush1.bf16.msra.mxu0 0
    %2454 = vmatprep.subr.bf16.mxu0 0
    %2455 = vmatpush1.bf16.msra.mxu0 0
    %2456 = vmatprep.subr.bf16.mxu0 0
    %2457 = vmatpush1.bf16.msra.mxu0 0
    %2458 = vmatprep.mubr.bf16.mxu0 0
    %2459 = vmatmul.mubr.bf16.gmra.mrb[0].mxu0 %v2425
    %v2460 = vpop.f32.mrb[0].mxu0
    %v2461 = vadd.f32 0.0, %v2460
    %v2462 = vpop.f32.mrb[0].mxu0
    %v2463 = vadd.f32 0.0, %v2462
    %v2464 = vpop.f32.mrb[0].mxu0
    %v2465 = vpop.f32.mrb[0].mxu0
    %2466 = vdwg.mxu0
    %2467 = vmatprep.subr.bf16.mxu0 %v2133
    %2468 = vmatpush1.bf16.msra.mxu0 %v2132
    %2469 = vmatprep.subr.bf16.mxu0 %v2137
    %2470 = vmatpush1.bf16.msra.mxu0 %v2136
    %2471 = vmatprep.subr.bf16.mxu0 %v2141
    %2472 = vmatpush1.bf16.msra.mxu0 %v2140
    %2473 = vmatprep.subr.bf16.mxu0 %v2145
    %2474 = vmatpush1.bf16.msra.mxu0 %v2144
    %2475 = vmatprep.subr.bf16.mxu0 %v2149
    %2476 = vmatpush1.bf16.msra.mxu0 %v2148
    %2477 = vmatprep.subr.bf16.mxu0 %v2153
    %2478 = vmatpush1.bf16.msra.mxu0 %v2152
    %2479 = vmatprep.subr.bf16.mxu0 %v2157
    %2480 = vmatpush1.bf16.msra.mxu0 %v2156
    %2481 = vmatprep.subr.bf16.mxu0 %v2161
    %2482 = vmatpush1.bf16.msra.mxu0 %v2160
    %2483 = vmatprep.subr.bf16.mxu0 0
    %2484 = vmatpush1.bf16.msra.mxu0 0
    %2485 = vmatprep.subr.bf16.mxu0 0
    %2486 = vmatpush1.bf16.msra.mxu0 0
    %2487 = vmatprep.subr.bf16.mxu0 0
    %2488 = vmatpush1.bf16.msra.mxu0 0
    %2489 = vmatprep.subr.bf16.mxu0 0
    %2490 = vmatpush1.bf16.msra.mxu0 0
    %2491 = vmatprep.subr.bf16.mxu0 0
    %2492 = vmatpush1.bf16.msra.mxu0 0
    %2493 = vmatprep.subr.bf16.mxu0 0
    %2494 = vmatpush1.bf16.msra.mxu0 0
    %2495 = vmatprep.subr.bf16.mxu0 0
    %2496 = vmatpush1.bf16.msra.mxu0 0
    %2497 = vmatprep.subr.bf16.mxu0 0
    %2498 = vmatpush1.bf16.msra.mxu0 0
    %2499 = vmatprep.mubr.bf16.mxu0 0
    %2500 = vmatmul.mubr.bf16.gmra.mrb[0].mxu0 %v2425
    %v2501 = vpop.f32.mrb[0].mxu0
    %v2502 = vadd.f32 0.0, %v2501
    %v2503 = vpop.f32.mrb[0].mxu0
    %v2504 = vadd.f32 0.0, %v2503
    %v2505 = vpop.f32.mrb[0].mxu0
    %v2506 = vpop.f32.mrb[0].mxu0
    %2507 = vdwg.mxu0
    %v2508 = vadd.f32 %v2421, %v2461
    %v2509 = vadd.f32 %v2422, %v2463
    %v2510 = vadd.f32 %v2423, %v2502
    %v2511 = vadd.f32 %v2424, %v2504
    %v2512 = vxor.u32 %v2508, 2147483648
    %v2513 = vmul.f32 %v2512, 1.442695
    %v2514 = vpow.pop %v2513
    %v2515 = vadd.f32 %v2514, 1.0
    %v2516 = vrcp.pop %v2515
    %v2517 = vmul.f32 1.0, %v2516
    %v2518 = vxor.u32 %v2509, 2147483648
    %v2519 = vmul.f32 %v2518, 1.442695
    %v2520 = vpow.pop %v2519
    %v2521 = vadd.f32 %v2520, 1.0
    %v2522 = vrcp.pop %v2521
    %v2523 = vmul.f32 1.0, %v2522
    %v2524 = vtanh.pop %v2510
    %v2525 = vxor.u32 %v2511, 2147483648
    %v2526 = vmul.f32 %v2525, 1.442695
    %v2527 = vpow.pop %v2526
    %v2528 = vadd.f32 %v2527, 1.0
    %v2529 = vrcp.pop %v2528
    %v2530 = vmul.f32 1.0, %v2529
    %v2531 = vmul.f32 %v2523, %v2417
    %v2532 = vmul.f32 %v2517, %v2524
    %v2533 = vadd.f32 %v2531, %v2532
    %v2534 = vtanh.pop %v2533
    %v2535 = vmul.f32 %v2530, %v2534
    %2536 = vst [vmem:[#allocation4 + $0x10] sm:$0xff] %v2535
    %v2537 = vld [vmem:[#allocation2 + $0x60] sm:$0xff]
    %v2538 = vld [vmem:[#allocation2 + $0x68] sm:$0xff]
    %v2539 = vld [vmem:[#allocation2 + $0x70] sm:$0xff]
    %v2540 = vld [vmem:[#allocation2 + $0x78] sm:$0xff]
    %v2541 = vpack.c.bf16 %v2535, %v2535
    %2542 = vmatprep.subr.bf16.mxu0 %v2131
    %2543 = vmatpush1.bf16.msra.mxu0 %v2130
    %2544 = vmatprep.subr.bf16.mxu0 %v2135
    %2545 = vmatpush1.bf16.msra.mxu0 %v2134
    %2546 = vmatprep.subr.bf16.mxu0 %v2139
    %2547 = vmatpush1.bf16.msra.mxu0 %v2138
    %2548 = vmatprep.subr.bf16.mxu0 %v2143
    %2549 = vmatpush1.bf16.msra.mxu0 %v2142
    %2550 = vmatprep.subr.bf16.mxu0 %v2147
    %2551 = vmatpush1.bf16.msra.mxu0 %v2146
    %2552 = vmatprep.subr.bf16.mxu0 %v2151
    %2553 = vmatpush1.bf16.msra.mxu0 %v2150
    %2554 = vmatprep.subr.bf16.mxu0 %v2155
    %2555 = vmatpush1.bf16.msra.mxu0 %v2154
    %2556 = vmatprep.subr.bf16.mxu0 %v2159
    %2557 = vmatpush1.bf16.msra.mxu0 %v2158
    %2558 = vmatprep.subr.bf16.mxu0 0
    %2559 = vmatpush1.bf16.msra.mxu0 0
    %2560 = vmatprep.subr.bf16.mxu0 0
    %2561 = vmatpush1.bf16.msra.mxu0 0
    %2562 = vmatprep.subr.bf16.mxu0 0
    %2563 = vmatpush1.bf16.msra.mxu0 0
    %2564 = vmatprep.subr.bf16.mxu0 0
    %2565 = vmatpush1.bf16.msra.mxu0 0
    %2566 = vmatprep.subr.bf16.mxu0 0
    %2567 = vmatpush1.bf16.msra.mxu0 0
    %2568 = vmatprep.subr.bf16.mxu0 0
    %2569 = vmatpush1.bf16.msra.mxu0 0
    %2570 = vmatprep.subr.bf16.mxu0 0
    %2571 = vmatpush1.bf16.msra.mxu0 0
    %2572 = vmatprep.subr.bf16.mxu0 0
    %2573 = vmatpush1.bf16.msra.mxu0 0
    %2574 = vmatprep.mubr.bf16.mxu0 0
    %2575 = vmatmul.mubr.bf16.gmra.mrb[0].mxu0 %v2541
    %v2576 = vpop.f32.mrb[0].mxu0
    %v2577 = vadd.f32 0.0, %v2576
    %v2578 = vpop.f32.mrb[0].mxu0
    %v2579 = vadd.f32 0.0, %v2578
    %v2580 = vpop.f32.mrb[0].mxu0
    %v2581 = vpop.f32.mrb[0].mxu0
    %2582 = vdwg.mxu0
    %2583 = vmatprep.subr.bf16.mxu0 %v2133
    %2584 = vmatpush1.bf16.msra.mxu0 %v2132
    %2585 = vmatprep.subr.bf16.mxu0 %v2137
    %2586 = vmatpush1.bf16.msra.mxu0 %v2136
    %2587 = vmatprep.subr.bf16.mxu0 %v2141
    %2588 = vmatpush1.bf16.msra.mxu0 %v2140
    %2589 = vmatprep.subr.bf16.mxu0 %v2145
    %2590 = vmatpush1.bf16.msra.mxu0 %v2144
    %2591 = vmatprep.subr.bf16.mxu0 %v2149
    %2592 = vmatpush1.bf16.msra.mxu0 %v2148
    %2593 = vmatprep.subr.bf16.mxu0 %v2153
    %2594 = vmatpush1.bf16.msra.mxu0 %v2152
    %2595 = vmatprep.subr.bf16.mxu0 %v2157
    %2596 = vmatpush1.bf16.msra.mxu0 %v2156
    %2597 = vmatprep.subr.bf16.mxu0 %v2161
    %2598 = vmatpush1.bf16.msra.mxu0 %v2160
    %2599 = vmatprep.subr.bf16.mxu0 0
    %2600 = vmatpush1.bf16.msra.mxu0 0
    %2601 = vmatprep.subr.bf16.mxu0 0
    %2602 = vmatpush1.bf16.msra.mxu0 0
    %2603 = vmatprep.subr.bf16.mxu0 0
    %2604 = vmatpush1.bf16.msra.mxu0 0
    %2605 = vmatprep.subr.bf16.mxu0 0
    %2606 = vmatpush1.bf16.msra.mxu0 0
    %2607 = vmatprep.subr.bf16.mxu0 0
    %2608 = vmatpush1.bf16.msra.mxu0 0
    %2609 = vmatprep.subr.bf16.mxu0 0
    %2610 = vmatpush1.bf16.msra.mxu0 0
    %2611 = vmatprep.subr.bf16.mxu0 0
    %2612 = vmatpush1.bf16.msra.mxu0 0
    %2613 = vmatprep.subr.bf16.mxu0 0
    %2614 = vmatpush1.bf16.msra.mxu0 0
    %2615 = vmatprep.mubr.bf16.mxu0 0
    %2616 = vmatmul.mubr.bf16.gmra.mrb[0].mxu0 %v2541
    %v2617 = vpop.f32.mrb[0].mxu0
    %v2618 = vadd.f32 0.0, %v2617
    %v2619 = vpop.f32.mrb[0].mxu0
    %v2620 = vadd.f32 0.0, %v2619
    %v2621 = vpop.f32.mrb[0].mxu0
    %v2622 = vpop.f32.mrb[0].mxu0
    %2623 = vdwg.mxu0
    %v2624 = vadd.f32 %v2537, %v2577
    %v2625 = vadd.f32 %v2538, %v2579
    %v2626 = vadd.f32 %v2539, %v2618
    %v2627 = vadd.f32 %v2540, %v2620
    %v2628 = vxor.u32 %v2624, 2147483648
    %v2629 = vmul.f32 %v2628, 1.442695
    %v2630 = vpow.pop %v2629
    %v2631 = vadd.f32 %v2630, 1.0
    %v2632 = vrcp.pop %v2631
    %v2633 = vmul.f32 1.0, %v2632
    %v2634 = vxor.u32 %v2625, 2147483648
    %v2635 = vmul.f32 %v2634, 1.442695
    %v2636 = vpow.pop %v2635
    %v2637 = vadd.f32 %v2636, 1.0
    %v2638 = vrcp.pop %v2637
    %v2639 = vmul.f32 1.0, %v2638
    %v2640 = vtanh.pop %v2626
    %v2641 = vxor.u32 %v2627, 2147483648
    %v2642 = vmul.f32 %v2641, 1.442695
    %v2643 = vpow.pop %v2642
    %v2644 = vadd.f32 %v2643, 1.0
    %v2645 = vrcp.pop %v2644
    %v2646 = vmul.f32 1.0, %v2645
    %v2647 = vmul.f32 %v2639, %v2533
    %v2648 = vmul.f32 %v2633, %v2640
    %v2649 = vadd.f32 %v2647, %v2648
    %v2650 = vtanh.pop %v2649
    %v2651 = vmul.f32 %v2646, %v2650
    %2652 = vst [vmem:[#allocation4 + $0x18] sm:$0xff] %v2651
    %v2653 = vld [vmem:[#allocation2 + $0x80] sm:$0xff]
    %v2654 = vld [vmem:[#allocation2 + $0x88] sm:$0xff]
    %v2655 = vld [vmem:[#allocation2 + $0x90] sm:$0xff]
    %v2656 = vld [vmem:[#allocation2 + $0x98] sm:$0xff]
    %v2657 = vpack.c.bf16 %v2651, %v2651
    %2658 = vmatprep.subr.bf16.mxu0 %v2131
    %2659 = vmatpush1.bf16.msra.mxu0 %v2130
    %2660 = vmatprep.subr.bf16.mxu0 %v2135
    %2661 = vmatpush1.bf16.msra.mxu0 %v2134
    %2662 = vmatprep.subr.bf16.mxu0 %v2139
    %2663 = vmatpush1.bf16.msra.mxu0 %v2138
    %2664 = vmatprep.subr.bf16.mxu0 %v2143
    %2665 = vmatpush1.bf16.msra.mxu0 %v2142
    %2666 = vmatprep.subr.bf16.mxu0 %v2147
    %2667 = vmatpush1.bf16.msra.mxu0 %v2146
    %2668 = vmatprep.subr.bf16.mxu0 %v2151
    %2669 = vmatpush1.bf16.msra.mxu0 %v2150
    %2670 = vmatprep.subr.bf16.mxu0 %v2155
    %2671 = vmatpush1.bf16.msra.mxu0 %v2154
    %2672 = vmatprep.subr.bf16.mxu0 %v2159
    %2673 = vmatpush1.bf16.msra.mxu0 %v2158
    %2674 = vmatprep.subr.bf16.mxu0 0
    %2675 = vmatpush1.bf16.msra.mxu0 0
    %2676 = vmatprep.subr.bf16.mxu0 0
    %2677 = vmatpush1.bf16.msra.mxu0 0
    %2678 = vmatprep.subr.bf16.mxu0 0
    %2679 = vmatpush1.bf16.msra.mxu0 0
    %2680 = vmatprep.subr.bf16.mxu0 0
    %2681 = vmatpush1.bf16.msra.mxu0 0
    %2682 = vmatprep.subr.bf16.mxu0 0
    %2683 = vmatpush1.bf16.msra.mxu0 0
    %2684 = vmatprep.subr.bf16.mxu0 0
    %2685 = vmatpush1.bf16.msra.mxu0 0
    %2686 = vmatprep.subr.bf16.mxu0 0
    %2687 = vmatpush1.bf16.msra.mxu0 0
    %2688 = vmatprep.subr.bf16.mxu0 0
    %2689 = vmatpush1.bf16.msra.mxu0 0
    %2690 = vmatprep.mubr.bf16.mxu0 0
    %2691 = vmatmul.mubr.bf16.gmra.mrb[0].mxu0 %v2657
    %v2692 = vpop.f32.mrb[0].mxu0
    %v2693 = vadd.f32 0.0, %v2692
    %v2694 = vpop.f32.mrb[0].mxu0
    %v2695 = vadd.f32 0.0, %v2694
    %v2696 = vpop.f32.mrb[0].mxu0
    %v2697 = vpop.f32.mrb[0].mxu0
    %2698 = vdwg.mxu0
    %2699 = vmatprep.subr.bf16.mxu0 %v2133
    %2700 = vmatpush1.bf16.msra.mxu0 %v2132
    %2701 = vmatprep.subr.bf16.mxu0 %v2137
    %2702 = vmatpush1.bf16.msra.mxu0 %v2136
    %2703 = vmatprep.subr.bf16.mxu0 %v2141
    %2704 = vmatpush1.bf16.msra.mxu0 %v2140
    %2705 = vmatprep.subr.bf16.mxu0 %v2145
    %2706 = vmatpush1.bf16.msra.mxu0 %v2144
    %2707 = vmatprep.subr.bf16.mxu0 %v2149
    %2708 = vmatpush1.bf16.msra.mxu0 %v2148
    %2709 = vmatprep.subr.bf16.mxu0 %v2153
    %2710 = vmatpush1.bf16.msra.mxu0 %v2152
    %2711 = vmatprep.subr.bf16.mxu0 %v2157
    %2712 = vmatpush1.bf16.msra.mxu0 %v2156
    %2713 = vmatprep.subr.bf16.mxu0 %v2161
    %2714 = vmatpush1.bf16.msra.mxu0 %v2160
    %2715 = vmatprep.subr.bf16.mxu0 0
    %2716 = vmatpush1.bf16.msra.mxu0 0
    %2717 = vmatprep.subr.bf16.mxu0 0
    %2718 = vmatpush1.bf16.msra.mxu0 0
    %2719 = vmatprep.subr.bf16.mxu0 0
    %2720 = vmatpush1.bf16.msra.mxu0 0
    %2721 = vmatprep.subr.bf16.mxu0 0
    %2722 = vmatpush1.bf16.msra.mxu0 0
    %2723 = vmatprep.subr.bf16.mxu0 0
    %2724 = vmatpush1.bf16.msra.mxu0 0
    %2725 = vmatprep.subr.bf16.mxu0 0
    %2726 = vmatpush1.bf16.msra.mxu0 0
    %2727 = vmatprep.subr.bf16.mxu0 0
    %2728 = vmatpush1.bf16.msra.mxu0 0
    %2729 = vmatprep.subr.bf16.mxu0 0
    %2730 = vmatpush1.bf16.msra.mxu0 0
    %2731 = vmatprep.mubr.bf16.mxu0 0
    %2732 = vmatmul.mubr.bf16.gmra.mrb[0].mxu0 %v2657
    %v2733 = vpop.f32.mrb[0].mxu0
    %v2734 = vadd.f32 0.0, %v2733
    %v2735 = vpop.f32.mrb[0].mxu0
    %v2736 = vadd.f32 0.0, %v2735
    %v2737 = vpop.f32.mrb[0].mxu0
    %v2738 = vpop.f32.mrb[0].mxu0
    %2739 = vdwg.mxu0
    %v2740 = vadd.f32 %v2653, %v2693
    %v2741 = vadd.f32 %v2654, %v2695
    %v2742 = vadd.f32 %v2655, %v2734
    %v2743 = vadd.f32 %v2656, %v2736
    %v2744 = vxor.u32 %v2740, 2147483648
    %v2745 = vmul.f32 %v2744, 1.442695
    %v2746 = vpow.pop %v2745
    %v2747 = vadd.f32 %v2746, 1.0
    %v2748 = vrcp.pop %v2747
    %v2749 = vmul.f32 1.0, %v2748
    %v2750 = vxor.u32 %v2741, 2147483648
    %v2751 = vmul.f32 %v2750, 1.442695
    %v2752 = vpow.pop %v2751
    %v2753 = vadd.f32 %v2752, 1.0
    %v2754 = vrcp.pop %v2753
    %v2755 = vmul.f32 1.0, %v2754
    %v2756 = vtanh.pop %v2742
    %v2757 = vxor.u32 %v2743, 2147483648
    %v2758 = vmul.f32 %v2757, 1.442695
    %v2759 = vpow.pop %v2758
    %v2760 = vadd.f32 %v2759, 1.0
    %v2761 = vrcp.pop %v2760
    %v2762 = vmul.f32 1.0, %v2761
    %v2763 = vmul.f32 %v2755, %v2649
    %v2764 = vmul.f32 %v2749, %v2756
    %v2765 = vadd.f32 %v2763, %v2764
    %v2766 = vtanh.pop %v2765
    %v2767 = vmul.f32 %v2762, %v2766
    %2768 = vst [vmem:[#allocation4 + $0x20] sm:$0xff] %v2767
    %v2769 = vld [vmem:[#allocation2 + $0xa0] sm:$0xff]
    %v2770 = vld [vmem:[#allocation2 + $0xa8] sm:$0xff]
    %v2771 = vld [vmem:[#allocation2 + $0xb0] sm:$0xff]
    %v2772 = vld [vmem:[#allocation2 + $0xb8] sm:$0xff]
    %v2773 = vpack.c.bf16 %v2767, %v2767
    %2774 = vmatprep.subr.bf16.mxu0 %v2131
    %2775 = vmatpush1.bf16.msra.mxu0 %v2130
    %2776 = vmatprep.subr.bf16.mxu0 %v2135
    %2777 = vmatpush1.bf16.msra.mxu0 %v2134
    %2778 = vmatprep.subr.bf16.mxu0 %v2139
    %2779 = vmatpush1.bf16.msra.mxu0 %v2138
    %2780 = vmatprep.subr.bf16.mxu0 %v2143
    %2781 = vmatpush1.bf16.msra.mxu0 %v2142
    %2782 = vmatprep.subr.bf16.mxu0 %v2147
    %2783 = vmatpush1.bf16.msra.mxu0 %v2146
    %2784 = vmatprep.subr.bf16.mxu0 %v2151
    %2785 = vmatpush1.bf16.msra.mxu0 %v2150
    %2786 = vmatprep.subr.bf16.mxu0 %v2155
    %2787 = vmatpush1.bf16.msra.mxu0 %v2154
    %2788 = vmatprep.subr.bf16.mxu0 %v2159
    %2789 = vmatpush1.bf16.msra.mxu0 %v2158
    %2790 = vmatprep.subr.bf16.mxu0 0
    %2791 = vmatpush1.bf16.msra.mxu0 0
    %2792 = vmatprep.subr.bf16.mxu0 0
    %2793 = vmatpush1.bf16.msra.mxu0 0
    %2794 = vmatprep.subr.bf16.mxu0 0
    %2795 = vmatpush1.bf16.msra.mxu0 0
    %2796 = vmatprep.subr.bf16.mxu0 0
    %2797 = vmatpush1.bf16.msra.mxu0 0
    %2798 = vmatprep.subr.bf16.mxu0 0
    %2799 = vmatpush1.bf16.msra.mxu0 0
    %2800 = vmatprep.subr.bf16.mxu0 0
    %2801 = vmatpush1.bf16.msra.mxu0 0
    %2802 = vmatprep.subr.bf16.mxu0 0
    %2803 = vmatpush1.bf16.msra.mxu0 0
    %2804 = vmatprep.subr.bf16.mxu0 0
    %2805 = vmatpush1.bf16.msra.mxu0 0
    %2806 = vmatprep.mubr.bf16.mxu0 0
    %2807 = vmatmul.mubr.bf16.gmra.mrb[0].mxu0 %v2773
    %v2808 = vpop.f32.mrb[0].mxu0
    %v2809 = vadd.f32 0.0, %v2808
    %v2810 = vpop.f32.mrb[0].mxu0
    %v2811 = vadd.f32 0.0, %v2810
    %v2812 = vpop.f32.mrb[0].mxu0
    %v2813 = vpop.f32.mrb[0].mxu0
    %2814 = vdwg.mxu0
    %2815 = vmatprep.subr.bf16.mxu0 %v2133
    %2816 = vmatpush1.bf16.msra.mxu0 %v2132
    %2817 = vmatprep.subr.bf16.mxu0 %v2137
    %2818 = vmatpush1.bf16.msra.mxu0 %v2136
    %2819 = vmatprep.subr.bf16.mxu0 %v2141
    %2820 = vmatpush1.bf16.msra.mxu0 %v2140
    %2821 = vmatprep.subr.bf16.mxu0 %v2145
    %2822 = vmatpush1.bf16.msra.mxu0 %v2144
    %2823 = vmatprep.subr.bf16.mxu0 %v2149
    %2824 = vmatpush1.bf16.msra.mxu0 %v2148
    %2825 = vmatprep.subr.bf16.mxu0 %v2153
    %2826 = vmatpush1.bf16.msra.mxu0 %v2152
    %2827 = vmatprep.subr.bf16.mxu0 %v2157
    %2828 = vmatpush1.bf16.msra.mxu0 %v2156
    %2829 = vmatprep.subr.bf16.mxu0 %v2161
    %2830 = vmatpush1.bf16.msra.mxu0 %v2160
    %2831 = vmatprep.subr.bf16.mxu0 0
    %2832 = vmatpush1.bf16.msra.mxu0 0
    %2833 = vmatprep.subr.bf16.mxu0 0
    %2834 = vmatpush1.bf16.msra.mxu0 0
    %2835 = vmatprep.subr.bf16.mxu0 0
    %2836 = vmatpush1.bf16.msra.mxu0 0
    %2837 = vmatprep.subr.bf16.mxu0 0
    %2838 = vmatpush1.bf16.msra.mxu0 0
    %2839 = vmatprep.subr.bf16.mxu0 0
    %2840 = vmatpush1.bf16.msra.mxu0 0
    %2841 = vmatprep.subr.bf16.mxu0 0
    %2842 = vmatpush1.bf16.msra.mxu0 0
    %2843 = vmatprep.subr.bf16.mxu0 0
    %2844 = vmatpush1.bf16.msra.mxu0 0
    %2845 = vmatprep.subr.bf16.mxu0 0
    %2846 = vmatpush1.bf16.msra.mxu0 0
    %2847 = vmatprep.mubr.bf16.mxu0 0
    %2848 = vmatmul.mubr.bf16.gmra.mrb[0].mxu0 %v2773
    %v2849 = vpop.f32.mrb[0].mxu0
    %v2850 = vadd.f32 0.0, %v2849
    %v2851 = vpop.f32.mrb[0].mxu0
    %v2852 = vadd.f32 0.0, %v2851
    %v2853 = vpop.f32.mrb[0].mxu0
    %v2854 = vpop.f32.mrb[0].mxu0
    %2855 = vdwg.mxu0
    %v2856 = vadd.f32 %v2769, %v2809
    %v2857 = vadd.f32 %v2770, %v2811
    %v2858 = vadd.f32 %v2771, %v2850
    %v2859 = vadd.f32 %v2772, %v2852
    %v2860 = vxor.u32 %v2856, 2147483648
    %v2861 = vmul.f32 %v2860, 1.442695
    %v2862 = vpow.pop %v2861
    %v2863 = vadd.f32 %v2862, 1.0
    %v2864 = vrcp.pop %v2863
    %v2865 = vmul.f32 1.0, %v2864
    %v2866 = vxor.u32 %v2857, 2147483648
    %v2867 = vmul.f32 %v2866, 1.442695
    %v2868 = vpow.pop %v2867
    %v2869 = vadd.f32 %v2868, 1.0
    %v2870 = vrcp.pop %v2869
    %v2871 = vmul.f32 1.0, %v2870
    %v2872 = vtanh.pop %v2858
    %v2873 = vxor.u32 %v2859, 2147483648
    %v2874 = vmul.f32 %v2873, 1.442695
    %v2875 = vpow.pop %v2874
    %v2876 = vadd.f32 %v2875, 1.0
    %v2877 = vrcp.pop %v2876
    %v2878 = vmul.f32 1.0, %v2877
    %v2879 = vmul.f32 %v2871, %v2765
    %v2880 = vmul.f32 %v2865, %v2872
    %v2881 = vadd.f32 %v2879, %v2880
    %v2882 = vtanh.pop %v2881
    %v2883 = vmul.f32 %v2878, %v2882
    %2884 = vst [vmem:[#allocation4 + $0x28] sm:$0xff] %v2883
    %v2885 = vld [vmem:[#allocation2 + $0xc0] sm:$0xff]
    %v2886 = vld [vmem:[#allocation2 + $0xc8] sm:$0xff]
    %v2887 = vld [vmem:[#allocation2 + $0xd0] sm:$0xff]
    %v2888 = vld [vmem:[#allocation2 + $0xd8] sm:$0xff]
    %v2889 = vpack.c.bf16 %v2883, %v2883
    %2890 = vmatprep.subr.bf16.mxu0 %v2131
    %2891 = vmatpush1.bf16.msra.mxu0 %v2130
    %2892 = vmatprep.subr.bf16.mxu0 %v2135
    %2893 = vmatpush1.bf16.msra.mxu0 %v2134
    %2894 = vmatprep.subr.bf16.mxu0 %v2139
    %2895 = vmatpush1.bf16.msra.mxu0 %v2138
    %2896 = vmatprep.subr.bf16.mxu0 %v2143
    %2897 = vmatpush1.bf16.msra.mxu0 %v2142
    %2898 = vmatprep.subr.bf16.mxu0 %v2147
    %2899 = vmatpush1.bf16.msra.mxu0 %v2146
    %2900 = vmatprep.subr.bf16.mxu0 %v2151
    %2901 = vmatpush1.bf16.msra.mxu0 %v2150
    %2902 = vmatprep.subr.bf16.mxu0 %v2155
    %2903 = vmatpush1.bf16.msra.mxu0 %v2154
    %2904 = vmatprep.subr.bf16.mxu0 %v2159
    %2905 = vmatpush1.bf16.msra.mxu0 %v2158
    %2906 = vmatprep.subr.bf16.mxu0 0
    %2907 = vmatpush1.bf16.msra.mxu0 0
    %2908 = vmatprep.subr.bf16.mxu0 0
    %2909 = vmatpush1.bf16.msra.mxu0 0
    %2910 = vmatprep.subr.bf16.mxu0 0
    %2911 = vmatpush1.bf16.msra.mxu0 0
    %2912 = vmatprep.subr.bf16.mxu0 0
    %2913 = vmatpush1.bf16.msra.mxu0 0
    %2914 = vmatprep.subr.bf16.mxu0 0
    %2915 = vmatpush1.bf16.msra.mxu0 0
    %2916 = vmatprep.subr.bf16.mxu0 0
    %2917 = vmatpush1.bf16.msra.mxu0 0
    %2918 = vmatprep.subr.bf16.mxu0 0
    %2919 = vmatpush1.bf16.msra.mxu0 0
    %2920 = vmatprep.subr.bf16.mxu0 0
    %2921 = vmatpush1.bf16.msra.mxu0 0
    %2922 = vmatprep.mubr.bf16.mxu0 0
    %2923 = vmatmul.mubr.bf16.gmra.mrb[0].mxu0 %v2889
    %v2924 = vpop.f32.mrb[0].mxu0
    %v2925 = vadd.f32 0.0, %v2924
    %v2926 = vpop.f32.mrb[0].mxu0
    %v2927 = vadd.f32 0.0, %v2926
    %v2928 = vpop.f32.mrb[0].mxu0
    %v2929 = vpop.f32.mrb[0].mxu0
    %2930 = vdwg.mxu0
    %2931 = vmatprep.subr.bf16.mxu0 %v2133
    %2932 = vmatpush1.bf16.msra.mxu0 %v2132
    %2933 = vmatprep.subr.bf16.mxu0 %v2137
    %2934 = vmatpush1.bf16.msra.mxu0 %v2136
    %2935 = vmatprep.subr.bf16.mxu0 %v2141
    %2936 = vmatpush1.bf16.msra.mxu0 %v2140
    %2937 = vmatprep.subr.bf16.mxu0 %v2145
    %2938 = vmatpush1.bf16.msra.mxu0 %v2144
    %2939 = vmatprep.subr.bf16.mxu0 %v2149
    %2940 = vmatpush1.bf16.msra.mxu0 %v2148
    %2941 = vmatprep.subr.bf16.mxu0 %v2153
    %2942 = vmatpush1.bf16.msra.mxu0 %v2152
    %2943 = vmatprep.subr.bf16.mxu0 %v2157
    %2944 = vmatpush1.bf16.msra.mxu0 %v2156
    %2945 = vmatprep.subr.bf16.mxu0 %v2161
    %2946 = vmatpush1.bf16.msra.mxu0 %v2160
    %2947 = vmatprep.subr.bf16.mxu0 0
    %2948 = vmatpush1.bf16.msra.mxu0 0
    %2949 = vmatprep.subr.bf16.mxu0 0
    %2950 = vmatpush1.bf16.msra.mxu0 0
    %2951 = vmatprep.subr.bf16.mxu0 0
    %2952 = vmatpush1.bf16.msra.mxu0 0
    %2953 = vmatprep.subr.bf16.mxu0 0
    %2954 = vmatpush1.bf16.msra.mxu0 0
    %2955 = vmatprep.subr.bf16.mxu0 0
    %2956 = vmatpush1.bf16.msra.mxu0 0
    %2957 = vmatprep.subr.bf16.mxu0 0
    %2958 = vmatpush1.bf16.msra.mxu0 0
    %2959 = vmatprep.subr.bf16.mxu0 0
    %2960 = vmatpush1.bf16.msra.mxu0 0
    %2961 = vmatprep.subr.bf16.mxu0 0
    %2962 = vmatpush1.bf16.msra.mxu0 0
    %2963 = vmatprep.mubr.bf16.mxu0 0
    %2964 = vmatmul.mubr.bf16.gmra.mrb[0].mxu0 %v2889
    %v2965 = vpop.f32.mrb[0].mxu0
    %v2966 = vadd.f32 0.0, %v2965
    %v2967 = vpop.f32.mrb[0].mxu0
    %v2968 = vadd.f32 0.0, %v2967
    %v2969 = vpop.f32.mrb[0].mxu0
    %v2970 = vpop.f32.mrb[0].mxu0
    %2971 = vdwg.mxu0
    %v2972 = vadd.f32 %v2885, %v2925
    %v2973 = vadd.f32 %v2886, %v2927
    %v2974 = vadd.f32 %v2887, %v2966
    %v2975 = vadd.f32 %v2888, %v2968
    %v2976 = vxor.u32 %v2972, 2147483648
    %v2977 = vmul.f32 %v2976, 1.442695
    %v2978 = vpow.pop %v2977
    %v2979 = vadd.f32 %v2978, 1.0
    %v2980 = vrcp.pop %v2979
    %v2981 = vmul.f32 1.0, %v2980
    %v2982 = vxor.u32 %v2973, 2147483648
    %v2983 = vmul.f32 %v2982, 1.442695
    %v2984 = vpow.pop %v2983
    %v2985 = vadd.f32 %v2984, 1.0
    %v2986 = vrcp.pop %v2985
    %v2987 = vmul.f32 1.0, %v2986
    %v2988 = vtanh.pop %v2974
    %v2989 = vxor.u32 %v2975, 2147483648
    %v2990 = vmul.f32 %v2989, 1.442695
    %v2991 = vpow.pop %v2990
    %v2992 = vadd.f32 %v2991, 1.0
    %v2993 = vrcp.pop %v2992
    %v2994 = vmul.f32 1.0, %v2993
    %v2995 = vmul.f32 %v2987, %v2881
    %v2996 = vmul.f32 %v2981, %v2988
    %v2997 = vadd.f32 %v2995, %v2996
    %v2998 = vtanh.pop %v2997
    %v2999 = vmul.f32 %v2994, %v2998
    %3000 = vst [vmem:[#allocation4 + $0x30] sm:$0xff] %v2999
    %v3001 = vld [vmem:[#allocation2 + $0xe0] sm:$0xff]
    %v3002 = vld [vmem:[#allocation2 + $0xe8] sm:$0xff]
    %v3003 = vld [vmem:[#allocation2 + $0xf0] sm:$0xff]
    %v3004 = vld [vmem:[#allocation2 + $0xf8] sm:$0xff]
    %v3005 = vpack.c.bf16 %v2999, %v2999
    %3006 = vmatprep.subr.bf16.mxu0 %v2131
    %3007 = vmatpush1.bf16.msra.mxu0 %v2130
    %3008 = vmatprep.subr.bf16.mxu0 %v2135
    %3009 = vmatpush1.bf16.msra.mxu0 %v2134
    %3010 = vmatprep.subr.bf16.mxu0 %v2139
    %3011 = vmatpush1.bf16.msra.mxu0 %v2138
    %3012 = vmatprep.subr.bf16.mxu0 %v2143
    %3013 = vmatpush1.bf16.msra.mxu0 %v2142
    %3014 = vmatprep.subr.bf16.mxu0 %v2147
    %3015 = vmatpush1.bf16.msra.mxu0 %v2146
    %3016 = vmatprep.subr.bf16.mxu0 %v2151
    %3017 = vmatpush1.bf16.msra.mxu0 %v2150
    %3018 = vmatprep.subr.bf16.mxu0 %v2155
    %3019 = vmatpush1.bf16.msra.mxu0 %v2154
    %3020 = vmatprep.subr.bf16.mxu0 %v2159
    %3021 = vmatpush1.bf16.msra.mxu0 %v2158
    %3022 = vmatprep.subr.bf16.mxu0 0
    %3023 = vmatpush1.bf16.msra.mxu0 0
    %3024 = vmatprep.subr.bf16.mxu0 0
    %3025 = vmatpush1.bf16.msra.mxu0 0
    %3026 = vmatprep.subr.bf16.mxu0 0
    %3027 = vmatpush1.bf16.msra.mxu0 0
    %3028 = vmatprep.subr.bf16.mxu0 0
    %3029 = vmatpush1.bf16.msra.mxu0 0
    %3030 = vmatprep.subr.bf16.mxu0 0
    %3031 = vmatpush1.bf16.msra.mxu0 0
    %3032 = vmatprep.subr.bf16.mxu0 0
    %3033 = vmatpush1.bf16.msra.mxu0 0
    %3034 = vmatprep.subr.bf16.mxu0 0
    %3035 = vmatpush1.bf16.msra.mxu0 0
    %3036 = vmatprep.subr.bf16.mxu0 0
    %3037 = vmatpush1.bf16.msra.mxu0 0
    %3038 = vmatprep.mubr.bf16.mxu0 0
    %3039 = vmatmul.mubr.bf16.gmra.mrb[0].mxu0 %v3005
    %v3040 = vpop.f32.mrb[0].mxu0
    %v3041 = vadd.f32 0.0, %v3040
    %v3042 = vpop.f32.mrb[0].mxu0
    %v3043 = vadd.f32 0.0, %v3042
    %v3044 = vpop.f32.mrb[0].mxu0
    %v3045 = vpop.f32.mrb[0].mxu0
    %3046 = vdwg.mxu0
    %3047 = vmatprep.subr.bf16.mxu0 %v2133
    %3048 = vmatpush1.bf16.msra.mxu0 %v2132
    %3049 = vmatprep.subr.bf16.mxu0 %v2137
    %3050 = vmatpush1.bf16.msra.mxu0 %v2136
    %3051 = vmatprep.subr.bf16.mxu0 %v2141
    %3052 = vmatpush1.bf16.msra.mxu0 %v2140
    %3053 = vmatprep.subr.bf16.mxu0 %v2145
    %3054 = vmatpush1.bf16.msra.mxu0 %v2144
    %3055 = vmatprep.subr.bf16.mxu0 %v2149
    %3056 = vmatpush1.bf16.msra.mxu0 %v2148
    %3057 = vmatprep.subr.bf16.mxu0 %v2153
    %3058 = vmatpush1.bf16.msra.mxu0 %v2152
    %3059 = vmatprep.subr.bf16.mxu0 %v2157
    %3060 = vmatpush1.bf16.msra.mxu0 %v2156
    %3061 = vmatprep.subr.bf16.mxu0 %v2161
    %3062 = vmatpush1.bf16.msra.mxu0 %v2160
    %3063 = vmatprep.subr.bf16.mxu0 0
    %3064 = vmatpush1.bf16.msra.mxu0 0
    %3065 = vmatprep.subr.bf16.mxu0 0
    %3066 = vmatpush1.bf16.msra.mxu0 0
    %3067 = vmatprep.subr.bf16.mxu0 0
    %3068 = vmatpush1.bf16.msra.mxu0 0
    %3069 = vmatprep.subr.bf16.mxu0 0
    %3070 = vmatpush1.bf16.msra.mxu0 0
    %3071 = vmatprep.subr.bf16.mxu0 0
    %3072 = vmatpush1.bf16.msra.mxu0 0
    %3073 = vmatprep.subr.bf16.mxu0 0
    %3074 = vmatpush1.bf16.msra.mxu0 0
    %3075 = vmatprep.subr.bf16.mxu0 0
    %3076 = vmatpush1.bf16.msra.mxu0 0
    %3077 = vmatprep.subr.bf16.mxu0 0
    %3078 = vmatpush1.bf16.msra.mxu0 0
    %3079 = vmatprep.mubr.bf16.mxu0 0
    %3080 = vmatmul.mubr.bf16.gmra.mrb[0].mxu0 %v3005
    %v3081 = vpop.f32.mrb[0].mxu0
    %v3082 = vadd.f32 0.0, %v3081
    %v3083 = vpop.f32.mrb[0].mxu0
    %v3084 = vadd.f32 0.0, %v3083
    %v3085 = vpop.f32.mrb[0].mxu0
    %v3086 = vpop.f32.mrb[0].mxu0
    %3087 = vdwg.mxu0
    %v3088 = vadd.f32 %v3001, %v3041
    %v3089 = vadd.f32 %v3002, %v3043
    %v3090 = vadd.f32 %v3003, %v3082
    %v3091 = vadd.f32 %v3004, %v3084
    %v3092 = vxor.u32 %v3088, 2147483648
    %v3093 = vmul.f32 %v3092, 1.442695
    %v3094 = vpow.pop %v3093
    %v3095 = vadd.f32 %v3094, 1.0
    %v3096 = vrcp.pop %v3095
    %v3097 = vmul.f32 1.0, %v3096
    %v3098 = vxor.u32 %v3089, 2147483648
    %v3099 = vmul.f32 %v3098, 1.442695
    %v3100 = vpow.pop %v3099
    %v3101 = vadd.f32 %v3100, 1.0
    %v3102 = vrcp.pop %v3101
    %v3103 = vmul.f32 1.0, %v3102
    %v3104 = vtanh.pop %v3090
    %v3105 = vxor.u32 %v3091, 2147483648
    %v3106 = vmul.f32 %v3105, 1.442695
    %v3107 = vpow.pop %v3106
    %v3108 = vadd.f32 %v3107, 1.0
    %v3109 = vrcp.pop %v3108
    %v3110 = vmul.f32 1.0, %v3109
    %v3111 = vmul.f32 %v3103, %v2997
    %v3112 = vmul.f32 %v3097, %v3104
    %v3113 = vadd.f32 %v3111, %v3112
    %v3114 = vtanh.pop %v3113
    %v3115 = vmul.f32 %v3110, %v3114
    %3116 = vst [vmem:[#allocation4 + $0x38] sm:$0xff] %v3115
    %v3117 = vld [vmem:[#allocation4] sm:$0xff]
    %v3118 = vld [vmem:[#allocation4 + $0x38] sm:$0xff]
    %v3119 = vsel %vm97, %v3117, %v3118
    %3120 = vst [vmem:[#allocation4] sm:$0xff] %v3119
    %v3121 = vsel %vm97, %v3118, %v3117
    %3122 = vst [vmem:[#allocation4 + $0x38] sm:$0xff] %v3121
    %v3123 = vld [vmem:[#allocation4 + $0x8] sm:$0xff]
    %v3124 = vld [vmem:[#allocation4 + $0x30] sm:$0xff]
    %v3125 = vsel %vm97, %v3123, %v3124
    %3126 = vst [vmem:[#allocation4 + $0x8] sm:$0xff] %v3125
    %v3127 = vsel %vm97, %v3124, %v3123
    %3128 = vst [vmem:[#allocation4 + $0x30] sm:$0xff] %v3127
    %v3129 = vld [vmem:[#allocation4 + $0x10] sm:$0xff]
    %v3130 = vld [vmem:[#allocation4 + $0x28] sm:$0xff]
    %v3131 = vsel %vm97, %v3129, %v3130
    %3132 = vst [vmem:[#allocation4 + $0x10] sm:$0xff] %v3131
    %v3133 = vsel %vm97, %v3130, %v3129
    %3134 = vst [vmem:[#allocation4 + $0x28] sm:$0xff] %v3133
    %v3135 = vld [vmem:[#allocation4 + $0x18] sm:$0xff]
    %v3136 = vld [vmem:[#allocation4 + $0x20] sm:$0xff]
    %v3137 = vsel %vm97, %v3135, %v3136
    %3138 = vst [vmem:[#allocation4 + $0x18] sm:$0xff] %v3137
    %v3139 = vsel %vm97, %v3136, %v3135
    %3140 = vst [vmem:[#allocation4 + $0x20] sm:$0xff] %v3139
    %v3141 = vld [vmem:[#allocation4] sm:$0xff]
    %v3142 = vld [vmem:[#allocation4 + $0x8] sm:$0xff]
    %v3143 = vld [vmem:[#allocation4 + $0x10] sm:$0xff]
    %v3144 = vld [vmem:[#allocation4 + $0x18] sm:$0xff]
    %v3145 = vld [vmem:[#allocation4 + $0x20] sm:$0xff]
    %v3146 = vld [vmem:[#allocation4 + $0x28] sm:$0xff]
    %v3147 = vld [vmem:[#allocation4 + $0x30] sm:$0xff]
    %v3148 = vld [vmem:[#allocation4 + $0x38] sm:$0xff]
    %v3149 = vpack.c.bf16 %v3142, %v3141
    %v3150 = vpack.c.bf16 %v3144, %v3143
    %v3151 = vpack.c.bf16 %v3146, %v3145
    %v3152 = vpack.c.bf16 %v3148, %v3147
    %v3153 = vld [vmem:[%s7] sm:$0xf]
    %v3154 = vld [vmem:[%s7 + $0x4] sm:$0xf]
    %v3155 = vld [vmem:[%s7 + $0x8] sm:$0xf]
    %v3156 = vld [vmem:[%s7 + $0xc] sm:$0xf]
    %v3157 = vld [vmem:[%s7 + $0x10] sm:$0xf]
    %v3158 = vld [vmem:[%s7 + $0x14] sm:$0xf]
    %v3159 = vld [vmem:[%s7 + $0x18] sm:$0xf]
    %v3160 = vld [vmem:[%s7 + $0x1c] sm:$0xf]
    %v3161 = vld [vmem:[%s7 + $0x20] sm:$0xf]
    %v3162 = vld [vmem:[%s7 + $0x24] sm:$0xf]
    %v3163 = vld [vmem:[%s7 + $0x28] sm:$0xf]
    %v3164 = vld [vmem:[%s7 + $0x2c] sm:$0xf]
    %v3165 = vld [vmem:[%s7 + $0x30] sm:$0xf]
    %v3166 = vld [vmem:[%s7 + $0x34] sm:$0xf]
    %v3167 = vld [vmem:[%s7 + $0x38] sm:$0xf]
    %v3168 = vld [vmem:[%s7 + $0x3c] sm:$0xf]
    %v3185 = vunpack.c.l.b16 %v3153
    %v3186 = vunpack.c.l.b16 %v3154
    %v3187 = vunpack.c.l.b16 %v3155
    %v3188 = vunpack.c.l.b16 %v3156
    %v3189 = vunpack.c.l.b16 %v3157
    %v3190 = vunpack.c.l.b16 %v3158
    %v3191 = vunpack.c.l.b16 %v3159
    %v3192 = vunpack.c.l.b16 %v3160
    %v3193 = vunpack.c.l.b16 %v3161
    %v3194 = vunpack.c.l.b16 %v3162
    %v3195 = vunpack.c.l.b16 %v3163
    %v3196 = vunpack.c.l.b16 %v3164
    %v3197 = vunpack.c.l.b16 %v3165
    %v3198 = vunpack.c.l.b16 %v3166
    %v3199 = vunpack.c.l.b16 %v3167
    %v3200 = vunpack.c.l.b16 %v3168
    %v3201 = vpack.c.b16 %v3186, %v3185
    %v3202 = vpack.c.b16 %v3188, %v3187
    %v3203 = vpack.c.b16 %v3190, %v3189
    %v3204 = vpack.c.b16 %v3192, %v3191
    %v3205 = vpack.c.b16 %v3194, %v3193
    %v3206 = vpack.c.b16 %v3196, %v3195
    %v3207 = vpack.c.b16 %v3198, %v3197
    %v3208 = vpack.c.b16 %v3200, %v3199
    %3217 = vmatprep.subr.bf16.mxu0 0
    %3218 = vmatpush1.bf16.msra.mxu0 %v3201
    %3219 = vmatprep.subr.bf16.mxu0 0
    %3220 = vmatpush1.bf16.msra.mxu0 %v3202
    %3221 = vmatprep.subr.bf16.mxu0 0
    %3222 = vmatpush1.bf16.msra.mxu0 %v3203
    %3223 = vmatprep.subr.bf16.mxu0 0
    %3224 = vmatpush1.bf16.msra.mxu0 %v3204
    %3225 = vmatprep.subr.bf16.mxu0 0
    %3226 = vmatpush1.bf16.msra.mxu0 %v3205
    %3227 = vmatprep.subr.bf16.mxu0 0
    %3228 = vmatpush1.bf16.msra.mxu0 %v3206
    %3229 = vmatprep.subr.bf16.mxu0 0
    %3230 = vmatpush1.bf16.msra.mxu0 %v3207
    %3231 = vmatprep.subr.bf16.mxu0 0
    %3232 = vmatpush1.bf16.msra.mxu0 %v3208
    %3233 = vmatprep.subr.bf16.mxu0 0
    %3234 = vmatpush1.bf16.msra.mxu0 0
    %3235 = vmatprep.subr.bf16.mxu0 0
    %3236 = vmatpush1.bf16.msra.mxu0 0
    %3237 = vmatprep.subr.bf16.mxu0 0
    %3238 = vmatpush1.bf16.msra.mxu0 0
    %3239 = vmatprep.subr.bf16.mxu0 0
    %3240 = vmatpush1.bf16.msra.mxu0 0
    %3241 = vmatprep.subr.bf16.mxu0 0
    %3242 = vmatpush1.bf16.msra.mxu0 0
    %3243 = vmatprep.subr.bf16.mxu0 0
    %3244 = vmatpush1.bf16.msra.mxu0 0
    %3245 = vmatprep.subr.bf16.mxu0 0
    %3246 = vmatpush1.bf16.msra.mxu0 0
    %3247 = vmatprep.subr.bf16.mxu0 0
    %3248 = vmatpush1.bf16.msra.mxu0 0
    %3249 = vmatprep.mubr.bf16.mxu0 0
    %3250 = vmatmul.mubr.bf16.gmra.mrb[0].mxu0 %v3149
    %v3251 = vpop.f32.mrb[0].mxu0
    %v3252 = vadd.f32 0.0, %v3251
    %v3253 = vpop.f32.mrb[0].mxu0
    %v3254 = vpop.f32.mrb[0].mxu0
    %v3255 = vadd.f32 0.0, %v3254
    %v3256 = vpop.f32.mrb[0].mxu0
    %3257 = vmatprep.mubr.bf16.mxu0 0
    %3258 = vmatmul.mubr.bf16.gmra.mrb[0].mxu0 %v3150
    %v3259 = vpop.f32.mrb[0].mxu0
    %v3260 = vadd.f32 0.0, %v3259
    %v3261 = vpop.f32.mrb[0].mxu0
    %v3262 = vpop.f32.mrb[0].mxu0
    %v3263 = vadd.f32 0.0, %v3262
    %v3264 = vpop.f32.mrb[0].mxu0
    %3265 = vmatprep.mubr.bf16.mxu0 0
    %3266 = vmatmul.mubr.bf16.gmra.mrb[0].mxu0 %v3151
    %v3267 = vpop.f32.mrb[0].mxu0
    %v3268 = vadd.f32 0.0, %v3267
    %v3269 = vpop.f32.mrb[0].mxu0
    %v3270 = vpop.f32.mrb[0].mxu0
    %v3271 = vadd.f32 0.0, %v3270
    %v3272 = vpop.f32.mrb[0].mxu0
    %3273 = vmatprep.mubr.bf16.mxu0 0
    %3274 = vmatmul.mubr.bf16.gmra.mrb[0].mxu0 %v3152
    %v3275 = vpop.f32.mrb[0].mxu0
    %v3276 = vadd.f32 0.0, %v3275
    %v3277 = vpop.f32.mrb[0].mxu0
    %v3278 = vpop.f32.mrb[0].mxu0
    %v3279 = vadd.f32 0.0, %v3278
    %v3280 = vpop.f32.mrb[0].mxu0
    %3281 = vdwg.mxu0
    %v3282 = vtanh.pop %v3252
    %v3283 = vtanh.pop %v3255
    %v3284 = vtanh.pop %v3260
    %v3285 = vtanh.pop %v3263
    %v3286 = vtanh.pop %v3268
    %v3287 = vtanh.pop %v3271
    %v3288 = vtanh.pop %v3276
    %v3289 = vtanh.pop %v3279
    %v3290 = vld [vmem:[%s8] sm:$0x1]
    %v3292 = vlaneseq
    %v3293 = vshrl.u32 %v3292, 7
    %v3294 = vsub.s32 0, %v3293
    %v3295 = vrot.slane %v3290, %v3294
    %v3297 = vmul.f32 %v3282, %v3295
    %v3298 = vmul.f32 %v3283, %v3295
    %v3299 = vmul.f32 %v3284, %v3295
    %v3300 = vmul.f32 %v3285, %v3295
    %v3301 = vmul.f32 %v3286, %v3295
    %v3302 = vmul.f32 %v3287, %v3295
    %v3303 = vmul.f32 %v3288, %v3295
    %v3304 = vmul.f32 %v3289, %v3295
    %3305 = vadd.xlane.f32.xlu0 %v3297
    %v3306 = vpop.xlane.xlu0 %3305
    %3307 = vadd.xlane.f32.xlu0 %v3298
    %v3308 = vpop.xlane.xlu0 %3307
    %3309 = vadd.xlane.f32.xlu0 %v3299
    %v3310 = vpop.xlane.xlu0 %3309
    %3311 = vadd.xlane.f32.xlu0 %v3300
    %v3312 = vpop.xlane.xlu0 %3311
    %3313 = vadd.xlane.f32.xlu0 %v3301
    %v3314 = vpop.xlane.xlu0 %3313
    %3315 = vadd.xlane.f32.xlu0 %v3302
    %v3316 = vpop.xlane.xlu0 %3315
    %3317 = vadd.xlane.f32.xlu0 %v3303
    %v3318 = vpop.xlane.xlu0 %3317
    %3319 = vadd.xlane.f32.xlu0 %v3304
    %v3320 = vpop.xlane.xlu0 %3319
    %v3321 = vmax.f32 %v3306, %v3308
    %v3322 = vmax.f32 %v3321, %v3310
    %v3323 = vmax.f32 %v3322, %v3312
    %v3324 = vmax.f32 %v3323, %v3314
    %v3325 = vmax.f32 %v3324, %v3316
    %v3326 = vmax.f32 %v3325, %v3318
    %v3327 = vmax.f32 %v3326, %v3320
    %v3328 = vsub.f32 %v3306, %v3327
    %v3329 = vmul.f32 %v3328, 1.442695
    %v3330 = vpow.pop %v3329
    %v3331 = vadd.f32 %v3330, 0.0
    %v3332 = vmul.f32 %v3330, %v3141
    %v3333 = vadd.f32 %v3332, 0.0
    %v3334 = vsub.f32 %v3308, %v3327
    %v3335 = vmul.f32 %v3334, 1.442695
    %v3336 = vpow.pop %v3335
    %v3337 = vadd.f32 %v3331, %v3336
    %v3338 = vmul.f32 %v3336, %v3142
    %v3339 = vadd.f32 %v3333, %v3338
    %v3340 = vsub.f32 %v3310, %v3327
    %v3341 = vmul.f32 %v3340, 1.442695
    %v3342 = vpow.pop %v3341
    %v3343 = vadd.f32 %v3337, %v3342
    %v3344 = vmul.f32 %v3342, %v3143
    %v3345 = vadd.f32 %v3339, %v3344
    %v3346 = vsub.f32 %v3312, %v3327
    %v3347 = vmul.f32 %v3346, 1.442695
    %v3348 = vpow.pop %v3347
    %v3349 = vadd.f32 %v3343, %v3348
    %v3350 = vmul.f32 %v3348, %v3144
    %v3351 = vadd.f32 %v3345, %v3350
    %v3352 = vsub.f32 %v3314, %v3327
    %v3353 = vmul.f32 %v3352, 1.442695
    %v3354 = vpow.pop %v3353
    %v3355 = vadd.f32 %v3349, %v3354
    %v3356 = vmul.f32 %v3354, %v3145
    %v3357 = vadd.f32 %v3351, %v3356
    %v3358 = vsub.f32 %v3316, %v3327
    %v3359 = vmul.f32 %v3358, 1.442695
    %v3360 = vpow.pop %v3359
    %v3361 = vadd.f32 %v3355, %v3360
    %v3362 = vmul.f32 %v3360, %v3146
    %v3363 = vadd.f32 %v3357, %v3362
    %v3364 = vsub.f32 %v3318, %v3327
    %v3365 = vmul.f32 %v3364, 1.442695
    %v3366 = vpow.pop %v3365
    %v3367 = vadd.f32 %v3361, %v3366
    %v3368 = vmul.f32 %v3366, %v3147
    %v3369 = vadd.f32 %v3363, %v3368
    %v3370 = vsub.f32 %v3320, %v3327
    %v3371 = vmul.f32 %v3370, 1.442695
    %v3372 = vpow.pop %v3371
    %v3373 = vadd.f32 %v3367, %v3372
    %v3374 = vmul.f32 %v3372, %v3148
    %v3375 = vadd.f32 %v3369, %v3374
    %v3376 = vrcp.pop %v3373
    %v3377 = vmul.f32 %v3375, %v3376
    %v3378 = vpack.c.bf16 %v3377, %v3377
    %v3379 = vld [vmem:[%s9] sm:$0xf]
    %v3380 = vld [vmem:[%s9 + $0x4] sm:$0xf]
    %v3381 = vld [vmem:[%s9 + $0x8] sm:$0xf]
    %v3382 = vld [vmem:[%s9 + $0xc] sm:$0xf]
    %v3383 = vld [vmem:[%s9 + $0x10] sm:$0xf]
    %v3384 = vld [vmem:[%s9 + $0x14] sm:$0xf]
    %v3385 = vld [vmem:[%s9 + $0x18] sm:$0xf]
    %v3386 = vld [vmem:[%s9 + $0x1c] sm:$0xf]
    %v3387 = vld [vmem:[%s9 + $0x20] sm:$0xf]
    %v3388 = vld [vmem:[%s9 + $0x24] sm:$0xf]
    %v3389 = vld [vmem:[%s9 + $0x28] sm:$0xf]
    %v3390 = vld [vmem:[%s9 + $0x2c] sm:$0xf]
    %v3391 = vld [vmem:[%s9 + $0x30] sm:$0xf]
    %v3392 = vld [vmem:[%s9 + $0x34] sm:$0xf]
    %v3393 = vld [vmem:[%s9 + $0x38] sm:$0xf]
    %v3394 = vld [vmem:[%s9 + $0x3c] sm:$0xf]
    %v3395 = vld [vmem:[%s10] sm:$0x1]
    %v3397 = vlaneseq
    %v3398 = vshrl.u32 %v3397, 7
    %v3399 = vsub.s32 0, %v3398
    %v3400 = vrot.slane %v3395, %v3399
    %v3418 = vunpack.c.l.b16 %v3379
    %v3419 = vunpack.c.l.b16 %v3380
    %v3420 = vunpack.c.l.b16 %v3381
    %v3421 = vunpack.c.l.b16 %v3382
    %v3422 = vunpack.c.l.b16 %v3383
    %v3423 = vunpack.c.l.b16 %v3384
    %v3424 = vunpack.c.l.b16 %v3385
    %v3425 = vunpack.c.l.b16 %v3386
    %v3426 = vunpack.c.l.b16 %v3387
    %v3427 = vunpack.c.l.b16 %v3388
    %v3428 = vunpack.c.l.b16 %v3389
    %v3429 = vunpack.c.l.b16 %v3390
    %v3430 = vunpack.c.l.b16 %v3391
    %v3431 = vunpack.c.l.b16 %v3392
    %v3432 = vunpack.c.l.b16 %v3393
    %v3433 = vunpack.c.l.b16 %v3394
    %v3434 = vpack.c.b16 %v3419, %v3418
    %v3435 = vpack.c.b16 %v3421, %v3420
    %v3436 = vpack.c.b16 %v3423, %v3422
    %v3437 = vpack.c.b16 %v3425, %v3424
    %v3438 = vpack.c.b16 %v3427, %v3426
    %v3439 = vpack.c.b16 %v3429, %v3428
    %v3440 = vpack.c.b16 %v3431, %v3430
    %v3441 = vpack.c.b16 %v3433, %v3432
    %3450 = vmatprep.subr.bf16.mxu0 0
    %3451 = vmatpush1.bf16.msra.mxu0 %v3434
    %3452 = vmatprep.subr.bf16.mxu0 0
    %3453 = vmatpush1.bf16.msra.mxu0 %v3435
    %3454 = vmatprep.subr.bf16.mxu0 0
    %3455 = vmatpush1.bf16.msra.mxu0 %v3436
    %3456 = vmatprep.subr.bf16.mxu0 0
    %3457 = vmatpush1.bf16.msra.mxu0 %v3437
    %3458 = vmatprep.subr.bf16.mxu0 0
    %3459 = vmatpush1.bf16.msra.mxu0 %v3438
    %3460 = vmatprep.subr.bf16.mxu0 0
    %3461 = vmatpush1.bf16.msra.mxu0 %v3439
    %3462 = vmatprep.subr.bf16.mxu0 0
    %3463 = vmatpush1.bf16.msra.mxu0 %v3440
    %3464 = vmatprep.subr.bf16.mxu0 0
    %3465 = vmatpush1.bf16.msra.mxu0 %v3441
    %3466 = vmatprep.subr.bf16.mxu0 0
    %3467 = vmatpush1.bf16.msra.mxu0 0
    %3468 = vmatprep.subr.bf16.mxu0 0
    %3469 = vmatpush1.bf16.msra.mxu0 0
    %3470 = vmatprep.subr.bf16.mxu0 0
    %3471 = vmatpush1.bf16.msra.mxu0 0
    %3472 = vmatprep.subr.bf16.mxu0 0
    %3473 = vmatpush1.bf16.msra.mxu0 0
    %3474 = vmatprep.subr.bf16.mxu0 0
    %3475 = vmatpush1.bf16.msra.mxu0 0
    %3476 = vmatprep.subr.bf16.mxu0 0
    %3477 = vmatpush1.bf16.msra.mxu0 0
    %3478 = vmatprep.subr.bf16.mxu0 0
    %3479 = vmatpush1.bf16.msra.mxu0 0
    %3480 = vmatprep.subr.bf16.mxu0 0
    %3481 = vmatpush1.bf16.msra.mxu0 0
    %3482 = vmatprep.mubr.bf16.mxu0 0
    %3483 = vmatmul.mubr.bf16.gmra.mrb[0].mxu0 %v3378
    %v3484 = vpop.f32.mrb[0].mxu0
    %v3485 = vadd.f32 %v3400, %v3484
    %v3486 = vpop.f32.mrb[0].mxu0
    %v3487 = vpop.f32.mrb[0].mxu0
    %v3488 = vpop.f32.mrb[0].mxu0
    %3489 = vdwg.mxu0
    %vm3490 = vcmask 25600
    %3491 = vst.msk [vmem:[#allocation5] sm:$0x3] %vm3490, %v3485
    // Predicated region
    $region46: #{bilstm_attention_forward.1} parent=1 // pred_check
      _
    $region47: #{bilstm_attention_forward.1} parent=1 // pred_check_branch
      %3493 = sbr.rel (0) target = $region49
    $region48: #{bilstm_attention_forward.1} parent=1 // pred_region
      %s3495 = ssub.s32 32, 32
      %3496 = vsyncadd [#allocation6], %s3495
      %s3498 = sshll.u32 [#allocation5], 4
      %s3499 = int_to_ptr.vmem [resolvable:$true] %s3498
      %3501 = dma.vmem_to_hbm [thread:$0]  %s3499, 32, %s11, [#allocation6]
    $region49: #{bilstm_attention_forward.1} parent=1 // pred_fallthru
      _
    // Predicated region
    $region50: #{bilstm_attention_forward.1} parent=1 // pred_check
      _
    $region51: #{bilstm_attention_forward.1} parent=1 // pred_check_branch
      %3503 = sbr.rel (0) target = $region53
    $region52: #{bilstm_attention_forward.1} parent=1 // pred_region
      %3504 = dma.done [#allocation6], 32
    $region53: #{bilstm_attention_forward.1} parent=1 // pred_fallthru
      _
    %3505 = vsyncpa [#allocation6], 1

</llo_original>
